<compile_context>
chip_gen: v6e
topology: v6e:2x2x1
jax: 0.10.0
libtpu: 0.0.40
codegen_flags: <defaults>
</compile_context>

<pallas_src>
import functools

import jax
import jax.numpy as jnp
from jax.experimental import pallas as pl
from jax.experimental.pallas import tpu as pltpu

EPS = 1e-5  # BatchNorm2d default eps


# ----------------------------- Pallas kernels ------------------------------ #

def _conv_kernel(x_ref, w_ref, b_ref, y_ref, *rest, emit_stats):
    """3x3 stride-1 pad-1 conv as ONE im2col matmul per (image, row-tile).

    x_ref : (1, H+2, W+2, Ci) bf16 -- whole padded image, resident across row tiles
    w_ref : (9*Ci, Co)        bf16 -- taps flattened in (dh, dw, ci) order
    b_ref : (1, Co)           f32
    y_ref : (1, TH, W, Co)    f32  -- conv+bias (pre-activation if emit_stats,
                                      ReLU already fused otherwise)
    rest  : (stats_ref?, xcol_scratch)
      stats_ref    : (1, 1, 2, Co) f32  per-tile [sum, sum_sq] for global BN stats
      xcol_scratch : (TH*W, 9*Ci) bf16  VMEM scratch holding the im2col block
    """
    xcol_ref = rest[-1]
    th = y_ref.shape[1]
    out_w = y_ref.shape[2]
    co = y_ref.shape[3]
    ci = x_ref.shape[3]

    r0 = pl.program_id(1) * th  # first padded input row needed by this row tile

    # Assemble the im2col block in VMEM (input is NOT duplicated through HBM).
    k = 0
    for dh in range(3):
        for dw in range(3):
            tap = x_ref[0, pl.ds(r0 + dh, th), pl.ds(dw, out_w), :]  # (TH, W, Ci)
            xcol_ref[:, k * ci:(k + 1) * ci] = tap.reshape(th * out_w, ci)
            k += 1

    # Single MXU matmul: K = 9*Ci, bf16 inputs, f32 accumulation.
    acc = jnp.dot(xcol_ref[...], w_ref[...], preferred_element_type=jnp.float32)
    acc = acc + b_ref[...]                                            # (TH*W, Co)

    if emit_stats:
        # BatchNorm partial statistics; global mean/var finalized outside
        # (keeps the grid fully parallel / tileable).  BN math stays in f32.
        stats_ref = rest[0]
        stats_ref[0, 0, 0:1, :] = jnp.sum(acc, axis=0, keepdims=True)
        stats_ref[0, 0, 1:2, :] = jnp.sum(acc * acc, axis=0, keepdims=True)
        y_ref[0] = acc.reshape(th, out_w, co)
    else:
        y_ref[0] = jnp.maximum(acc, 0.0).reshape(th, out_w, co)


def _scale_shift_relu_kernel(y_ref, scale_ref, shift_ref, o_ref):
    """Finalized BatchNorm affine + ReLU: relu(y * scale + shift)."""
    o_ref[...] = jnp.maximum(y_ref[...] * scale_ref[...] + shift_ref[...], 0.0)


def _maxpool2x2_kernel(x_ref, o_ref):
    """MaxPool2d(2).

    x_ref: (1, H, W/2, 2*C) -- the two W-neighbours are paired in the lane dim
                               (free metadata reshape in the wrapper).
    o_ref: (1, H/2, W/2, C)
    """
    c = o_ref.shape[3]
    ho = o_ref.shape[1]
    x = x_ref[0]                                      # (H, Wo, 2C)
    wmax = jnp.maximum(x[:, :, :c], x[:, :, c:])      # pool along W (lane slices)
    wmax = wmax.reshape(ho, 2, wmax.shape[1], c)      # split H (outer dim, free)
    o_ref[0] = jnp.maximum(wmax[:, 0], wmax[:, 1])    # pool along H


# ------------------------------- Wrappers ---------------------------------- #

def _pick_tile_h(h, w, max_tile_rows):
    """Largest divisor of H whose row-tile (TH*W rows) stays under the budget."""
    th = 1
    for cand in range(1, h + 1):
        if h % cand == 0 and cand * w <= max_tile_rows:
            th = cand
    return th


def _conv_bn_relu_layer(x_nhwc, w, b, gamma, beta, is_bn, tile_rows):
    """One conv(+BN)+ReLU layer.  x: (N,H,W,Ci), w: (Co,Ci,3,3) OIHW."""
    n, h, wd, ci = x_nhwc.shape
    co = w.shape[0]
    assert wd % 8 == 0, "W must be a multiple of 8 (sublane tile)"
    th = _pick_tile_h(h, wd, tile_rows)
    nt = h // th

    # bf16 matmul inputs (native MXU path); accumulation / BN stay in f32.
    xp = jnp.pad(x_nhwc, ((0, 0), (1, 1), (1, 1), (0, 0))).astype(jnp.bfloat16)
    wk = jnp.transpose(w, (2, 3, 1, 0)).reshape(9 * ci, co).astype(jnp.bfloat16)
    bk = b.reshape(1, co).astype(jnp.float32)

    grid = (n, nt)
    x_spec = pl.BlockSpec((1, h + 2, wd + 2, ci), lambda bi, ti: (bi, 0, 0, 0))
    w_spec = pl.BlockSpec((9 * ci, co), lambda bi, ti: (0, 0))
    b_spec = pl.BlockSpec((1, co), lambda bi, ti: (0, 0))
    y_spec = pl.BlockSpec((1, th, wd, co), lambda bi, ti: (bi, ti, 0, 0))

    cparams = pltpu.CompilerParams(
        dimension_semantics=("parallel", "parallel"))
    cost = pl.CostEstimate(
        flops=2 * n * h * wd * 9 * ci * co,
        transcendentals=0,
        bytes_accessed=int(xp.size * 2 + wk.size * 2 + bk.size * 4
                           + n * h * wd * co * 4))
    scratch = [pltpu.VMEM((th * wd, 9 * ci), jnp.bfloat16)]

    if is_bn:
        out_shape = (jax.ShapeDtypeStruct((n, h, wd, co), jnp.float32),
                     jax.ShapeDtypeStruct((n, nt, 2, co), jnp.float32))
        out_specs = (y_spec,
                     pl.BlockSpec((1, 1, 2, co), lambda bi, ti: (bi, ti, 0, 0)))
    else:
        out_shape = jax.ShapeDtypeStruct((n, h, wd, co), jnp.float32)
        out_specs = y_spec

    res = pl.pallas_call(
        functools.partial(_conv_kernel, emit_stats=is_bn),
        out_shape=out_shape,
        grid=grid,
        in_specs=[x_spec, w_spec, b_spec],
        out_specs=out_specs,
        scratch_shapes=scratch,
        compiler_params=cparams,
        cost_estimate=cost,
    )(xp, wk, bk)

    if not is_bn:
        return res

    # Finalize GLOBAL (N*H*W) batch statistics from the per-tile partial sums
    # (tiny O(Co) epilogue), then apply the affine + ReLU in a second pass.
    y, stats = res
    count = float(n * h * wd)
    s = jnp.sum(stats[:, :, 0, :], axis=(0, 1))
    ss = jnp.sum(stats[:, :, 1, :], axis=(0, 1))
    mean = s / count
    var = ss / count - mean * mean                     # biased (training-mode BN)
    scale = gamma * jax.lax.rsqrt(var + EPS)
    shift = beta - mean * scale

    vec_spec = pl.BlockSpec((1, 1, 1, co), lambda bi, ti: (0, 0, 0, 0))
    out = pl.pallas_call(
        _scale_shift_relu_kernel,
        out_shape=jax.ShapeDtypeStruct((n, h, wd, co), jnp.float32),
        grid=grid,
        in_specs=[y_spec, vec_spec, vec_spec],
        out_specs=y_spec,
        compiler_params=cparams,
    )(y, scale.reshape(1, 1, 1, co), shift.reshape(1, 1, 1, co))
    return out


def _maxpool2x2(x_nhwc):
    """MaxPool2d(kernel=2, stride=2): (N,H,W,C) -> (N,H/2,W/2,C)."""
    n, h, wd, c = x_nhwc.shape
    assert h % 2 == 0 and wd % 2 == 0, "MaxPool2d(2) requires even H and W"
    ho, wo = h // 2, wd // 2
    # Free metadata reshape: pair the two W-neighbours in the lane dim.
    xr = x_nhwc.reshape(n, h, wo, 2 * c)
    return pl.pallas_call(
        _maxpool2x2_kernel,
        out_shape=jax.ShapeDtypeStruct((n, ho, wo, c), jnp.float32),
        grid=(n,),
        in_specs=[pl.BlockSpec((1, h, wo, 2 * c), lambda bi: (bi, 0, 0, 0))],
        out_specs=pl.BlockSpec((1, ho, wo, c), lambda bi: (bi, 0, 0, 0)),
        compiler_params=pltpu.CompilerParams(dimension_semantics=("parallel",)),
    )(x_nhwc.reshape(n, h, wo, 2 * c) if xr is None else xr)


def fcn_conv_forward(x_nchw, params, is_bn, tile_rows=1024):
    """Equivalent of _Conv.forward: (N,Cin,H,W) -> (N,Cout,H/2,W/2).

    tile_rows bounds TILE_H*W (rows per conv matmul tile); re-derive per chip
    generation (v7x has 64 MiB VMEM -> keep it in the 512-2048 range).
    """
    x = jnp.transpose(x_nchw, (0, 2, 3, 1)).astype(jnp.float32)   # NCHW -> NHWC
    for (w, b) in params["convs"]:
        x = _conv_bn_relu_layer(x, w, b, params["bn_gamma"], params["bn_beta"],
                                is_bn, tile_rows)
    x = _maxpool2x2(x)
    return jnp.transpose(x, (0, 3, 1, 2))                         # NHWC -> NCHW


# ----------------------- deterministic parameter init ---------------------- #

def init_params(key, in_channel, out_channel, layer_num):
    params = {
        "convs": [],
        "bn_gamma": jnp.ones((out_channel,), jnp.float32),   # BatchNorm2d defaults
        "bn_beta": jnp.zeros((out_channel,), jnp.float32),
    }
    ci = in_channel
    for _ in range(layer_num):
        key, kw, kb = jax.random.split(key, 3)
        fan_in = ci * 3 * 3
        bound = float(fan_in) ** -0.5  # PyTorch-style uniform bound
        w = jax.random.uniform(kw, (out_channel, ci, 3, 3), jnp.float32,
                               minval=-bound, maxval=bound)
        b = jax.random.uniform(kb, (out_channel,), jnp.float32,
                               minval=-bound, maxval=bound)
        params["convs"].append((w, b))
        ci = out_channel
    return params


# ----------------------------- pure-JAX reference --------------------------- #

def reference_forward(x_nchw, params, is_bn):
    x = x_nchw.astype(jnp.float32)
    for (w, b) in params["convs"]:
        x = jax.lax.conv_general_dilated(
            x, w, window_strides=(1, 1), padding=((1, 1), (1, 1)),
            dimension_numbers=("NCHW", "OIHW", "NCHW"),
            precision=jax.lax.Precision.HIGHEST)
        x = x + b[None, :, None, None]
        if is_bn:
            mean = jnp.mean(x, axis=(0, 2, 3), keepdims=True)
            var = jnp.mean((x - mean) ** 2, axis=(0, 2, 3), keepdims=True)
            x = (x - mean) * jax.lax.rsqrt(var + EPS)
            x = (x * params["bn_gamma"][None, :, None, None]
                 + params["bn_beta"][None, :, None, None])
        x = jnp.maximum(x, 0.0)
    n, c, h, w = x.shape
    return x.reshape(n, c, h // 2, 2, w // 2, 2).max(axis=(3, 5))


# ----------------------------------- main ----------------------------------- #

if __name__ == "__main__":
    N, C_IN, C_OUT, H, W = 2, 4, 8, 16, 16
    LAYER_NUM = 2

    key = jax.random.PRNGKey(0)
    kx, kp = jax.random.split(key)
    x = jax.random.normal(kx, (N, C_IN, H, W), jnp.float32)
    params = init_params(kp, C_IN, C_OUT, LAYER_NUM)

    for is_bn in (True, False):
        # tile_rows=128 -> 2 row-tiles per image at these toy shapes, so the
        # multi-tile grid path and the cross-tile BN-stats reduction are tested.
        fwd = jax.jit(functools.partial(fcn_conv_forward, is_bn=is_bn,
                                        tile_rows=128))
        out = jax.block_until_ready(fwd(x, params))
        ref = reference_forward(x, params, is_bn)
        assert out.shape == (N, C_OUT, H // 2, W // 2), out.shape
        assert jnp.allclose(out, ref, rtol=1e-2, atol=1e-2), (
            is_bn, float(jnp.max(jnp.abs(out - ref))))
    print("KERNEL_OK")
</pallas_src>

<mosaic_0001>
module attributes {stable_mosaic.version = 11 : i64} {
  func.func @_conv_kernel(%arg0: i32, %arg1: i32, %arg2: memref<1x18x18x4xbf16, #tpu.memory_space<vmem>>, %arg3: memref<36x8xbf16, #tpu.memory_space<vmem>>, %arg4: memref<1x8xf32, #tpu.memory_space<vmem>>, %arg5: memref<1x8x16x8xf32, #tpu.memory_space<vmem>>, %arg6: memref<1x1x2x8xf32, #tpu.memory_space<vmem>>, %arg7: memref<128x36xbf16, #tpu.memory_space<vmem>>) attributes {dimension_semantics = [#tpu.dimension_semantics<parallel>, #tpu.dimension_semantics<parallel>], iteration_bounds = array<i64: 2, 2>, scalar_prefetch = 0 : i64, scratch_operands = 1 : i64, tpu.core_type = #tpu.core_type<tc>, window_params = [{transform_indices = @transform_0, window_bounds = array<i64: 1, 18, 18, 4>}, {pipeline_mode = #tpu.pipeline_mode<synchronous>, transform_indices = @transform_1, window_bounds = array<i64: 36, 8>}, {pipeline_mode = #tpu.pipeline_mode<synchronous>, transform_indices = @transform_2, window_bounds = array<i64: 1, 8>}, {transform_indices = @transform_3, window_bounds = array<i64: 1, 8, 16, 8>}, {transform_indices = @transform_4, window_bounds = array<i64: 1, 1, 2, 8>}]} {
    %c8_i32 = arith.constant 8 : i32
    %0 = arith.muli %arg1, %c8_i32 : i32
    %c0_i32 = arith.constant 0 : i32
    %1 = arith.addi %0, %c0_i32 : i32
    %c0 = arith.constant 0 : index
    %2 = arith.index_cast %1 : i32 to index
    %c0_0 = arith.constant 0 : index
    %c0_1 = arith.constant 0 : index
    %3 = vector.load %arg2[%c0, %2, %c0_0, %c0_1] : memref<1x18x18x4xbf16, #tpu.memory_space<vmem>>, vector<1x8x16x4xbf16>
    %4 = vector.shape_cast %3 : vector<1x8x16x4xbf16> to vector<8x16x4xbf16>
    %5 = vector.shape_cast %4 : vector<8x16x4xbf16> to vector<128x4xbf16>
    %c0_2 = arith.constant 0 : index
    %c0_3 = arith.constant 0 : index
    %6 = vector.load %arg7[%c0_2, %c0_3] : memref<128x36xbf16, #tpu.memory_space<vmem>>, vector<128x4xbf16>
    tpu.vector_store %arg7[%c0_2, %c0_3], %5 {strides = array<i32>} : memref<128x36xbf16, #tpu.memory_space<vmem>>, vector<128x4xbf16>,
    %c0_i32_4 = arith.constant 0 : i32
    %7 = arith.addi %0, %c0_i32_4 : i32
    %c0_5 = arith.constant 0 : index
    %8 = arith.index_cast %7 : i32 to index
    %c1 = arith.constant 1 : index
    %c0_6 = arith.constant 0 : index
    %9 = vector.load %arg2[%c0_5, %8, %c1, %c0_6] : memref<1x18x18x4xbf16, #tpu.memory_space<vmem>>, vector<1x8x16x4xbf16>
    %10 = vector.shape_cast %9 : vector<1x8x16x4xbf16> to vector<8x16x4xbf16>
    %11 = vector.shape_cast %10 : vector<8x16x4xbf16> to vector<128x4xbf16>
    %c0_7 = arith.constant 0 : index
    %c4 = arith.constant 4 : index
    %12 = vector.load %arg7[%c0_7, %c4] : memref<128x36xbf16, #tpu.memory_space<vmem>>, vector<128x4xbf16>
    tpu.vector_store %arg7[%c0_7, %c4], %11 {strides = array<i32>} : memref<128x36xbf16, #tpu.memory_space<vmem>>, vector<128x4xbf16>,
    %c0_i32_8 = arith.constant 0 : i32
    %13 = arith.addi %0, %c0_i32_8 : i32
    %c0_9 = arith.constant 0 : index
    %14 = arith.index_cast %13 : i32 to index
    %c2 = arith.constant 2 : index
    %c0_10 = arith.constant 0 : index
    %15 = vector.load %arg2[%c0_9, %14, %c2, %c0_10] : memref<1x18x18x4xbf16, #tpu.memory_space<vmem>>, vector<1x8x16x4xbf16>
    %16 = vector.shape_cast %15 : vector<1x8x16x4xbf16> to vector<8x16x4xbf16>
    %17 = vector.shape_cast %16 : vector<8x16x4xbf16> to vector<128x4xbf16>
    %c0_11 = arith.constant 0 : index
    %c8 = arith.constant 8 : index
    %18 = vector.load %arg7[%c0_11, %c8] : memref<128x36xbf16, #tpu.memory_space<vmem>>, vector<128x4xbf16>
    tpu.vector_store %arg7[%c0_11, %c8], %17 {strides = array<i32>} : memref<128x36xbf16, #tpu.memory_space<vmem>>, vector<128x4xbf16>,
    %c1_i32 = arith.constant 1 : i32
    %19 = arith.addi %0, %c1_i32 : i32
    %c0_12 = arith.constant 0 : index
    %20 = arith.index_cast %19 : i32 to index
    %c0_13 = arith.constant 0 : index
    %c0_14 = arith.constant 0 : index
    %21 = vector.load %arg2[%c0_12, %20, %c0_13, %c0_14] : memref<1x18x18x4xbf16, #tpu.memory_space<vmem>>, vector<1x8x16x4xbf16>
    %22 = vector.shape_cast %21 : vector<1x8x16x4xbf16> to vector<8x16x4xbf16>
    %23 = vector.shape_cast %22 : vector<8x16x4xbf16> to vector<128x4xbf16>
    %c0_15 = arith.constant 0 : index
    %c12 = arith.constant 12 : index
    %24 = vector.load %arg7[%c0_15, %c12] : memref<128x36xbf16, #tpu.memory_space<vmem>>, vector<128x4xbf16>
    tpu.vector_store %arg7[%c0_15, %c12], %23 {strides = array<i32>} : memref<128x36xbf16, #tpu.memory_space<vmem>>, vector<128x4xbf16>,
    %c1_i32_16 = arith.constant 1 : i32
    %25 = arith.addi %0, %c1_i32_16 : i32
    %c0_17 = arith.constant 0 : index
    %26 = arith.index_cast %25 : i32 to index
    %c1_18 = arith.constant 1 : index
    %c0_19 = arith.constant 0 : index
    %27 = vector.load %arg2[%c0_17, %26, %c1_18, %c0_19] : memref<1x18x18x4xbf16, #tpu.memory_space<vmem>>, vector<1x8x16x4xbf16>
    %28 = vector.shape_cast %27 : vector<1x8x16x4xbf16> to vector<8x16x4xbf16>
    %29 = vector.shape_cast %28 : vector<8x16x4xbf16> to vector<128x4xbf16>
    %c0_20 = arith.constant 0 : index
    %c16 = arith.constant 16 : index
    %30 = vector.load %arg7[%c0_20, %c16] : memref<128x36xbf16, #tpu.memory_space<vmem>>, vector<128x4xbf16>
    tpu.vector_store %arg7[%c0_20, %c16], %29 {strides = array<i32>} : memref<128x36xbf16, #tpu.memory_space<vmem>>, vector<128x4xbf16>,
    %c1_i32_21 = arith.constant 1 : i32
    %31 = arith.addi %0, %c1_i32_21 : i32
    %c0_22 = arith.constant 0 : index
    %32 = arith.index_cast %31 : i32 to index
    %c2_23 = arith.constant 2 : index
    %c0_24 = arith.constant 0 : index
    %33 = vector.load %arg2[%c0_22, %32, %c2_23, %c0_24] : memref<1x18x18x4xbf16, #tpu.memory_space<vmem>>, vector<1x8x16x4xbf16>
    %34 = vector.shape_cast %33 : vector<1x8x16x4xbf16> to vector<8x16x4xbf16>
    %35 = vector.shape_cast %34 : vector<8x16x4xbf16> to vector<128x4xbf16>
    %c0_25 = arith.constant 0 : index
    %c20 = arith.constant 20 : index
    %36 = vector.load %arg7[%c0_25, %c20] : memref<128x36xbf16, #tpu.memory_space<vmem>>, vector<128x4xbf16>
    tpu.vector_store %arg7[%c0_25, %c20], %35 {strides = array<i32>} : memref<128x36xbf16, #tpu.memory_space<vmem>>, vector<128x4xbf16>,
    %c2_i32 = arith.constant 2 : i32
    %37 = arith.addi %0, %c2_i32 : i32
    %c0_26 = arith.constant 0 : index
    %38 = arith.index_cast %37 : i32 to index
    %c0_27 = arith.constant 0 : index
    %c0_28 = arith.constant 0 : index
    %39 = vector.load %arg2[%c0_26, %38, %c0_27, %c0_28] : memref<1x18x18x4xbf16, #tpu.memory_space<vmem>>, vector<1x8x16x4xbf16>
    %40 = vector.shape_cast %39 : vector<1x8x16x4xbf16> to vector<8x16x4xbf16>
    %41 = vector.shape_cast %40 : vector<8x16x4xbf16> to vector<128x4xbf16>
    %c0_29 = arith.constant 0 : index
    %c24 = arith.constant 24 : index
    %42 = vector.load %arg7[%c0_29, %c24] : memref<128x36xbf16, #tpu.memory_space<vmem>>, vector<128x4xbf16>
    tpu.vector_store %arg7[%c0_29, %c24], %41 {strides = array<i32>} : memref<128x36xbf16, #tpu.memory_space<vmem>>, vector<128x4xbf16>,
    %c2_i32_30 = arith.constant 2 : i32
    %43 = arith.addi %0, %c2_i32_30 : i32
    %c0_31 = arith.constant 0 : index
    %44 = arith.index_cast %43 : i32 to index
    %c1_32 = arith.constant 1 : index
    %c0_33 = arith.constant 0 : index
    %45 = vector.load %arg2[%c0_31, %44, %c1_32, %c0_33] : memref<1x18x18x4xbf16, #tpu.memory_space<vmem>>, vector<1x8x16x4xbf16>
    %46 = vector.shape_cast %45 : vector<1x8x16x4xbf16> to vector<8x16x4xbf16>
    %47 = vector.shape_cast %46 : vector<8x16x4xbf16> to vector<128x4xbf16>
    %c0_34 = arith.constant 0 : index
    %c28 = arith.constant 28 : index
    %48 = vector.load %arg7[%c0_34, %c28] : memref<128x36xbf16, #tpu.memory_space<vmem>>, vector<128x4xbf16>
    tpu.vector_store %arg7[%c0_34, %c28], %47 {strides = array<i32>} : memref<128x36xbf16, #tpu.memory_space<vmem>>, vector<128x4xbf16>,
    %c2_i32_35 = arith.constant 2 : i32
    %49 = arith.addi %0, %c2_i32_35 : i32
    %c0_36 = arith.constant 0 : index
    %50 = arith.index_cast %49 : i32 to index
    %c2_37 = arith.constant 2 : index
    %c0_38 = arith.constant 0 : index
    %51 = vector.load %arg2[%c0_36, %50, %c2_37, %c0_38] : memref<1x18x18x4xbf16, #tpu.memory_space<vmem>>, vector<1x8x16x4xbf16>
    %52 = vector.shape_cast %51 : vector<1x8x16x4xbf16> to vector<8x16x4xbf16>
    %53 = vector.shape_cast %52 : vector<8x16x4xbf16> to vector<128x4xbf16>
    %c0_39 = arith.constant 0 : index
    %c32 = arith.constant 32 : index
    %54 = vector.load %arg7[%c0_39, %c32] : memref<128x36xbf16, #tpu.memory_space<vmem>>, vector<128x4xbf16>
    tpu.vector_store %arg7[%c0_39, %c32], %53 {strides = array<i32>} : memref<128x36xbf16, #tpu.memory_space<vmem>>, vector<128x4xbf16>,
    %c0_40 = arith.constant 0 : index
    %c0_41 = arith.constant 0 : index
    %55 = vector.load %arg7[%c0_40, %c0_41] : memref<128x36xbf16, #tpu.memory_space<vmem>>, vector<128x36xbf16>
    %c0_42 = arith.constant 0 : index
    %c0_43 = arith.constant 0 : index
    %56 = vector.load %arg3[%c0_42, %c0_43] : memref<36x8xbf16, #tpu.memory_space<vmem>>, vector<36x8xbf16>
    %cst = arith.constant dense<0.000000e+00> : vector<128x8xf32>
    %57 = tpu.matmul %55, %56, %cst {dimension_numbers = #tpu.dot_dimension_numbers<[1], [0], [0], [1], [0, 0, 1, 1], [], []>} : vector<128x36xbf16>, vector<36x8xbf16>, vector<128x8xf32> -> vector<128x8xf32>
    %c0_44 = arith.constant 0 : index
    %c0_45 = arith.constant 0 : index
    %58 = vector.load %arg4[%c0_44, %c0_45] : memref<1x8xf32, #tpu.memory_space<vmem>>, vector<1x8xf32>
    %59 = vector.broadcast %58 : vector<1x8xf32> to vector<128x8xf32>
    %60 = arith.addf %57, %59 : vector<128x8xf32>
    %cst_46 = arith.constant dense<0.000000e+00> : vector<8xf32>
    %61 = vector.multi_reduction <add>, %60, %cst_46 [0] : vector<128x8xf32> to vector<8xf32>
    %62 = vector.shape_cast %61 : vector<8xf32> to vector<1x8xf32>
    %c0_47 = arith.constant 0 : index
    %c0_48 = arith.constant 0 : index
    %c0_49 = arith.constant 0 : index
    %c0_50 = arith.constant 0 : index
    %63 = vector.load %arg6[%c0_47, %c0_48, %c0_49, %c0_50] : memref<1x1x2x8xf32, #tpu.memory_space<vmem>>, vector<1x1x1x8xf32>
    %64 = vector.shape_cast %63 : vector<1x1x1x8xf32> to vector<1x8xf32>
    %65 = vector.shape_cast %62 : vector<1x8xf32> to vector<1x1x1x8xf32>
    tpu.vector_store %arg6[%c0_47, %c0_48, %c0_49, %c0_50], %65 {strides = array<i32>} : memref<1x1x2x8xf32, #tpu.memory_space<vmem>>, vector<1x1x1x8xf32>,
    %66 = arith.mulf %60, %60 : vector<128x8xf32>
    %cst_51 = arith.constant dense<0.000000e+00> : vector<8xf32>
    %67 = vector.multi_reduction <add>, %66, %cst_51 [0] : vector<128x8xf32> to vector<8xf32>
    %68 = vector.shape_cast %67 : vector<8xf32> to vector<1x8xf32>
    %c0_52 = arith.constant 0 : index
    %c0_53 = arith.constant 0 : index
    %c1_54 = arith.constant 1 : index
    %c0_55 = arith.constant 0 : index
    %69 = vector.load %arg6[%c0_52, %c0_53, %c1_54, %c0_55] : memref<1x1x2x8xf32, #tpu.memory_space<vmem>>, vector<1x1x1x8xf32>
    %70 = vector.shape_cast %69 : vector<1x1x1x8xf32> to vector<1x8xf32>
    %71 = vector.shape_cast %68 : vector<1x8xf32> to vector<1x1x1x8xf32>
    tpu.vector_store %arg6[%c0_52, %c0_53, %c1_54, %c0_55], %71 {strides = array<i32>} : memref<1x1x2x8xf32, #tpu.memory_space<vmem>>, vector<1x1x1x8xf32>,
    %72 = vector.shape_cast %60 : vector<128x8xf32> to vector<8x16x8xf32>
    %c0_56 = arith.constant 0 : index
    %c0_57 = arith.constant 0 : index
    %c0_58 = arith.constant 0 : index
    %c0_59 = arith.constant 0 : index
    %73 = vector.load %arg5[%c0_56, %c0_57, %c0_58, %c0_59] : memref<1x8x16x8xf32, #tpu.memory_space<vmem>>, vector<1x8x16x8xf32>
    %74 = vector.shape_cast %73 : vector<1x8x16x8xf32> to vector<8x16x8xf32>
    %75 = vector.shape_cast %72 : vector<8x16x8xf32> to vector<1x8x16x8xf32>
    tpu.vector_store %arg5[%c0_56, %c0_57, %c0_58, %c0_59], %75 {strides = array<i32>} : memref<1x8x16x8xf32, #tpu.memory_space<vmem>>, vector<1x8x16x8xf32>,
    return
  }
  func.func @transform_0(%arg0: i32, %arg1: i32) -> (i32, i32, i32, i32) {
    %c0_i32 = arith.constant 0 : i32
    %c0_i32_0 = arith.constant 0 : i32
    %c0_i32_1 = arith.constant 0 : i32
    %c0_i32_2 = arith.constant 0 : i32
    return %arg0, %c0_i32, %c0_i32_0, %c0_i32_1 : i32, i32, i32, i32
  }
  func.func @transform_1(%arg0: i32, %arg1: i32) -> (i32, i32) {
    %c0_i32 = arith.constant 0 : i32
    %c0_i32_0 = arith.constant 0 : i32
    %c0_i32_1 = arith.constant 0 : i32
    return %c0_i32, %c0_i32_0 : i32, i32
  }
  func.func @transform_2(%arg0: i32, %arg1: i32) -> (i32, i32) {
    %c0_i32 = arith.constant 0 : i32
    %c0_i32_0 = arith.constant 0 : i32
    %c0_i32_1 = arith.constant 0 : i32
    return %c0_i32, %c0_i32_0 : i32, i32
  }
  func.func @transform_3(%arg0: i32, %arg1: i32) -> (i32, i32, i32, i32) {
    %c0_i32 = arith.constant 0 : i32
    %c0_i32_0 = arith.constant 0 : i32
    %c0_i32_1 = arith.constant 0 : i32
    return %arg0, %arg1, %c0_i32, %c0_i32_0 : i32, i32, i32, i32
  }
  func.func @transform_4(%arg0: i32, %arg1: i32) -> (i32, i32, i32, i32) {
    %c0_i32 = arith.constant 0 : i32
    %c0_i32_0 = arith.constant 0 : i32
    %c0_i32_1 = arith.constant 0 : i32
    return %arg0, %arg1, %c0_i32, %c0_i32_0 : i32, i32, i32, i32
  }
}

module attributes {stable_mosaic.version = 11 : i64} {
  func.func @_scale_shift_relu_kernel(%arg0: i32, %arg1: i32, %arg2: memref<1x8x16x8xf32, #tpu.memory_space<vmem>>, %arg3: memref<1x1x1x8xf32, #tpu.memory_space<vmem>>, %arg4: memref<1x1x1x8xf32, #tpu.memory_space<vmem>>, %arg5: memref<1x8x16x8xf32, #tpu.memory_space<vmem>>) attributes {dimension_semantics = [#tpu.dimension_semantics<parallel>, #tpu.dimension_semantics<parallel>], iteration_bounds = array<i64: 2, 2>, scalar_prefetch = 0 : i64, scratch_operands = 0 : i64, tpu.core_type = #tpu.core_type<tc>, window_params = [{transform_indices = @transform_0, window_bounds = array<i64: 1, 8, 16, 8>}, {pipeline_mode = #tpu.pipeline_mode<synchronous>, transform_indices = @transform_1, window_bounds = array<i64: 1, 1, 1, 8>}, {pipeline_mode = #tpu.pipeline_mode<synchronous>, transform_indices = @transform_2, window_bounds = array<i64: 1, 1, 1, 8>}, {transform_indices = @transform_3, window_bounds = array<i64: 1, 8, 16, 8>}]} {
    %c0 = arith.constant 0 : index
    %c0_0 = arith.constant 0 : index
    %c0_1 = arith.constant 0 : index
    %c0_2 = arith.constant 0 : index
    %0 = vector.load %arg2[%c0, %c0_0, %c0_1, %c0_2] : memref<1x8x16x8xf32, #tpu.memory_space<vmem>>, vector<1x8x16x8xf32>
    %c0_3 = arith.constant 0 : index
    %c0_4 = arith.constant 0 : index
    %c0_5 = arith.constant 0 : index
    %c0_6 = arith.constant 0 : index
    %1 = vector.load %arg3[%c0_3, %c0_4, %c0_5, %c0_6] : memref<1x1x1x8xf32, #tpu.memory_space<vmem>>, vector<1x1x1x8xf32>
    %2 = vector.broadcast %1 : vector<1x1x1x8xf32> to vector<1x8x16x8xf32>
    %3 = arith.mulf %0, %2 : vector<1x8x16x8xf32>
    %c0_7 = arith.constant 0 : index
    %c0_8 = arith.constant 0 : index
    %c0_9 = arith.constant 0 : index
    %c0_10 = arith.constant 0 : index
    %4 = vector.load %arg4[%c0_7, %c0_8, %c0_9, %c0_10] : memref<1x1x1x8xf32, #tpu.memory_space<vmem>>, vector<1x1x1x8xf32>
    %5 = vector.broadcast %4 : vector<1x1x1x8xf32> to vector<1x8x16x8xf32>
    %6 = arith.addf %3, %5 : vector<1x8x16x8xf32>
    %cst = arith.constant 0.000000e+00 : f32
    %7 = vector.broadcast %cst : f32 to vector<1x8x16x8xf32>
    %8 = arith.maximumf %6, %7 : vector<1x8x16x8xf32>
    %c0_11 = arith.constant 0 : index
    %c0_12 = arith.constant 0 : index
    %c0_13 = arith.constant 0 : index
    %c0_14 = arith.constant 0 : index
    %9 = vector.load %arg5[%c0_11, %c0_12, %c0_13, %c0_14] : memref<1x8x16x8xf32, #tpu.memory_space<vmem>>, vector<1x8x16x8xf32>
    tpu.vector_store %arg5[%c0_11, %c0_12, %c0_13, %c0_14], %8 {strides = array<i32>} : memref<1x8x16x8xf32, #tpu.memory_space<vmem>>, vector<1x8x16x8xf32>,
    return
  }
  func.func @transform_0(%arg0: i32, %arg1: i32) -> (i32, i32, i32, i32) {
    %c0_i32 = arith.constant 0 : i32
    %c0_i32_0 = arith.constant 0 : i32
    %c0_i32_1 = arith.constant 0 : i32
    return %arg0, %arg1, %c0_i32, %c0_i32_0 : i32, i32, i32, i32
  }
  func.func @transform_1(%arg0: i32, %arg1: i32) -> (i32, i32, i32, i32) {
    %c0_i32 = arith.constant 0 : i32
    %c0_i32_0 = arith.constant 0 : i32
    %c0_i32_1 = arith.constant 0 : i32
    %c0_i32_2 = arith.constant 0 : i32
    %c0_i32_3 = arith.constant 0 : i32
    return %c0_i32, %c0_i32_0, %c0_i32_1, %c0_i32_2 : i32, i32, i32, i32
  }
  func.func @transform_2(%arg0: i32, %arg1: i32) -> (i32, i32, i32, i32) {
    %c0_i32 = arith.constant 0 : i32
    %c0_i32_0 = arith.constant 0 : i32
    %c0_i32_1 = arith.constant 0 : i32
    %c0_i32_2 = arith.constant 0 : i32
    %c0_i32_3 = arith.constant 0 : i32
    return %c0_i32, %c0_i32_0, %c0_i32_1, %c0_i32_2 : i32, i32, i32, i32
  }
  func.func @transform_3(%arg0: i32, %arg1: i32) -> (i32, i32, i32, i32) {
    %c0_i32 = arith.constant 0 : i32
    %c0_i32_0 = arith.constant 0 : i32
    %c0_i32_1 = arith.constant 0 : i32
    return %arg0, %arg1, %c0_i32, %c0_i32_0 : i32, i32, i32, i32
  }
}

module attributes {stable_mosaic.version = 11 : i64} {
  func.func @_conv_kernel(%arg0: i32, %arg1: i32, %arg2: memref<1x18x18x8xbf16, #tpu.memory_space<vmem>>, %arg3: memref<72x8xbf16, #tpu.memory_space<vmem>>, %arg4: memref<1x8xf32, #tpu.memory_space<vmem>>, %arg5: memref<1x8x16x8xf32, #tpu.memory_space<vmem>>, %arg6: memref<1x1x2x8xf32, #tpu.memory_space<vmem>>, %arg7: memref<128x72xbf16, #tpu.memory_space<vmem>>) attributes {dimension_semantics = [#tpu.dimension_semantics<parallel>, #tpu.dimension_semantics<parallel>], iteration_bounds = array<i64: 2, 2>, scalar_prefetch = 0 : i64, scratch_operands = 1 : i64, tpu.core_type = #tpu.core_type<tc>, window_params = [{transform_indices = @transform_0, window_bounds = array<i64: 1, 18, 18, 8>}, {pipeline_mode = #tpu.pipeline_mode<synchronous>, transform_indices = @transform_1, window_bounds = array<i64: 72, 8>}, {pipeline_mode = #tpu.pipeline_mode<synchronous>, transform_indices = @transform_2, window_bounds = array<i64: 1, 8>}, {transform_indices = @transform_3, window_bounds = array<i64: 1, 8, 16, 8>}, {transform_indices = @transform_4, window_bounds = array<i64: 1, 1, 2, 8>}]} {
    %c8_i32 = arith.constant 8 : i32
    %0 = arith.muli %arg1, %c8_i32 : i32
    %c0_i32 = arith.constant 0 : i32
    %1 = arith.addi %0, %c0_i32 : i32
    %c0 = arith.constant 0 : index
    %2 = arith.index_cast %1 : i32 to index
    %c0_0 = arith.constant 0 : index
    %c0_1 = arith.constant 0 : index
    %3 = vector.load %arg2[%c0, %2, %c0_0, %c0_1] : memref<1x18x18x8xbf16, #tpu.memory_space<vmem>>, vector<1x8x16x8xbf16>
    %4 = vector.shape_cast %3 : vector<1x8x16x8xbf16> to vector<8x16x8xbf16>
    %5 = vector.shape_cast %4 : vector<8x16x8xbf16> to vector<128x8xbf16>
    %c0_2 = arith.constant 0 : index
    %c0_3 = arith.constant 0 : index
    %6 = vector.load %arg7[%c0_2, %c0_3] : memref<128x72xbf16, #tpu.memory_space<vmem>>, vector<128x8xbf16>
    tpu.vector_store %arg7[%c0_2, %c0_3], %5 {strides = array<i32>} : memref<128x72xbf16, #tpu.memory_space<vmem>>, vector<128x8xbf16>,
    %c0_i32_4 = arith.constant 0 : i32
    %7 = arith.addi %0, %c0_i32_4 : i32
    %c0_5 = arith.constant 0 : index
    %8 = arith.index_cast %7 : i32 to index
    %c1 = arith.constant 1 : index
    %c0_6 = arith.constant 0 : index
    %9 = vector.load %arg2[%c0_5, %8, %c1, %c0_6] : memref<1x18x18x8xbf16, #tpu.memory_space<vmem>>, vector<1x8x16x8xbf16>
    %10 = vector.shape_cast %9 : vector<1x8x16x8xbf16> to vector<8x16x8xbf16>
    %11 = vector.shape_cast %10 : vector<8x16x8xbf16> to vector<128x8xbf16>
    %c0_7 = arith.constant 0 : index
    %c8 = arith.constant 8 : index
    %12 = vector.load %arg7[%c0_7, %c8] : memref<128x72xbf16, #tpu.memory_space<vmem>>, vector<128x8xbf16>
    tpu.vector_store %arg7[%c0_7, %c8], %11 {strides = array<i32>} : memref<128x72xbf16, #tpu.memory_space<vmem>>, vector<128x8xbf16>,
    %c0_i32_8 = arith.constant 0 : i32
    %13 = arith.addi %0, %c0_i32_8 : i32
    %c0_9 = arith.constant 0 : index
    %14 = arith.index_cast %13 : i32 to index
    %c2 = arith.constant 2 : index
    %c0_10 = arith.constant 0 : index
    %15 = vector.load %arg2[%c0_9, %14, %c2, %c0_10] : memref<1x18x18x8xbf16, #tpu.memory_space<vmem>>, vector<1x8x16x8xbf16>
    %16 = vector.shape_cast %15 : vector<1x8x16x8xbf16> to vector<8x16x8xbf16>
    %17 = vector.shape_cast %16 : vector<8x16x8xbf16> to vector<128x8xbf16>
    %c0_11 = arith.constant 0 : index
    %c16 = arith.constant 16 : index
    %18 = vector.load %arg7[%c0_11, %c16] : memref<128x72xbf16, #tpu.memory_space<vmem>>, vector<128x8xbf16>
    tpu.vector_store %arg7[%c0_11, %c16], %17 {strides = array<i32>} : memref<128x72xbf16, #tpu.memory_space<vmem>>, vector<128x8xbf16>,
    %c1_i32 = arith.constant 1 : i32
    %19 = arith.addi %0, %c1_i32 : i32
    %c0_12 = arith.constant 0 : index
    %20 = arith.index_cast %19 : i32 to index
    %c0_13 = arith.constant 0 : index
    %c0_14 = arith.constant 0 : index
    %21 = vector.load %arg2[%c0_12, %20, %c0_13, %c0_14] : memref<1x18x18x8xbf16, #tpu.memory_space<vmem>>, vector<1x8x16x8xbf16>
    %22 = vector.shape_cast %21 : vector<1x8x16x8xbf16> to vector<8x16x8xbf16>
    %23 = vector.shape_cast %22 : vector<8x16x8xbf16> to vector<128x8xbf16>
    %c0_15 = arith.constant 0 : index
    %c24 = arith.constant 24 : index
    %24 = vector.load %arg7[%c0_15, %c24] : memref<128x72xbf16, #tpu.memory_space<vmem>>, vector<128x8xbf16>
    tpu.vector_store %arg7[%c0_15, %c24], %23 {strides = array<i32>} : memref<128x72xbf16, #tpu.memory_space<vmem>>, vector<128x8xbf16>,
    %c1_i32_16 = arith.constant 1 : i32
    %25 = arith.addi %0, %c1_i32_16 : i32
    %c0_17 = arith.constant 0 : index
    %26 = arith.index_cast %25 : i32 to index
    %c1_18 = arith.constant 1 : index
    %c0_19 = arith.constant 0 : index
    %27 = vector.load %arg2[%c0_17, %26, %c1_18, %c0_19] : memref<1x18x18x8xbf16, #tpu.memory_space<vmem>>, vector<1x8x16x8xbf16>
    %28 = vector.shape_cast %27 : vector<1x8x16x8xbf16> to vector<8x16x8xbf16>
    %29 = vector.shape_cast %28 : vector<8x16x8xbf16> to vector<128x8xbf16>
    %c0_20 = arith.constant 0 : index
    %c32 = arith.constant 32 : index
    %30 = vector.load %arg7[%c0_20, %c32] : memref<128x72xbf16, #tpu.memory_space<vmem>>, vector<128x8xbf16>
    tpu.vector_store %arg7[%c0_20, %c32], %29 {strides = array<i32>} : memref<128x72xbf16, #tpu.memory_space<vmem>>, vector<128x8xbf16>,
    %c1_i32_21 = arith.constant 1 : i32
    %31 = arith.addi %0, %c1_i32_21 : i32
    %c0_22 = arith.constant 0 : index
    %32 = arith.index_cast %31 : i32 to index
    %c2_23 = arith.constant 2 : index
    %c0_24 = arith.constant 0 : index
    %33 = vector.load %arg2[%c0_22, %32, %c2_23, %c0_24] : memref<1x18x18x8xbf16, #tpu.memory_space<vmem>>, vector<1x8x16x8xbf16>
    %34 = vector.shape_cast %33 : vector<1x8x16x8xbf16> to vector<8x16x8xbf16>
    %35 = vector.shape_cast %34 : vector<8x16x8xbf16> to vector<128x8xbf16>
    %c0_25 = arith.constant 0 : index
    %c40 = arith.constant 40 : index
    %36 = vector.load %arg7[%c0_25, %c40] : memref<128x72xbf16, #tpu.memory_space<vmem>>, vector<128x8xbf16>
    tpu.vector_store %arg7[%c0_25, %c40], %35 {strides = array<i32>} : memref<128x72xbf16, #tpu.memory_space<vmem>>, vector<128x8xbf16>,
    %c2_i32 = arith.constant 2 : i32
    %37 = arith.addi %0, %c2_i32 : i32
    %c0_26 = arith.constant 0 : index
    %38 = arith.index_cast %37 : i32 to index
    %c0_27 = arith.constant 0 : index
    %c0_28 = arith.constant 0 : index
    %39 = vector.load %arg2[%c0_26, %38, %c0_27, %c0_28] : memref<1x18x18x8xbf16, #tpu.memory_space<vmem>>, vector<1x8x16x8xbf16>
    %40 = vector.shape_cast %39 : vector<1x8x16x8xbf16> to vector<8x16x8xbf16>
    %41 = vector.shape_cast %40 : vector<8x16x8xbf16> to vector<128x8xbf16>
    %c0_29 = arith.constant 0 : index
    %c48 = arith.constant 48 : index
    %42 = vector.load %arg7[%c0_29, %c48] : memref<128x72xbf16, #tpu.memory_space<vmem>>, vector<128x8xbf16>
    tpu.vector_store %arg7[%c0_29, %c48], %41 {strides = array<i32>} : memref<128x72xbf16, #tpu.memory_space<vmem>>, vector<128x8xbf16>,
    %c2_i32_30 = arith.constant 2 : i32
    %43 = arith.addi %0, %c2_i32_30 : i32
    %c0_31 = arith.constant 0 : index
    %44 = arith.index_cast %43 : i32 to index
    %c1_32 = arith.constant 1 : index
    %c0_33 = arith.constant 0 : index
    %45 = vector.load %arg2[%c0_31, %44, %c1_32, %c0_33] : memref<1x18x18x8xbf16, #tpu.memory_space<vmem>>, vector<1x8x16x8xbf16>
    %46 = vector.shape_cast %45 : vector<1x8x16x8xbf16> to vector<8x16x8xbf16>
    %47 = vector.shape_cast %46 : vector<8x16x8xbf16> to vector<128x8xbf16>
    %c0_34 = arith.constant 0 : index
    %c56 = arith.constant 56 : index
    %48 = vector.load %arg7[%c0_34, %c56] : memref<128x72xbf16, #tpu.memory_space<vmem>>, vector<128x8xbf16>
    tpu.vector_store %arg7[%c0_34, %c56], %47 {strides = array<i32>} : memref<128x72xbf16, #tpu.memory_space<vmem>>, vector<128x8xbf16>,
    %c2_i32_35 = arith.constant 2 : i32
    %49 = arith.addi %0, %c2_i32_35 : i32
    %c0_36 = arith.constant 0 : index
    %50 = arith.index_cast %49 : i32 to index
    %c2_37 = arith.constant 2 : index
    %c0_38 = arith.constant 0 : index
    %51 = vector.load %arg2[%c0_36, %50, %c2_37, %c0_38] : memref<1x18x18x8xbf16, #tpu.memory_space<vmem>>, vector<1x8x16x8xbf16>
    %52 = vector.shape_cast %51 : vector<1x8x16x8xbf16> to vector<8x16x8xbf16>
    %53 = vector.shape_cast %52 : vector<8x16x8xbf16> to vector<128x8xbf16>
    %c0_39 = arith.constant 0 : index
    %c64 = arith.constant 64 : index
    %54 = vector.load %arg7[%c0_39, %c64] : memref<128x72xbf16, #tpu.memory_space<vmem>>, vector<128x8xbf16>
    tpu.vector_store %arg7[%c0_39, %c64], %53 {strides = array<i32>} : memref<128x72xbf16, #tpu.memory_space<vmem>>, vector<128x8xbf16>,
    %c0_40 = arith.constant 0 : index
    %c0_41 = arith.constant 0 : index
    %55 = vector.load %arg7[%c0_40, %c0_41] : memref<128x72xbf16, #tpu.memory_space<vmem>>, vector<128x72xbf16>
    %c0_42 = arith.constant 0 : index
    %c0_43 = arith.constant 0 : index
    %56 = vector.load %arg3[%c0_42, %c0_43] : memref<72x8xbf16, #tpu.memory_space<vmem>>, vector<72x8xbf16>
    %cst = arith.constant dense<0.000000e+00> : vector<128x8xf32>
    %57 = tpu.matmul %55, %56, %cst {dimension_numbers = #tpu.dot_dimension_numbers<[1], [0], [0], [1], [0, 0, 1, 1], [], []>} : vector<128x72xbf16>, vector<72x8xbf16>, vector<128x8xf32> -> vector<128x8xf32>
    %c0_44 = arith.constant 0 : index
    %c0_45 = arith.constant 0 : index
    %58 = vector.load %arg4[%c0_44, %c0_45] : memref<1x8xf32, #tpu.memory_space<vmem>>, vector<1x8xf32>
    %59 = vector.broadcast %58 : vector<1x8xf32> to vector<128x8xf32>
    %60 = arith.addf %57, %59 : vector<128x8xf32>
    %cst_46 = arith.constant dense<0.000000e+00> : vector<8xf32>
    %61 = vector.multi_reduction <add>, %60, %cst_46 [0] : vector<128x8xf32> to vector<8xf32>
    %62 = vector.shape_cast %61 : vector<8xf32> to vector<1x8xf32>
    %c0_47 = arith.constant 0 : index
    %c0_48 = arith.constant 0 : index
    %c0_49 = arith.constant 0 : index
    %c0_50 = arith.constant 0 : index
    %63 = vector.load %arg6[%c0_47, %c0_48, %c0_49, %c0_50] : memref<1x1x2x8xf32, #tpu.memory_space<vmem>>, vector<1x1x1x8xf32>
    %64 = vector.shape_cast %63 : vector<1x1x1x8xf32> to vector<1x8xf32>
    %65 = vector.shape_cast %62 : vector<1x8xf32> to vector<1x1x1x8xf32>
    tpu.vector_store %arg6[%c0_47, %c0_48, %c0_49, %c0_50], %65 {strides = array<i32>} : memref<1x1x2x8xf32, #tpu.memory_space<vmem>>, vector<1x1x1x8xf32>,
    %66 = arith.mulf %60, %60 : vector<128x8xf32>
    %cst_51 = arith.constant dense<0.000000e+00> : vector<8xf32>
    %67 = vector.multi_reduction <add>, %66, %cst_51 [0] : vector<128x8xf32> to vector<8xf32>
    %68 = vector.shape_cast %67 : vector<8xf32> to vector<1x8xf32>
    %c0_52 = arith.constant 0 : index
    %c0_53 = arith.constant 0 : index
    %c1_54 = arith.constant 1 : index
    %c0_55 = arith.constant 0 : index
    %69 = vector.load %arg6[%c0_52, %c0_53, %c1_54, %c0_55] : memref<1x1x2x8xf32, #tpu.memory_space<vmem>>, vector<1x1x1x8xf32>
    %70 = vector.shape_cast %69 : vector<1x1x1x8xf32> to vector<1x8xf32>
    %71 = vector.shape_cast %68 : vector<1x8xf32> to vector<1x1x1x8xf32>
    tpu.vector_store %arg6[%c0_52, %c0_53, %c1_54, %c0_55], %71 {strides = array<i32>} : memref<1x1x2x8xf32, #tpu.memory_space<vmem>>, vector<1x1x1x8xf32>,
    %72 = vector.shape_cast %60 : vector<128x8xf32> to vector<8x16x8xf32>
    %c0_56 = arith.constant 0 : index
    %c0_57 = arith.constant 0 : index
    %c0_58 = arith.constant 0 : index
    %c0_59 = arith.constant 0 : index
    %73 = vector.load %arg5[%c0_56, %c0_57, %c0_58, %c0_59] : memref<1x8x16x8xf32, #tpu.memory_space<vmem>>, vector<1x8x16x8xf32>
    %74 = vector.shape_cast %73 : vector<1x8x16x8xf32> to vector<8x16x8xf32>
    %75 = vector.shape_cast %72 : vector<8x16x8xf32> to vector<1x8x16x8xf32>
    tpu.vector_store %arg5[%c0_56, %c0_57, %c0_58, %c0_59], %75 {strides = array<i32>} : memref<1x8x16x8xf32, #tpu.memory_space<vmem>>, vector<1x8x16x8xf32>,
    return
  }
  func.func @transform_0(%arg0: i32, %arg1: i32) -> (i32, i32, i32, i32) {
    %c0_i32 = arith.constant 0 : i32
    %c0_i32_0 = arith.constant 0 : i32
    %c0_i32_1 = arith.constant 0 : i32
    %c0_i32_2 = arith.constant 0 : i32
    return %arg0, %c0_i32, %c0_i32_0, %c0_i32_1 : i32, i32, i32, i32
  }
  func.func @transform_1(%arg0: i32, %arg1: i32) -> (i32, i32) {
    %c0_i32 = arith.constant 0 : i32
    %c0_i32_0 = arith.constant 0 : i32
    %c0_i32_1 = arith.constant 0 : i32
    return %c0_i32, %c0_i32_0 : i32, i32
  }
  func.func @transform_2(%arg0: i32, %arg1: i32) -> (i32, i32) {
    %c0_i32 = arith.constant 0 : i32
    %c0_i32_0 = arith.constant 0 : i32
    %c0_i32_1 = arith.constant 0 : i32
    return %c0_i32, %c0_i32_0 : i32, i32
  }
  func.func @transform_3(%arg0: i32, %arg1: i32) -> (i32, i32, i32, i32) {
    %c0_i32 = arith.constant 0 : i32
    %c0_i32_0 = arith.constant 0 : i32
    %c0_i32_1 = arith.constant 0 : i32
    return %arg0, %arg1, %c0_i32, %c0_i32_0 : i32, i32, i32, i32
  }
  func.func @transform_4(%arg0: i32, %arg1: i32) -> (i32, i32, i32, i32) {
    %c0_i32 = arith.constant 0 : i32
    %c0_i32_0 = arith.constant 0 : i32
    %c0_i32_1 = arith.constant 0 : i32
    return %arg0, %arg1, %c0_i32, %c0_i32_0 : i32, i32, i32, i32
  }
}

module attributes {stable_mosaic.version = 11 : i64} {
  func.func @_maxpool2x2_kernel(%arg0: i32, %arg1: memref<1x16x8x16xf32, #tpu.memory_space<vmem>>, %arg2: memref<1x8x8x8xf32, #tpu.memory_space<vmem>>) attributes {dimension_semantics = [#tpu.dimension_semantics<parallel>], iteration_bounds = array<i64: 2>, scalar_prefetch = 0 : i64, scratch_operands = 0 : i64, tpu.core_type = #tpu.core_type<tc>, window_params = [{transform_indices = @transform_0, window_bounds = array<i64: 1, 16, 8, 16>}, {transform_indices = @transform_1, window_bounds = array<i64: 1, 8, 8, 8>}]} {
    %c0 = arith.constant 0 : index
    %c0_0 = arith.constant 0 : index
    %c0_1 = arith.constant 0 : index
    %c0_2 = arith.constant 0 : index
    %0 = vector.load %arg1[%c0, %c0_0, %c0_1, %c0_2] : memref<1x16x8x16xf32, #tpu.memory_space<vmem>>, vector<1x16x8x16xf32>
    %1 = vector.shape_cast %0 : vector<1x16x8x16xf32> to vector<16x8x16xf32>
    %2 = vector.extract_strided_slice %1 {offsets = [0, 0, 0], sizes = [16, 8, 8], strides = [1, 1, 1]} : vector<16x8x16xf32> to vector<16x8x8xf32>
    %3 = vector.extract_strided_slice %1 {offsets = [0, 0, 8], sizes = [16, 8, 8], strides = [1, 1, 1]} : vector<16x8x16xf32> to vector<16x8x8xf32>
    %4 = arith.maximumf %2, %3 : vector<16x8x8xf32>
    %5 = vector.shape_cast %4 : vector<16x8x8xf32> to vector<8x2x8x8xf32>
    %6 = vector.extract_strided_slice %5 {offsets = [0, 0, 0, 0], sizes = [8, 1, 8, 8], strides = [1, 1, 1, 1]} : vector<8x2x8x8xf32> to vector<8x1x8x8xf32>
    %7 = vector.shape_cast %6 : vector<8x1x8x8xf32> to vector<8x8x8xf32>
    %8 = vector.extract_strided_slice %5 {offsets = [0, 1, 0, 0], sizes = [8, 1, 8, 8], strides = [1, 1, 1, 1]} : vector<8x2x8x8xf32> to vector<8x1x8x8xf32>
    %9 = vector.shape_cast %8 : vector<8x1x8x8xf32> to vector<8x8x8xf32>
    %10 = arith.maximumf %7, %9 : vector<8x8x8xf32>
    %c0_3 = arith.constant 0 : index
    %c0_4 = arith.constant 0 : index
    %c0_5 = arith.constant 0 : index
    %c0_6 = arith.constant 0 : index
    %11 = vector.load %arg2[%c0_3, %c0_4, %c0_5, %c0_6] : memref<1x8x8x8xf32, #tpu.memory_space<vmem>>, vector<1x8x8x8xf32>
    %12 = vector.shape_cast %11 : vector<1x8x8x8xf32> to vector<8x8x8xf32>
    %13 = vector.shape_cast %10 : vector<8x8x8xf32> to vector<1x8x8x8xf32>
    tpu.vector_store %arg2[%c0_3, %c0_4, %c0_5, %c0_6], %13 {strides = array<i32>} : memref<1x8x8x8xf32, #tpu.memory_space<vmem>>, vector<1x8x8x8xf32>,
    return
  }
  func.func @transform_0(%arg0: i32) -> (i32, i32, i32, i32) {
    %c0_i32 = arith.constant 0 : i32
    %c0_i32_0 = arith.constant 0 : i32
    %c0_i32_1 = arith.constant 0 : i32
    %c0_i32_2 = arith.constant 0 : i32
    return %arg0, %c0_i32, %c0_i32_0, %c0_i32_1 : i32, i32, i32, i32
  }
  func.func @transform_1(%arg0: i32) -> (i32, i32, i32, i32) {
    %c0_i32 = arith.constant 0 : i32
    %c0_i32_0 = arith.constant 0 : i32
    %c0_i32_1 = arith.constant 0 : i32
    %c0_i32_2 = arith.constant 0 : i32
    return %arg0, %c0_i32, %c0_i32_0, %c0_i32_1 : i32, i32, i32, i32
  }
}

</mosaic_0001>

<llo_original>
// kernel: fcn_conv_forward.6
$region0: #{fcn_conv_forward.6}
  #allocation0 [shape = 'u32[]', space=smem, size = 0x4, offset = 0x4, fixed_abs, tag = 'smem constant byte address 0x4 - core index']
  #allocation1 [shape = 'u32[144,128]{1,0:T(1,128)}', space=vmem, size = 0x12000, scoped, tag = 'internal scratch']
  %s0 = inlined_call_operand.vmem [shape: f32[2,16,16,8], index: 0, kind: input, shape index: {}]
  %s1 = inlined_call_operand.vmem [shape: f32[1,1,1,8], index: 1, kind: input, shape index: {}]
  %s2 = inlined_call_operand.vmem [shape: f32[1,1,1,8], index: 2, kind: input, shape index: {}]
  %s3 = inlined_call_operand.vmem [shape: f32[2,16,16,8], index: 3, kind: output, shape index: {}]
  %s4 = sld [smem:[#allocation0]]
  $region45: #{fcn_conv_forward.6} parent=0
    _
  %s6 = ssub.s32 1, %s4
  %s7 = scalar_select 0, %s6, %s4
  loop: start=0, step=1, limit=6
  $region2: #{fcn_conv_forward.6} parent=0 // loop_pre_header
    _
  $region3: #{fcn_conv_forward.6} parent=0 // loop_header
    %s9 = sphi 0, %s13
    %p10 = scmp.ge.s32.totalorder %s9, 6
    %s16 = sphi 0, %s28
    %s17 = sphi 0, %s24
    %s18 = sphi 0, %s16
    %s19 = sphi 0, %s17
    %s20 = sphi 0, %s18
    %s21 = sphi 0, %s19
    %s33 = sphi 0, %s35
    %s36 = sphi 0, %s33
    %s37 = sphi 0, %s36
    %s53 = sphi 0, %s37
    %s57 = sphi 0, %s57
    %s59 = sphi 0, %s57
    %s60 = sphi 0, %s59
    %s74 = sphi 0, %s60
    %s78 = sphi 0, %s78
    %s80 = sphi 0, %s78
    %s81 = sphi 0, %s80
    %s95 = sphi 0, %s81
    %s103 = sphi 0, %s105
    %s106 = sphi 0, %s103
    %s107 = sphi 0, %s106
    %s123 = sphi 0, %s107
  $region4: #{fcn_conv_forward.6} parent=0 // loop_header_branch
    %12 = sbr.rel (%p10) target = $region8
  $region5: #{fcn_conv_forward.6} parent=0 // loop_body
    %s14 = ssub.s32 %s9, 1
    %s15 = ssub.s32 %s9, 2
    %s22 = sadd.s32 1, %s17
    %p23 = scmp.ge.s32.totalorder %s22, 2
    %s24 = scalar_select %p23, 0, %s22
    %s25 = sadd.s32 1, %s16
    %s26 = scalar_select %p23, %s25, %s16
    %p27 = scmp.ge.s32.totalorder %s26, 2
    %s28 = scalar_select %p27, 0, %s26
    %s29 = ssub.s32 %s16, %s28
    %s30 = ssub.s32 %s17, %s24
    %s31 = sor.u32 %s29, %s30
    %p32 = scmp.eq.s32.totalorder %s31, 0
    %s34 = sadd.s32 %s33, 1
    %s35 = scalar_select %p32, %s33, %s34
    %p38 = pneg %p32
    %p39 = scmp.eq.s32.totalorder %s9, 3
    %p40 = por %p38, %p39
    %p41 = scmp.ne.s32.totalorder %s33, %s36
    %p42 = scmp.eq.s32.totalorder %s9, 0
    %p43 = por %p41, %p42
    %p44 = scmp.ne.s32.totalorder %s33, %s36
    %p45 = scmp.eq.s32.totalorder %s14, 3
    %p46 = por %p44, %p45
    %p47 = scmp.ne.s32.totalorder %s36, %s37
    %p48 = scmp.eq.s32.totalorder %s14, 0
    %p49 = por %p47, %p48
    %p50 = scmp.ne.s32.totalorder %s36, %s37
    %p51 = scmp.eq.s32.totalorder %s15, 3
    %p52 = por %p50, %p51
    %p54 = scmp.ne.s32.totalorder %s37, %s53
    %p55 = scmp.eq.s32.totalorder %s15, 0
    %p56 = por %p54, %p55
    %s58 = sadd.s32 %s57, 1
    %p61 = scmp.eq.s32.totalorder %s9, 3
    %p62 = scmp.ne.s32.totalorder %s57, %s59
    %p63 = scmp.eq.s32.totalorder %s9, 0
    %p64 = por %p62, %p63
    %p65 = scmp.ne.s32.totalorder %s57, %s59
    %p66 = scmp.eq.s32.totalorder %s14, 3
    %p67 = por %p65, %p66
    %p68 = scmp.ne.s32.totalorder %s59, %s60
    %p69 = scmp.eq.s32.totalorder %s14, 0
    %p70 = por %p68, %p69
    %p71 = scmp.ne.s32.totalorder %s59, %s60
    %p72 = scmp.eq.s32.totalorder %s15, 3
    %p73 = por %p71, %p72
    %p75 = scmp.ne.s32.totalorder %s60, %s74
    %p76 = scmp.eq.s32.totalorder %s15, 0
    %p77 = por %p75, %p76
    %s79 = sadd.s32 %s78, 1
    %p82 = scmp.eq.s32.totalorder %s9, 3
    %p83 = scmp.ne.s32.totalorder %s78, %s80
    %p84 = scmp.eq.s32.totalorder %s9, 0
    %p85 = por %p83, %p84
    %p86 = scmp.ne.s32.totalorder %s78, %s80
    %p87 = scmp.eq.s32.totalorder %s14, 3
    %p88 = por %p86, %p87
    %p89 = scmp.ne.s32.totalorder %s80, %s81
    %p90 = scmp.eq.s32.totalorder %s14, 0
    %p91 = por %p89, %p90
    %p92 = scmp.ne.s32.totalorder %s80, %s81
    %p93 = scmp.eq.s32.totalorder %s15, 3
    %p94 = por %p92, %p93
    %p96 = scmp.ne.s32.totalorder %s81, %s95
    %p97 = scmp.eq.s32.totalorder %s15, 0
    %p98 = por %p96, %p97
    %s99 = ssub.s32 %s16, %s28
    %s100 = ssub.s32 %s17, %s24
    %s101 = sor.u32 %s99, %s100
    %p102 = scmp.eq.s32.totalorder %s101, 0
    %s104 = sadd.s32 %s103, 1
    %s105 = scalar_select %p102, %s103, %s104
    %p108 = pneg %p102
    %p109 = scmp.eq.s32.totalorder %s9, 3
    %p110 = por %p108, %p109
    %p111 = scmp.ne.s32.totalorder %s103, %s106
    %p112 = scmp.eq.s32.totalorder %s9, 0
    %p113 = por %p111, %p112
    %p114 = scmp.ne.s32.totalorder %s103, %s106
    %p115 = scmp.eq.s32.totalorder %s14, 3
    %p116 = por %p114, %p115
    %p117 = scmp.ne.s32.totalorder %s106, %s107
    %p118 = scmp.eq.s32.totalorder %s14, 0
    %p119 = por %p117, %p118
    %p120 = scmp.ne.s32.totalorder %s106, %s107
    %p121 = scmp.eq.s32.totalorder %s15, 3
    %p122 = por %p120, %p121
    %p124 = scmp.ne.s32.totalorder %s107, %s123
    %p125 = scmp.eq.s32.totalorder %s15, 0
    %p126 = por %p124, %p125
    %p127 = scmp.le.s32.totalorder 1, %s9
    %p128 = scmp.lt.s32.totalorder %s9, 5
    %p129 = pnand %p127, %p128
    %p130 = pneg %p129
    // Predicated region
    $region9: #{fcn_conv_forward.6} parent=5 // pred_check
      _
    $region10: #{fcn_conv_forward.6} parent=5 // pred_check_branch
      %132 = sbr.rel (%p129) target = $region12
    $region11: #{fcn_conv_forward.6} parent=5 // pred_region
      %s133 = ssub.s32 %s9, 1
      // Predicated region
      $region13: #{fcn_conv_forward.6} parent=11 // pred_check
        %p134 = pneg %p70
      $region14: #{fcn_conv_forward.6} parent=11 // pred_check_branch
        %136 = sbr.rel (%p134) target = $region16
      $region15: #{fcn_conv_forward.6} parent=11 // pred_region
        _
      $region16: #{fcn_conv_forward.6} parent=11 // pred_fallthru
        _
      // Predicated region
      $region17: #{fcn_conv_forward.6} parent=11 // pred_check
        %p137 = pneg %p91
      $region18: #{fcn_conv_forward.6} parent=11 // pred_check_branch
        %139 = sbr.rel (%p137) target = $region20
      $region19: #{fcn_conv_forward.6} parent=11 // pred_region
        _
      $region20: #{fcn_conv_forward.6} parent=11 // pred_fallthru
        _
    $region12: #{fcn_conv_forward.6} parent=5 // pred_fallthru
      _
    %p140 = scmp.lt.s32.totalorder %s9, 4
    // Predicated region
    $region21: #{fcn_conv_forward.6} parent=5 // pred_check
      %p141 = pneg %p140
    $region22: #{fcn_conv_forward.6} parent=5 // pred_check_branch
      %143 = sbr.rel (%p141) target = $region24
    $region23: #{fcn_conv_forward.6} parent=5 // pred_region
      // Predicated region
      $region25: #{fcn_conv_forward.6} parent=23 // pred_check
        %p144 = pneg %p43
      $region26: #{fcn_conv_forward.6} parent=23 // pred_check_branch
        %146 = sbr.rel (%p144) target = $region28
      $region27: #{fcn_conv_forward.6} parent=23 // pred_region
        %s147 = smul.u32 8, %s17
        %p148 = scmp.lt.s32.totalorder %s16, 1
        %s149 = scalar_select %p148, %s16, 1
        %p150 = scmp.lt.s32.totalorder %s147, 15
        %s151 = scalar_select %p150, %s147, 15
        %s152 = smul.addr %s151, 2
        %s153 = smul.addr %s149, 32
        %s154 = sadd.s32 %s152, %s153
        %s155 = smul.addr %s154, 8
        %s156 = scalar_lea.vmem %s0, %s155
        %s157 = smul.u32 8, %s17
      $region28: #{fcn_conv_forward.6} parent=23 // pred_fallthru
        _
    $region24: #{fcn_conv_forward.6} parent=5 // pred_fallthru
      _
    %p158 = scmp.le.s32.totalorder 1, %s9
    %p159 = scmp.lt.s32.totalorder %s9, 5
    %p160 = pnand %p158, %p159
    %p161 = pneg %p160
    // Predicated region
    $region29: #{fcn_conv_forward.6} parent=5 // pred_check
      _
    $region30: #{fcn_conv_forward.6} parent=5 // pred_check_branch
      %163 = sbr.rel (%p160) target = $region32
    $region31: #{fcn_conv_forward.6} parent=5 // pred_region
      %s164 = ssub.s32 %s9, 1
      %s165 = smul.u32 8, %s19
      %p166 = scmp.lt.s32.totalorder %s18, 1
      %s167 = scalar_select %p166, %s18, 1
      %p168 = scmp.lt.s32.totalorder %s165, 15
      %s169 = scalar_select %p168, %s165, 15
      %s170 = smul.addr %s169, 2
      %s171 = smul.addr %s167, 32
      %s172 = sadd.s32 %s170, %s171
      %s173 = smul.addr %s172, 8
      %s174 = scalar_lea.vmem %s0, %s173
      %p175 = pneg %p49
      %p176 = pneg %p46
      %p177 = pneg %p70
      %p178 = pneg %p67
      %p179 = pneg %p91
      %p180 = pneg %p88
      %p181 = pneg %p119
      %p182 = pneg %p116
      %s183 = smul.u32 8, %s19
      %p184 = scmp.lt.s32.totalorder %s18, 1
      %s185 = scalar_select %p184, %s18, 1
      %p186 = scmp.lt.s32.totalorder %s183, 15
      %s187 = scalar_select %p186, %s183, 15
      %s188 = smul.addr %s187, 2
      %s189 = smul.addr %s185, 32
      %s190 = sadd.s32 %s188, %s189
      %s191 = smul.addr %s190, 8
      %s192 = scalar_lea.vmem %s3, %s191
      %s193 = smul.u32 8, %s19
      %p194 = scmp.lt.s32.totalorder %s18, 1
      %s195 = scalar_select %p194, %s18, 1
      %p196 = scmp.lt.s32.totalorder %s193, 15
      %s197 = scalar_select %p196, %s193, 15
      %s198 = smul.addr %s197, 2
      %s199 = smul.addr %s195, 32
      %s200 = sadd.s32 %s198, %s199
      %s201 = smul.addr %s200, 8
      %s202 = scalar_lea.vmem %s0, %s201
      %s203 = smul.u32 8, %s19
      %s204 = smul.u32 8, %s19
      %p205 = scmp.lt.s32.totalorder %s18, 1
      %s206 = scalar_select %p205, %s18, 1
      %p207 = scmp.lt.s32.totalorder %s204, 15
      %s208 = scalar_select %p207, %s204, 15
      %s209 = smul.addr %s208, 2
      %s210 = smul.addr %s206, 32
      %s211 = sadd.s32 %s209, %s210
      %s212 = smul.addr %s211, 8
      %s213 = scalar_lea.vmem %s3, %s212
      %s214 = smul.u32 8, %s19
      %v215 = vld [vmem:[%s202] sm:$0xff]
      %v216 = vld [vmem:[%s202 + $0x8] sm:$0xff]
      %v217 = vld [vmem:[%s202 + $0x10] sm:$0xff]
      %v218 = vld [vmem:[%s202 + $0x18] sm:$0xff]
      %v219 = vld [vmem:[%s202 + $0x20] sm:$0xff]
      %v220 = vld [vmem:[%s202 + $0x28] sm:$0xff]
      %v221 = vld [vmem:[%s202 + $0x30] sm:$0xff]
      %v222 = vld [vmem:[%s202 + $0x38] sm:$0xff]
      %v223 = vld [vmem:[%s202 + $0x40] sm:$0xff]
      %v224 = vld [vmem:[%s202 + $0x48] sm:$0xff]
      %v225 = vld [vmem:[%s202 + $0x50] sm:$0xff]
      %v226 = vld [vmem:[%s202 + $0x58] sm:$0xff]
      %v227 = vld [vmem:[%s202 + $0x60] sm:$0xff]
      %v228 = vld [vmem:[%s202 + $0x68] sm:$0xff]
      %v229 = vld [vmem:[%s202 + $0x70] sm:$0xff]
      %v230 = vld [vmem:[%s202 + $0x78] sm:$0xff]
      %v231 = vld [vmem:[%s1] sm:$0x1]
      %v233 = vlaneseq
      %v234 = vshrl.u32 %v233, 7
      %v235 = vsub.s32 0, %v234
      %v236 = vrot.slane %v231, %v235
      %v238 = vmul.f32 %v215, %v236
      %v239 = vmul.f32 %v216, %v236
      %v240 = vmul.f32 %v217, %v236
      %v241 = vmul.f32 %v218, %v236
      %v242 = vmul.f32 %v219, %v236
      %v243 = vmul.f32 %v220, %v236
      %v244 = vmul.f32 %v221, %v236
      %v245 = vmul.f32 %v222, %v236
      %v246 = vmul.f32 %v223, %v236
      %v247 = vmul.f32 %v224, %v236
      %v248 = vmul.f32 %v225, %v236
      %v249 = vmul.f32 %v226, %v236
      %v250 = vmul.f32 %v227, %v236
      %v251 = vmul.f32 %v228, %v236
      %v252 = vmul.f32 %v229, %v236
      %v253 = vmul.f32 %v230, %v236
      %v254 = vld [vmem:[%s2] sm:$0x1]
      %v256 = vlaneseq
      %v257 = vshrl.u32 %v256, 7
      %v258 = vsub.s32 0, %v257
      %v259 = vrot.slane %v254, %v258
      %v261 = vadd.f32 %v238, %v259
      %v262 = vadd.f32 %v239, %v259
      %v263 = vadd.f32 %v240, %v259
      %v264 = vadd.f32 %v241, %v259
      %v265 = vadd.f32 %v242, %v259
      %v266 = vadd.f32 %v243, %v259
      %v267 = vadd.f32 %v244, %v259
      %v268 = vadd.f32 %v245, %v259
      %v269 = vadd.f32 %v246, %v259
      %v270 = vadd.f32 %v247, %v259
      %v271 = vadd.f32 %v248, %v259
      %v272 = vadd.f32 %v249, %v259
      %v273 = vadd.f32 %v250, %v259
      %v274 = vadd.f32 %v251, %v259
      %v275 = vadd.f32 %v252, %v259
      %v276 = vadd.f32 %v253, %v259
      %v277 = vmax.f32 %v261, 0.0
      %v278 = vmax.f32 %v262, 0.0
      %v279 = vmax.f32 %v263, 0.0
      %v280 = vmax.f32 %v264, 0.0
      %v281 = vmax.f32 %v265, 0.0
      %v282 = vmax.f32 %v266, 0.0
      %v283 = vmax.f32 %v267, 0.0
      %v284 = vmax.f32 %v268, 0.0
      %v285 = vmax.f32 %v269, 0.0
      %v286 = vmax.f32 %v270, 0.0
      %v287 = vmax.f32 %v271, 0.0
      %v288 = vmax.f32 %v272, 0.0
      %v289 = vmax.f32 %v273, 0.0
      %v290 = vmax.f32 %v274, 0.0
      %v291 = vmax.f32 %v275, 0.0
      %v292 = vmax.f32 %v276, 0.0
      %vm293 = vcmask 64512
      %294 = vst.msk [vmem:[%s213] sm:$0xff] %vm293, %v277
      %295 = vst.msk [vmem:[%s213 + $0x8] sm:$0xff] %vm293, %v278
      %296 = vst.msk [vmem:[%s213 + $0x10] sm:$0xff] %vm293, %v279
      %297 = vst.msk [vmem:[%s213 + $0x18] sm:$0xff] %vm293, %v280
      %298 = vst.msk [vmem:[%s213 + $0x20] sm:$0xff] %vm293, %v281
      %299 = vst.msk [vmem:[%s213 + $0x28] sm:$0xff] %vm293, %v282
      %300 = vst.msk [vmem:[%s213 + $0x30] sm:$0xff] %vm293, %v283
      %301 = vst.msk [vmem:[%s213 + $0x38] sm:$0xff] %vm293, %v284
      %302 = vst.msk [vmem:[%s213 + $0x40] sm:$0xff] %vm293, %v285
      %303 = vst.msk [vmem:[%s213 + $0x48] sm:$0xff] %vm293, %v286
      %304 = vst.msk [vmem:[%s213 + $0x50] sm:$0xff] %vm293, %v287
      %305 = vst.msk [vmem:[%s213 + $0x58] sm:$0xff] %vm293, %v288
      %306 = vst.msk [vmem:[%s213 + $0x60] sm:$0xff] %vm293, %v289
      %307 = vst.msk [vmem:[%s213 + $0x68] sm:$0xff] %vm293, %v290
      %308 = vst.msk [vmem:[%s213 + $0x70] sm:$0xff] %vm293, %v291
      %309 = vst.msk [vmem:[%s213 + $0x78] sm:$0xff] %vm293, %v292
      %s310 = smul.u32 8, %s19
      %p311 = scmp.lt.s32.totalorder %s18, 1
      %s312 = scalar_select %p311, %s18, 1
      %p313 = scmp.lt.s32.totalorder %s310, 15
      %s314 = scalar_select %p313, %s310, 15
      %s315 = smul.addr %s314, 2
      %s316 = smul.addr %s312, 32
      %s317 = sadd.s32 %s315, %s316
      %s318 = smul.addr %s317, 8
      %s319 = scalar_lea.vmem %s3, %s318
      // Predicated region
      $region33: #{fcn_conv_forward.6} parent=31 // pred_check
        %p320 = pneg %p116
      $region34: #{fcn_conv_forward.6} parent=31 // pred_check_branch
        %322 = sbr.rel (%p320) target = $region36
      $region35: #{fcn_conv_forward.6} parent=31 // pred_region
        %s323 = smul.u32 8, %s19
      $region36: #{fcn_conv_forward.6} parent=31 // pred_fallthru
        _
    $region32: #{fcn_conv_forward.6} parent=5 // pred_fallthru
      _
    %p324 = scmp.le.s32.totalorder 2, %s9
    // Predicated region
    $region37: #{fcn_conv_forward.6} parent=5 // pred_check
      %p325 = pneg %p324
    $region38: #{fcn_conv_forward.6} parent=5 // pred_check_branch
      %327 = sbr.rel (%p325) target = $region40
    $region39: #{fcn_conv_forward.6} parent=5 // pred_region
      %s328 = ssub.s32 %s9, 2
      // Predicated region
      $region41: #{fcn_conv_forward.6} parent=39 // pred_check
        %p329 = pneg %p122
      $region42: #{fcn_conv_forward.6} parent=39 // pred_check_branch
        %331 = sbr.rel (%p329) target = $region44
      $region43: #{fcn_conv_forward.6} parent=39 // pred_region
        %s332 = smul.u32 8, %s21
        %p333 = scmp.lt.s32.totalorder %s20, 1
        %s334 = scalar_select %p333, %s20, 1
        %p335 = scmp.lt.s32.totalorder %s332, 15
        %s336 = scalar_select %p335, %s332, 15
        %s337 = smul.addr %s336, 2
        %s338 = smul.addr %s334, 32
        %s339 = sadd.s32 %s337, %s338
        %s340 = smul.addr %s339, 8
        %s341 = scalar_lea.vmem %s3, %s340
      $region44: #{fcn_conv_forward.6} parent=39 // pred_fallthru
        _
    $region40: #{fcn_conv_forward.6} parent=5 // pred_fallthru
      _
  $region6: #{fcn_conv_forward.6} parent=0 // loop_footer
    %s13 = sadd.s32 1, %s9
  $region7: #{fcn_conv_forward.6} parent=0 // loop_footer_branch
    %8 = sbr.rel target = $region3
  $region8: #{fcn_conv_forward.6} parent=0 // loop_exit
    _

// kernel: fcn_conv_forward.9
$region0: #{fcn_conv_forward.9}
  #allocation0 [shape = 'u32[]', space=smem, size = 0x4, offset = 0x4, fixed_abs, tag = 'smem constant byte address 0x4 - core index']
  #allocation1 [shape = 'u32[144,128]{1,0:T(1,128)}', space=vmem, size = 0x12000, scoped, tag = 'internal scratch']
  %s0 = inlined_call_operand.vmem [shape: f32[2,16,8,16], index: 0, kind: input, shape index: {}]
  %s1 = inlined_call_operand.vmem [shape: f32[2,8,8,8], index: 1, kind: output, shape index: {}]
  %s2 = sld [smem:[#allocation0]]
  $region37: #{fcn_conv_forward.9} parent=0
    _
  %s4 = ssub.s32 1, %s2
  %s5 = scalar_select 0, %s4, %s2
  loop: start=0, step=1, limit=4
  $region2: #{fcn_conv_forward.9} parent=0 // loop_pre_header
    _
  $region3: #{fcn_conv_forward.9} parent=0 // loop_header
    %s7 = sphi 0, %s11
    %p8 = scmp.ge.s32.totalorder %s7, 4
    %s17 = sphi 0, %s19
    %s20 = sphi 0, %s17
    %s21 = sphi 0, %s20
    %s37 = sphi 0, %s21
    %s43 = sphi 0, %s45
    %s46 = sphi 0, %s43
    %s47 = sphi 0, %s46
    %s63 = sphi 0, %s47
  $region4: #{fcn_conv_forward.9} parent=0 // loop_header_branch
    %10 = sbr.rel (%p8) target = $region8
  $region5: #{fcn_conv_forward.9} parent=0 // loop_body
    %s12 = ssub.s32 %s7, 1
    %s13 = ssub.s32 %s7, 2
    %s14 = sadd.s32 %s7, 1
    %s15 = ssub.s32 %s7, %s14
    %p16 = scmp.eq.s32.totalorder %s15, 0
    %s18 = sadd.s32 %s17, 1
    %s19 = scalar_select %p16, %s17, %s18
    %p22 = pneg %p16
    %p23 = scmp.eq.s32.totalorder %s7, 1
    %p24 = por %p22, %p23
    %p25 = scmp.ne.s32.totalorder %s17, %s20
    %p26 = scmp.eq.s32.totalorder %s7, 0
    %p27 = por %p25, %p26
    %p28 = scmp.ne.s32.totalorder %s17, %s20
    %p29 = scmp.eq.s32.totalorder %s12, 1
    %p30 = por %p28, %p29
    %p31 = scmp.ne.s32.totalorder %s20, %s21
    %p32 = scmp.eq.s32.totalorder %s12, 0
    %p33 = por %p31, %p32
    %p34 = scmp.ne.s32.totalorder %s20, %s21
    %p35 = scmp.eq.s32.totalorder %s13, 1
    %p36 = por %p34, %p35
    %p38 = scmp.ne.s32.totalorder %s21, %s37
    %p39 = scmp.eq.s32.totalorder %s13, 0
    %p40 = por %p38, %p39
    %s41 = ssub.s32 %s7, %s14
    %p42 = scmp.eq.s32.totalorder %s41, 0
    %s44 = sadd.s32 %s43, 1
    %s45 = scalar_select %p42, %s43, %s44
    %p48 = pneg %p42
    %p49 = scmp.eq.s32.totalorder %s7, 1
    %p50 = por %p48, %p49
    %p51 = scmp.ne.s32.totalorder %s43, %s46
    %p52 = scmp.eq.s32.totalorder %s7, 0
    %p53 = por %p51, %p52
    %p54 = scmp.ne.s32.totalorder %s43, %s46
    %p55 = scmp.eq.s32.totalorder %s12, 1
    %p56 = por %p54, %p55
    %p57 = scmp.ne.s32.totalorder %s46, %s47
    %p58 = scmp.eq.s32.totalorder %s12, 0
    %p59 = por %p57, %p58
    %p60 = scmp.ne.s32.totalorder %s46, %s47
    %p61 = scmp.eq.s32.totalorder %s13, 1
    %p62 = por %p60, %p61
    %p64 = scmp.ne.s32.totalorder %s47, %s63
    %p65 = scmp.eq.s32.totalorder %s13, 0
    %p66 = por %p64, %p65
    %p67 = scmp.le.s32.totalorder 1, %s7
    %p68 = scmp.lt.s32.totalorder %s7, 3
    %p69 = pnand %p67, %p68
    %p70 = pneg %p69
    // Predicated region
    $region9: #{fcn_conv_forward.9} parent=5 // pred_check
      _
    $region10: #{fcn_conv_forward.9} parent=5 // pred_check_branch
      %72 = sbr.rel (%p69) target = $region12
    $region11: #{fcn_conv_forward.9} parent=5 // pred_region
      %s73 = ssub.s32 %s7, 1
    $region12: #{fcn_conv_forward.9} parent=5 // pred_fallthru
      _
    %p74 = scmp.lt.s32.totalorder %s7, 2
    // Predicated region
    $region13: #{fcn_conv_forward.9} parent=5 // pred_check
      %p75 = pneg %p74
    $region14: #{fcn_conv_forward.9} parent=5 // pred_check_branch
      %77 = sbr.rel (%p75) target = $region16
    $region15: #{fcn_conv_forward.9} parent=5 // pred_region
      // Predicated region
      $region17: #{fcn_conv_forward.9} parent=15 // pred_check
        %p78 = pneg %p27
      $region18: #{fcn_conv_forward.9} parent=15 // pred_check_branch
        %80 = sbr.rel (%p78) target = $region20
      $region19: #{fcn_conv_forward.9} parent=15 // pred_region
        %p81 = scmp.lt.s32.totalorder %s7, 1
        %s82 = scalar_select %p81, %s7, 1
        %s83 = smul.addr %s82, 16
        %s84 = smul.addr %s83, 8
        %s85 = scalar_lea.vmem %s0, %s84
      $region20: #{fcn_conv_forward.9} parent=15 // pred_fallthru
        _
    $region16: #{fcn_conv_forward.9} parent=5 // pred_fallthru
      _
    %p86 = scmp.le.s32.totalorder 1, %s7
    %p87 = scmp.lt.s32.totalorder %s7, 3
    %p88 = pnand %p86, %p87
    %p89 = pneg %p88
    // Predicated region
    $region21: #{fcn_conv_forward.9} parent=5 // pred_check
      _
    $region22: #{fcn_conv_forward.9} parent=5 // pred_check_branch
      %91 = sbr.rel (%p88) target = $region24
    $region23: #{fcn_conv_forward.9} parent=5 // pred_region
      %s92 = ssub.s32 %s7, 1
      %p93 = scmp.lt.s32.totalorder %s12, 1
      %s94 = scalar_select %p93, %s12, 1
      %s95 = smul.addr %s94, 16
      %s96 = smul.addr %s95, 8
      %s97 = scalar_lea.vmem %s0, %s96
      %p98 = pneg %p33
      %p99 = pneg %p30
      %p100 = pneg %p59
      %p101 = pneg %p56
      %p102 = scmp.lt.s32.totalorder %s12, 1
      %s103 = scalar_select %p102, %s12, 1
      %s104 = smul.addr %s103, 8
      %s105 = smul.addr %s104, 8
      %s106 = scalar_lea.vmem %s1, %s105
      %p107 = scmp.lt.s32.totalorder %s12, 1
      %s108 = scalar_select %p107, %s12, 1
      %s109 = smul.addr %s108, 16
      %s110 = smul.addr %s109, 8
      %s111 = scalar_lea.vmem %s0, %s110
      %p112 = scmp.lt.s32.totalorder %s12, 1
      %s113 = scalar_select %p112, %s12, 1
      %s114 = smul.addr %s113, 8
      %s115 = smul.addr %s114, 8
      %s116 = scalar_lea.vmem %s1, %s115
      %v117 = vld [vmem:[%s111] sm:$0xff]
      %v118 = vld [vmem:[%s111 + $0x8] sm:$0xff]
      %v119 = vld [vmem:[%s111 + $0x10] sm:$0xff]
      %v120 = vld [vmem:[%s111 + $0x18] sm:$0xff]
      %v121 = vld [vmem:[%s111 + $0x20] sm:$0xff]
      %v122 = vld [vmem:[%s111 + $0x28] sm:$0xff]
      %v123 = vld [vmem:[%s111 + $0x30] sm:$0xff]
      %v124 = vld [vmem:[%s111 + $0x38] sm:$0xff]
      %v125 = vld [vmem:[%s111 + $0x40] sm:$0xff]
      %v126 = vld [vmem:[%s111 + $0x48] sm:$0xff]
      %v127 = vld [vmem:[%s111 + $0x50] sm:$0xff]
      %v128 = vld [vmem:[%s111 + $0x58] sm:$0xff]
      %v129 = vld [vmem:[%s111 + $0x60] sm:$0xff]
      %v130 = vld [vmem:[%s111 + $0x68] sm:$0xff]
      %v131 = vld [vmem:[%s111 + $0x70] sm:$0xff]
      %v132 = vld [vmem:[%s111 + $0x78] sm:$0xff]
      %149 = vrot.lane.b32.xlu0 %v117, 120
      %v150 = vpop.permute.xlu0 %149
      %151 = vrot.lane.b32.xlu0 %v118, 120
      %v152 = vpop.permute.xlu0 %151
      %153 = vrot.lane.b32.xlu0 %v119, 120
      %v154 = vpop.permute.xlu0 %153
      %155 = vrot.lane.b32.xlu0 %v120, 120
      %v156 = vpop.permute.xlu0 %155
      %157 = vrot.lane.b32.xlu0 %v121, 120
      %v158 = vpop.permute.xlu0 %157
      %159 = vrot.lane.b32.xlu0 %v122, 120
      %v160 = vpop.permute.xlu0 %159
      %161 = vrot.lane.b32.xlu0 %v123, 120
      %v162 = vpop.permute.xlu0 %161
      %163 = vrot.lane.b32.xlu0 %v124, 120
      %v164 = vpop.permute.xlu0 %163
      %165 = vrot.lane.b32.xlu0 %v125, 120
      %v166 = vpop.permute.xlu0 %165
      %167 = vrot.lane.b32.xlu0 %v126, 120
      %v168 = vpop.permute.xlu0 %167
      %169 = vrot.lane.b32.xlu0 %v127, 120
      %v170 = vpop.permute.xlu0 %169
      %171 = vrot.lane.b32.xlu0 %v128, 120
      %v172 = vpop.permute.xlu0 %171
      %173 = vrot.lane.b32.xlu0 %v129, 120
      %v174 = vpop.permute.xlu0 %173
      %175 = vrot.lane.b32.xlu0 %v130, 120
      %v176 = vpop.permute.xlu0 %175
      %177 = vrot.lane.b32.xlu0 %v131, 120
      %v178 = vpop.permute.xlu0 %177
      %179 = vrot.lane.b32.xlu0 %v132, 120
      %v180 = vpop.permute.xlu0 %179
      %v197 = vmax.f32 %v117, %v150
      %v198 = vmax.f32 %v118, %v152
      %v199 = vmax.f32 %v119, %v154
      %v200 = vmax.f32 %v120, %v156
      %v201 = vmax.f32 %v121, %v158
      %v202 = vmax.f32 %v122, %v160
      %v203 = vmax.f32 %v123, %v162
      %v204 = vmax.f32 %v124, %v164
      %v205 = vmax.f32 %v125, %v166
      %v206 = vmax.f32 %v126, %v168
      %v207 = vmax.f32 %v127, %v170
      %v208 = vmax.f32 %v128, %v172
      %v209 = vmax.f32 %v129, %v174
      %v210 = vmax.f32 %v130, %v176
      %v211 = vmax.f32 %v131, %v178
      %v212 = vmax.f32 %v132, %v180
      %v213 = vmax.f32 %v197, %v198
      %v214 = vmax.f32 %v199, %v200
      %v215 = vmax.f32 %v201, %v202
      %v216 = vmax.f32 %v203, %v204
      %v217 = vmax.f32 %v205, %v206
      %v218 = vmax.f32 %v207, %v208
      %v219 = vmax.f32 %v209, %v210
      %v220 = vmax.f32 %v211, %v212
      %vm221 = vcmask 64512
      %222 = vst.msk [vmem:[%s116] sm:$0xff] %vm221, %v213
      %223 = vst.msk [vmem:[%s116 + $0x8] sm:$0xff] %vm221, %v214
      %224 = vst.msk [vmem:[%s116 + $0x10] sm:$0xff] %vm221, %v215
      %225 = vst.msk [vmem:[%s116 + $0x18] sm:$0xff] %vm221, %v216
      %226 = vst.msk [vmem:[%s116 + $0x20] sm:$0xff] %vm221, %v217
      %227 = vst.msk [vmem:[%s116 + $0x28] sm:$0xff] %vm221, %v218
      %228 = vst.msk [vmem:[%s116 + $0x30] sm:$0xff] %vm221, %v219
      %229 = vst.msk [vmem:[%s116 + $0x38] sm:$0xff] %vm221, %v220
      %p230 = scmp.lt.s32.totalorder %s12, 1
      %s231 = scalar_select %p230, %s12, 1
      %s232 = smul.addr %s231, 8
      %s233 = smul.addr %s232, 8
      %s234 = scalar_lea.vmem %s1, %s233
      // Predicated region
      $region25: #{fcn_conv_forward.9} parent=23 // pred_check
        %p235 = pneg %p56
      $region26: #{fcn_conv_forward.9} parent=23 // pred_check_branch
        %237 = sbr.rel (%p235) target = $region28
      $region27: #{fcn_conv_forward.9} parent=23 // pred_region
        _
      $region28: #{fcn_conv_forward.9} parent=23 // pred_fallthru
        _
    $region24: #{fcn_conv_forward.9} parent=5 // pred_fallthru
      _
    %p238 = scmp.le.s32.totalorder 2, %s7
    // Predicated region
    $region29: #{fcn_conv_forward.9} parent=5 // pred_check
      %p239 = pneg %p238
    $region30: #{fcn_conv_forward.9} parent=5 // pred_check_branch
      %241 = sbr.rel (%p239) target = $region32
    $region31: #{fcn_conv_forward.9} parent=5 // pred_region
      %s242 = ssub.s32 %s7, 2
      // Predicated region
      $region33: #{fcn_conv_forward.9} parent=31 // pred_check
        %p243 = pneg %p62
      $region34: #{fcn_conv_forward.9} parent=31 // pred_check_branch
        %245 = sbr.rel (%p243) target = $region36
      $region35: #{fcn_conv_forward.9} parent=31 // pred_region
        %p246 = scmp.lt.s32.totalorder %s13, 1
        %s247 = scalar_select %p246, %s13, 1
        %s248 = smul.addr %s247, 8
        %s249 = smul.addr %s248, 8
        %s250 = scalar_lea.vmem %s1, %s249
      $region36: #{fcn_conv_forward.9} parent=31 // pred_fallthru
        _
    $region32: #{fcn_conv_forward.9} parent=5 // pred_fallthru
      _
  $region6: #{fcn_conv_forward.9} parent=0 // loop_footer
    %s11 = sadd.s32 1, %s7
  $region7: #{fcn_conv_forward.9} parent=0 // loop_footer_branch
    %6 = sbr.rel target = $region3
  $region8: #{fcn_conv_forward.9} parent=0 // loop_exit
    _

// kernel: fcn_conv_forward.7
$region0: #{fcn_conv_forward.7}
  #allocation0 [shape = 'u32[]', space=smem, size = 0x4, offset = 0x4, fixed_abs, tag = 'smem constant byte address 0x4 - core index']
  #allocation1 [shape = 'u32[144,128]{1,0:T(1,128)}', space=vmem, size = 0x12000, scoped, tag = 'internal scratch']
  #allocation2 [shape = 'bf16[128,72]{1,0:T(8,128)(2,1)}', space=vmem, size = 0x8000, scoped, tag = 'scratch operand']
  %s0 = inlined_call_operand.vmem [shape: bf16[2,18,18,8], index: 0, kind: input, shape index: {}]
  %s1 = inlined_call_operand.vmem [shape: bf16[72,8], index: 1, kind: input, shape index: {}]
  %s2 = inlined_call_operand.vmem [shape: f32[1,8], index: 2, kind: input, shape index: {}]
  %s3 = inlined_call_operand.vmem [shape: f32[2,16,16,8], index: 3, kind: output, shape index: {0}]
  %s4 = inlined_call_operand.vmem [shape: f32[2,2,2,8], index: 4, kind: output, shape index: {1}]
  %5 = xla_tuple %s3, %s4
  %s6 = sld [smem:[#allocation0]]
  $region53: #{fcn_conv_forward.7} parent=0
    _
  %s8 = ssub.s32 1, %s6
  %s9 = scalar_select 0, %s8, %s6
  loop: start=0, step=1, limit=6
  $region2: #{fcn_conv_forward.7} parent=0 // loop_pre_header
    _
  $region3: #{fcn_conv_forward.7} parent=0 // loop_header
    %s11 = sphi 0, %s15
    %p12 = scmp.ge.s32.totalorder %s11, 6
    %s18 = sphi 0, %s30
    %s19 = sphi 0, %s26
    %s20 = sphi 0, %s18
    %s21 = sphi 0, %s19
    %s22 = sphi 0, %s20
    %s23 = sphi 0, %s21
    %s33 = sphi 0, %s35
    %s36 = sphi 0, %s33
    %s37 = sphi 0, %s36
    %s53 = sphi 0, %s37
    %s57 = sphi 0, %s57
    %s59 = sphi 0, %s57
    %s60 = sphi 0, %s59
    %s74 = sphi 0, %s60
    %s78 = sphi 0, %s78
    %s80 = sphi 0, %s78
    %s81 = sphi 0, %s80
    %s95 = sphi 0, %s81
    %s103 = sphi 0, %s105
    %s106 = sphi 0, %s103
    %s107 = sphi 0, %s106
    %s123 = sphi 0, %s107
    %s131 = sphi 0, %s133
    %s134 = sphi 0, %s131
    %s135 = sphi 0, %s134
    %s151 = sphi 0, %s135
  $region4: #{fcn_conv_forward.7} parent=0 // loop_header_branch
    %14 = sbr.rel (%p12) target = $region8
  $region5: #{fcn_conv_forward.7} parent=0 // loop_body
    %s16 = ssub.s32 %s11, 1
    %s17 = ssub.s32 %s11, 2
    %s24 = sadd.s32 1, %s19
    %p25 = scmp.ge.s32.totalorder %s24, 2
    %s26 = scalar_select %p25, 0, %s24
    %s27 = sadd.s32 1, %s18
    %s28 = scalar_select %p25, %s27, %s18
    %p29 = scmp.ge.s32.totalorder %s28, 2
    %s30 = scalar_select %p29, 0, %s28
    %s31 = ssub.s32 %s18, %s30
    %p32 = scmp.eq.s32.totalorder %s31, 0
    %s34 = sadd.s32 %s33, 1
    %s35 = scalar_select %p32, %s33, %s34
    %p38 = pneg %p32
    %p39 = scmp.eq.s32.totalorder %s11, 3
    %p40 = por %p38, %p39
    %p41 = scmp.ne.s32.totalorder %s33, %s36
    %p42 = scmp.eq.s32.totalorder %s11, 0
    %p43 = por %p41, %p42
    %p44 = scmp.ne.s32.totalorder %s33, %s36
    %p45 = scmp.eq.s32.totalorder %s16, 3
    %p46 = por %p44, %p45
    %p47 = scmp.ne.s32.totalorder %s36, %s37
    %p48 = scmp.eq.s32.totalorder %s16, 0
    %p49 = por %p47, %p48
    %p50 = scmp.ne.s32.totalorder %s36, %s37
    %p51 = scmp.eq.s32.totalorder %s17, 3
    %p52 = por %p50, %p51
    %p54 = scmp.ne.s32.totalorder %s37, %s53
    %p55 = scmp.eq.s32.totalorder %s17, 0
    %p56 = por %p54, %p55
    %s58 = sadd.s32 %s57, 1
    %p61 = scmp.eq.s32.totalorder %s11, 3
    %p62 = scmp.ne.s32.totalorder %s57, %s59
    %p63 = scmp.eq.s32.totalorder %s11, 0
    %p64 = por %p62, %p63
    %p65 = scmp.ne.s32.totalorder %s57, %s59
    %p66 = scmp.eq.s32.totalorder %s16, 3
    %p67 = por %p65, %p66
    %p68 = scmp.ne.s32.totalorder %s59, %s60
    %p69 = scmp.eq.s32.totalorder %s16, 0
    %p70 = por %p68, %p69
    %p71 = scmp.ne.s32.totalorder %s59, %s60
    %p72 = scmp.eq.s32.totalorder %s17, 3
    %p73 = por %p71, %p72
    %p75 = scmp.ne.s32.totalorder %s60, %s74
    %p76 = scmp.eq.s32.totalorder %s17, 0
    %p77 = por %p75, %p76
    %s79 = sadd.s32 %s78, 1
    %p82 = scmp.eq.s32.totalorder %s11, 3
    %p83 = scmp.ne.s32.totalorder %s78, %s80
    %p84 = scmp.eq.s32.totalorder %s11, 0
    %p85 = por %p83, %p84
    %p86 = scmp.ne.s32.totalorder %s78, %s80
    %p87 = scmp.eq.s32.totalorder %s16, 3
    %p88 = por %p86, %p87
    %p89 = scmp.ne.s32.totalorder %s80, %s81
    %p90 = scmp.eq.s32.totalorder %s16, 0
    %p91 = por %p89, %p90
    %p92 = scmp.ne.s32.totalorder %s80, %s81
    %p93 = scmp.eq.s32.totalorder %s17, 3
    %p94 = por %p92, %p93
    %p96 = scmp.ne.s32.totalorder %s81, %s95
    %p97 = scmp.eq.s32.totalorder %s17, 0
    %p98 = por %p96, %p97
    %s99 = ssub.s32 %s18, %s30
    %s100 = ssub.s32 %s19, %s26
    %s101 = sor.u32 %s99, %s100
    %p102 = scmp.eq.s32.totalorder %s101, 0
    %s104 = sadd.s32 %s103, 1
    %s105 = scalar_select %p102, %s103, %s104
    %p108 = pneg %p102
    %p109 = scmp.eq.s32.totalorder %s11, 3
    %p110 = por %p108, %p109
    %p111 = scmp.ne.s32.totalorder %s103, %s106
    %p112 = scmp.eq.s32.totalorder %s11, 0
    %p113 = por %p111, %p112
    %p114 = scmp.ne.s32.totalorder %s103, %s106
    %p115 = scmp.eq.s32.totalorder %s16, 3
    %p116 = por %p114, %p115
    %p117 = scmp.ne.s32.totalorder %s106, %s107
    %p118 = scmp.eq.s32.totalorder %s16, 0
    %p119 = por %p117, %p118
    %p120 = scmp.ne.s32.totalorder %s106, %s107
    %p121 = scmp.eq.s32.totalorder %s17, 3
    %p122 = por %p120, %p121
    %p124 = scmp.ne.s32.totalorder %s107, %s123
    %p125 = scmp.eq.s32.totalorder %s17, 0
    %p126 = por %p124, %p125
    %s127 = ssub.s32 %s18, %s30
    %s128 = ssub.s32 %s19, %s26
    %s129 = sor.u32 %s127, %s128
    %p130 = scmp.eq.s32.totalorder %s129, 0
    %s132 = sadd.s32 %s131, 1
    %s133 = scalar_select %p130, %s131, %s132
    %p136 = pneg %p130
    %p137 = scmp.eq.s32.totalorder %s11, 3
    %p138 = por %p136, %p137
    %p139 = scmp.ne.s32.totalorder %s131, %s134
    %p140 = scmp.eq.s32.totalorder %s11, 0
    %p141 = por %p139, %p140
    %p142 = scmp.ne.s32.totalorder %s131, %s134
    %p143 = scmp.eq.s32.totalorder %s16, 3
    %p144 = por %p142, %p143
    %p145 = scmp.ne.s32.totalorder %s134, %s135
    %p146 = scmp.eq.s32.totalorder %s16, 0
    %p147 = por %p145, %p146
    %p148 = scmp.ne.s32.totalorder %s134, %s135
    %p149 = scmp.eq.s32.totalorder %s17, 3
    %p150 = por %p148, %p149
    %p152 = scmp.ne.s32.totalorder %s135, %s151
    %p153 = scmp.eq.s32.totalorder %s17, 0
    %p154 = por %p152, %p153
    %p155 = scmp.le.s32.totalorder 1, %s11
    %p156 = scmp.lt.s32.totalorder %s11, 5
    %p157 = pnand %p155, %p156
    %p158 = pneg %p157
    // Predicated region
    $region9: #{fcn_conv_forward.7} parent=5 // pred_check
      _
    $region10: #{fcn_conv_forward.7} parent=5 // pred_check_branch
      %160 = sbr.rel (%p157) target = $region12
    $region11: #{fcn_conv_forward.7} parent=5 // pred_region
      %s161 = ssub.s32 %s11, 1
      // Predicated region
      $region13: #{fcn_conv_forward.7} parent=11 // pred_check
        %p162 = pneg %p70
      $region14: #{fcn_conv_forward.7} parent=11 // pred_check_branch
        %164 = sbr.rel (%p162) target = $region16
      $region15: #{fcn_conv_forward.7} parent=11 // pred_region
        _
      $region16: #{fcn_conv_forward.7} parent=11 // pred_fallthru
        _
      // Predicated region
      $region17: #{fcn_conv_forward.7} parent=11 // pred_check
        %p165 = pneg %p91
      $region18: #{fcn_conv_forward.7} parent=11 // pred_check_branch
        %167 = sbr.rel (%p165) target = $region20
      $region19: #{fcn_conv_forward.7} parent=11 // pred_region
        _
      $region20: #{fcn_conv_forward.7} parent=11 // pred_fallthru
        _
    $region12: #{fcn_conv_forward.7} parent=5 // pred_fallthru
      _
    %p168 = scmp.lt.s32.totalorder %s11, 4
    // Predicated region
    $region21: #{fcn_conv_forward.7} parent=5 // pred_check
      %p169 = pneg %p168
    $region22: #{fcn_conv_forward.7} parent=5 // pred_check_branch
      %171 = sbr.rel (%p169) target = $region24
    $region23: #{fcn_conv_forward.7} parent=5 // pred_region
      // Predicated region
      $region25: #{fcn_conv_forward.7} parent=23 // pred_check
        %p172 = pneg %p43
      $region26: #{fcn_conv_forward.7} parent=23 // pred_check_branch
        %174 = sbr.rel (%p172) target = $region28
      $region27: #{fcn_conv_forward.7} parent=23 // pred_region
        %p175 = scmp.lt.s32.totalorder %s18, 1
        %s176 = scalar_select %p175, %s18, 1
        %s177 = smul.addr %s176, 54
        %s178 = smul.addr %s177, 4
        %s179 = scalar_lea.vmem %s0, %s178
      $region28: #{fcn_conv_forward.7} parent=23 // pred_fallthru
        _
    $region24: #{fcn_conv_forward.7} parent=5 // pred_fallthru
      _
    %p180 = scmp.le.s32.totalorder 1, %s11
    %p181 = scmp.lt.s32.totalorder %s11, 5
    %p182 = pnand %p180, %p181
    %p183 = pneg %p182
    // Predicated region
    $region29: #{fcn_conv_forward.7} parent=5 // pred_check
      _
    $region30: #{fcn_conv_forward.7} parent=5 // pred_check_branch
      %185 = sbr.rel (%p182) target = $region32
    $region31: #{fcn_conv_forward.7} parent=5 // pred_region
      %s186 = ssub.s32 %s11, 1
      %p187 = scmp.lt.s32.totalorder %s20, 1
      %s188 = scalar_select %p187, %s20, 1
      %s189 = smul.addr %s188, 54
      %s190 = smul.addr %s189, 4
      %s191 = scalar_lea.vmem %s0, %s190
      %p192 = pneg %p49
      %p193 = pneg %p46
      %p194 = pneg %p70
      %p195 = pneg %p67
      %p196 = pneg %p91
      %p197 = pneg %p88
      %p198 = pneg %p119
      %p199 = pneg %p116
      %s200 = smul.u32 8, %s21
      %p201 = scmp.lt.s32.totalorder %s20, 1
      %s202 = scalar_select %p201, %s20, 1
      %p203 = scmp.lt.s32.totalorder %s200, 15
      %s204 = scalar_select %p203, %s200, 15
      %s205 = smul.addr %s204, 2
      %s206 = smul.addr %s202, 32
      %s207 = sadd.s32 %s205, %s206
      %s208 = smul.addr %s207, 8
      %s209 = scalar_lea.vmem %s3, %s208
      %p210 = pneg %p147
      %p211 = pneg %p144
      %p212 = scmp.lt.s32.totalorder %s20, 1
      %s213 = scalar_select %p212, %s20, 1
      %p214 = scmp.lt.s32.totalorder %s21, 1
      %s215 = scalar_select %p214, %s21, 1
      %s216 = smul.addr %s213, 2
      %s217 = sadd.s32 %s215, %s216
      %s218 = smul.addr %s217, 2
      %s219 = scalar_lea.vmem %s4, %s218
      %p220 = scmp.lt.s32.totalorder %s20, 1
      %s221 = scalar_select %p220, %s20, 1
      %s222 = smul.addr %s221, 54
      %s223 = smul.addr %s222, 4
      %s224 = scalar_lea.vmem %s0, %s223
      %s225 = smul.u32 8, %s21
      %p226 = scmp.lt.s32.totalorder %s20, 1
      %s227 = scalar_select %p226, %s20, 1
      %p228 = scmp.lt.s32.totalorder %s225, 15
      %s229 = scalar_select %p228, %s225, 15
      %s230 = smul.addr %s229, 2
      %s231 = smul.addr %s227, 32
      %s232 = sadd.s32 %s230, %s231
      %s233 = smul.addr %s232, 8
      %s234 = scalar_lea.vmem %s3, %s233
      %s235 = smul.u32 8, %s21
      %p236 = scmp.lt.s32.totalorder %s20, 1
      %s237 = scalar_select %p236, %s20, 1
      %p238 = scmp.lt.s32.totalorder %s21, 1
      %s239 = scalar_select %p238, %s21, 1
      %s240 = smul.addr %s237, 2
      %s241 = sadd.s32 %s239, %s240
      %s242 = smul.addr %s241, 2
      %s243 = scalar_lea.vmem %s4, %s242
      %s245 = smul.u32 %s21, 8
      %s246 = smul.u32 %s245, 3
      %s247 = smul.addr %s246, 4
      %s248 = scalar_lea.vmem %s224, %s247
      %v249 = vld [vmem:[%s248] sm:$0xf]
      %v250 = vld [vmem:[%s248 + $0x4] sm:$0xf]
      %v251 = vld [vmem:[%s248 + $0xc] sm:$0xf]
      %v252 = vld [vmem:[%s248 + $0x10] sm:$0xf]
      %v253 = vld [vmem:[%s248 + $0x18] sm:$0xf]
      %v254 = vld [vmem:[%s248 + $0x1c] sm:$0xf]
      %v255 = vld [vmem:[%s248 + $0x24] sm:$0xf]
      %v256 = vld [vmem:[%s248 + $0x28] sm:$0xf]
      %v257 = vld [vmem:[%s248 + $0x30] sm:$0xf]
      %v258 = vld [vmem:[%s248 + $0x34] sm:$0xf]
      %v259 = vld [vmem:[%s248 + $0x3c] sm:$0xf]
      %v260 = vld [vmem:[%s248 + $0x40] sm:$0xf]
      %v261 = vld [vmem:[%s248 + $0x48] sm:$0xf]
      %v262 = vld [vmem:[%s248 + $0x4c] sm:$0xf]
      %v263 = vld [vmem:[%s248 + $0x54] sm:$0xf]
      %v264 = vld [vmem:[%s248 + $0x58] sm:$0xf]
      %vm265 = vcmask 60416
      %266 = vst.msk [vmem:[#allocation2] sm:$0xf] %vm265, %v249
      %267 = vst.msk [vmem:[#allocation2 + $0x4] sm:$0xf] %vm265, %v250
      %268 = vst.msk [vmem:[#allocation2 + $0x8] sm:$0xf] %vm265, %v251
      %269 = vst.msk [vmem:[#allocation2 + $0xc] sm:$0xf] %vm265, %v252
      %270 = vst.msk [vmem:[#allocation2 + $0x10] sm:$0xf] %vm265, %v253
      %271 = vst.msk [vmem:[#allocation2 + $0x14] sm:$0xf] %vm265, %v254
      %272 = vst.msk [vmem:[#allocation2 + $0x18] sm:$0xf] %vm265, %v255
      %273 = vst.msk [vmem:[#allocation2 + $0x1c] sm:$0xf] %vm265, %v256
      %274 = vst.msk [vmem:[#allocation2 + $0x20] sm:$0xf] %vm265, %v257
      %275 = vst.msk [vmem:[#allocation2 + $0x24] sm:$0xf] %vm265, %v258
      %276 = vst.msk [vmem:[#allocation2 + $0x28] sm:$0xf] %vm265, %v259
      %277 = vst.msk [vmem:[#allocation2 + $0x2c] sm:$0xf] %vm265, %v260
      %278 = vst.msk [vmem:[#allocation2 + $0x30] sm:$0xf] %vm265, %v261
      %279 = vst.msk [vmem:[#allocation2 + $0x34] sm:$0xf] %vm265, %v262
      %280 = vst.msk [vmem:[#allocation2 + $0x38] sm:$0xf] %vm265, %v263
      %281 = vst.msk [vmem:[#allocation2 + $0x3c] sm:$0xf] %vm265, %v264
      %v282 = vld [vmem:[%s248] sm:$0xf]
      %v283 = vld [vmem:[%s248 + $0x4] sm:$0xf]
      %v284 = vld [vmem:[%s248 + $0x8] sm:$0x1]
      %v285 = vld [vmem:[%s248 + $0xc] sm:$0xf]
      %v286 = vld [vmem:[%s248 + $0x10] sm:$0xf]
      %v287 = vld [vmem:[%s248 + $0x14] sm:$0x1]
      %v288 = vld [vmem:[%s248 + $0x18] sm:$0xf]
      %v289 = vld [vmem:[%s248 + $0x1c] sm:$0xf]
      %v290 = vld [vmem:[%s248 + $0x20] sm:$0x1]
      %v291 = vld [vmem:[%s248 + $0x24] sm:$0xf]
      %v292 = vld [vmem:[%s248 + $0x28] sm:$0xf]
      %v293 = vld [vmem:[%s248 + $0x2c] sm:$0x1]
      %v294 = vld [vmem:[%s248 + $0x30] sm:$0xf]
      %v295 = vld [vmem:[%s248 + $0x34] sm:$0xf]
      %v296 = vld [vmem:[%s248 + $0x38] sm:$0x1]
      %v297 = vld [vmem:[%s248 + $0x3c] sm:$0xf]
      %v298 = vld [vmem:[%s248 + $0x40] sm:$0xf]
      %v299 = vld [vmem:[%s248 + $0x44] sm:$0x1]
      %v300 = vld [vmem:[%s248 + $0x48] sm:$0xf]
      %v301 = vld [vmem:[%s248 + $0x4c] sm:$0xf]
      %v302 = vld [vmem:[%s248 + $0x50] sm:$0x1]
      %v303 = vld [vmem:[%s248 + $0x54] sm:$0xf]
      %v304 = vld [vmem:[%s248 + $0x58] sm:$0xf]
      %v305 = vld [vmem:[%s248 + $0x5c] sm:$0x1]
      %vm306 = vsmask.f32 3328
      %vm307 = vsmask.f32 7440
      %vm308 = vmor %vm306, %vm307
      %v310 = vshrl.u32 %v282, 16
      %v312 = vrot.slane %v310, 4
      %v313 = vshll.u32 %v282, 16
      %v315 = vrot.slane %v313, 5
      %v316 = vor.u32 %v312, %v315
      %v317 = vrot.slane %v316, 4
      %v319 = vshll.u32 %v283, 16
      %v321 = vrot.slane %v319, 5
      %v322 = vsel %vm308, %v317, %v321
      %v323 = vshrl.u32 %v283, 16
      %v325 = vrot.slane %v323, 4
      %v326 = vor.u32 %v325, %v321
      %v327 = vrot.slane %v326, 4
      %v329 = vshll.u32 %v284, 16
      %v331 = vrot.slane %v329, 5
      %v332 = vsel %vm308, %v327, %v331
      %v334 = vshrl.u32 %v285, 16
      %v336 = vrot.slane %v334, 4
      %v337 = vshll.u32 %v285, 16
      %v339 = vrot.slane %v337, 5
      %v340 = vor.u32 %v336, %v339
      %v341 = vrot.slane %v340, 4
      %v343 = vshll.u32 %v286, 16
      %v345 = vrot.slane %v343, 5
      %v346 = vsel %vm308, %v341, %v345
      %v347 = vshrl.u32 %v286, 16
      %v349 = vrot.slane %v347, 4
      %v350 = vor.u32 %v349, %v345
      %v351 = vrot.slane %v350, 4
      %v353 = vshll.u32 %v287, 16
      %v355 = vrot.slane %v353, 5
      %v356 = vsel %vm308, %v351, %v355
      %v358 = vshrl.u32 %v288, 16
      %v360 = vrot.slane %v358, 4
      %v361 = vshll.u32 %v288, 16
      %v363 = vrot.slane %v361, 5
      %v364 = vor.u32 %v360, %v363
      %v365 = vrot.slane %v364, 4
      %v367 = vshll.u32 %v289, 16
      %v369 = vrot.slane %v367, 5
      %v370 = vsel %vm308, %v365, %v369
      %v371 = vshrl.u32 %v289, 16
      %v373 = vrot.slane %v371, 4
      %v374 = vor.u32 %v373, %v369
      %v375 = vrot.slane %v374, 4
      %v377 = vshll.u32 %v290, 16
      %v379 = vrot.slane %v377, 5
      %v380 = vsel %vm308, %v375, %v379
      %v382 = vshrl.u32 %v291, 16
      %v384 = vrot.slane %v382, 4
      %v385 = vshll.u32 %v291, 16
      %v387 = vrot.slane %v385, 5
      %v388 = vor.u32 %v384, %v387
      %v389 = vrot.slane %v388, 4
      %v391 = vshll.u32 %v292, 16
      %v393 = vrot.slane %v391, 5
      %v394 = vsel %vm308, %v389, %v393
      %v395 = vshrl.u32 %v292, 16
      %v397 = vrot.slane %v395, 4
      %v398 = vor.u32 %v397, %v393
      %v399 = vrot.slane %v398, 4
      %v401 = vshll.u32 %v293, 16
      %v403 = vrot.slane %v401, 5
      %v404 = vsel %vm308, %v399, %v403
      %v406 = vshrl.u32 %v294, 16
      %v408 = vrot.slane %v406, 4
      %v409 = vshll.u32 %v294, 16
      %v411 = vrot.slane %v409, 5
      %v412 = vor.u32 %v408, %v411
      %v413 = vrot.slane %v412, 4
      %v415 = vshll.u32 %v295, 16
      %v417 = vrot.slane %v415, 5
      %v418 = vsel %vm308, %v413, %v417
      %v419 = vshrl.u32 %v295, 16
      %v421 = vrot.slane %v419, 4
      %v422 = vor.u32 %v421, %v417
      %v423 = vrot.slane %v422, 4
      %v425 = vshll.u32 %v296, 16
      %v427 = vrot.slane %v425, 5
      %v428 = vsel %vm308, %v423, %v427
      %v430 = vshrl.u32 %v297, 16
      %v432 = vrot.slane %v430, 4
      %v433 = vshll.u32 %v297, 16
      %v435 = vrot.slane %v433, 5
      %v436 = vor.u32 %v432, %v435
      %v437 = vrot.slane %v436, 4
      %v439 = vshll.u32 %v298, 16
      %v441 = vrot.slane %v439, 5
      %v442 = vsel %vm308, %v437, %v441
      %v443 = vshrl.u32 %v298, 16
      %v445 = vrot.slane %v443, 4
      %v446 = vor.u32 %v445, %v441
      %v447 = vrot.slane %v446, 4
      %v449 = vshll.u32 %v299, 16
      %v451 = vrot.slane %v449, 5
      %v452 = vsel %vm308, %v447, %v451
      %v454 = vshrl.u32 %v300, 16
      %v456 = vrot.slane %v454, 4
      %v457 = vshll.u32 %v300, 16
      %v459 = vrot.slane %v457, 5
      %v460 = vor.u32 %v456, %v459
      %v461 = vrot.slane %v460, 4
      %v463 = vshll.u32 %v301, 16
      %v465 = vrot.slane %v463, 5
      %v466 = vsel %vm308, %v461, %v465
      %v467 = vshrl.u32 %v301, 16
      %v469 = vrot.slane %v467, 4
      %v470 = vor.u32 %v469, %v465
      %v471 = vrot.slane %v470, 4
      %v473 = vshll.u32 %v302, 16
      %v475 = vrot.slane %v473, 5
      %v476 = vsel %vm308, %v471, %v475
      %v478 = vshrl.u32 %v303, 16
      %v480 = vrot.slane %v478, 4
      %v481 = vshll.u32 %v303, 16
      %v483 = vrot.slane %v481, 5
      %v484 = vor.u32 %v480, %v483
      %v485 = vrot.slane %v484, 4
      %v487 = vshll.u32 %v304, 16
      %v489 = vrot.slane %v487, 5
      %v490 = vsel %vm308, %v485, %v489
      %v491 = vshrl.u32 %v304, 16
      %v493 = vrot.slane %v491, 4
      %v494 = vor.u32 %v493, %v489
      %v495 = vrot.slane %v494, 4
      %v497 = vshll.u32 %v305, 16
      %v499 = vrot.slane %v497, 5
      %v500 = vsel %vm308, %v495, %v499
      %501 = vrot.lane.b32.xlu0 %v322, 8
      %v502 = vpop.permute.xlu0 %501
      %503 = vrot.lane.b32.xlu0 %v332, 8
      %v504 = vpop.permute.xlu0 %503
      %505 = vrot.lane.b32.xlu0 %v346, 8
      %v506 = vpop.permute.xlu0 %505
      %507 = vrot.lane.b32.xlu0 %v356, 8
      %v508 = vpop.permute.xlu0 %507
      %509 = vrot.lane.b32.xlu0 %v370, 8
      %v510 = vpop.permute.xlu0 %509
      %511 = vrot.lane.b32.xlu0 %v380, 8
      %v512 = vpop.permute.xlu0 %511
      %513 = vrot.lane.b32.xlu0 %v394, 8
      %v514 = vpop.permute.xlu0 %513
      %515 = vrot.lane.b32.xlu0 %v404, 8
      %v516 = vpop.permute.xlu0 %515
      %517 = vrot.lane.b32.xlu0 %v418, 8
      %v518 = vpop.permute.xlu0 %517
      %519 = vrot.lane.b32.xlu0 %v428, 8
      %v520 = vpop.permute.xlu0 %519
      %521 = vrot.lane.b32.xlu0 %v442, 8
      %v522 = vpop.permute.xlu0 %521
      %523 = vrot.lane.b32.xlu0 %v452, 8
      %v524 = vpop.permute.xlu0 %523
      %525 = vrot.lane.b32.xlu0 %v466, 8
      %v526 = vpop.permute.xlu0 %525
      %527 = vrot.lane.b32.xlu0 %v476, 8
      %v528 = vpop.permute.xlu0 %527
      %529 = vrot.lane.b32.xlu0 %v490, 8
      %v530 = vpop.permute.xlu0 %529
      %531 = vrot.lane.b32.xlu0 %v500, 8
      %v532 = vpop.permute.xlu0 %531
      %vm549 = vcmask 126016
      %550 = vst.msk [vmem:[#allocation2] sm:$0xf] %vm549, %v502
      %551 = vst.msk [vmem:[#allocation2 + $0x4] sm:$0xf] %vm549, %v504
      %552 = vst.msk [vmem:[#allocation2 + $0x8] sm:$0xf] %vm549, %v506
      %553 = vst.msk [vmem:[#allocation2 + $0xc] sm:$0xf] %vm549, %v508
      %554 = vst.msk [vmem:[#allocation2 + $0x10] sm:$0xf] %vm549, %v510
      %555 = vst.msk [vmem:[#allocation2 + $0x14] sm:$0xf] %vm549, %v512
      %556 = vst.msk [vmem:[#allocation2 + $0x18] sm:$0xf] %vm549, %v514
      %557 = vst.msk [vmem:[#allocation2 + $0x1c] sm:$0xf] %vm549, %v516
      %558 = vst.msk [vmem:[#allocation2 + $0x20] sm:$0xf] %vm549, %v518
      %559 = vst.msk [vmem:[#allocation2 + $0x24] sm:$0xf] %vm549, %v520
      %560 = vst.msk [vmem:[#allocation2 + $0x28] sm:$0xf] %vm549, %v522
      %561 = vst.msk [vmem:[#allocation2 + $0x2c] sm:$0xf] %vm549, %v524
      %562 = vst.msk [vmem:[#allocation2 + $0x30] sm:$0xf] %vm549, %v526
      %563 = vst.msk [vmem:[#allocation2 + $0x34] sm:$0xf] %vm549, %v528
      %564 = vst.msk [vmem:[#allocation2 + $0x38] sm:$0xf] %vm549, %v530
      %565 = vst.msk [vmem:[#allocation2 + $0x3c] sm:$0xf] %vm549, %v532
      %v566 = vld [vmem:[%s248] sm:$0xe]
      %v567 = vld [vmem:[%s248 + $0x4] sm:$0xf]
      %v568 = vld [vmem:[%s248 + $0x8] sm:$0x1]
      %v569 = vld [vmem:[%s248 + $0xc] sm:$0xe]
      %v570 = vld [vmem:[%s248 + $0x10] sm:$0xf]
      %v571 = vld [vmem:[%s248 + $0x14] sm:$0x1]
      %v572 = vld [vmem:[%s248 + $0x18] sm:$0xe]
      %v573 = vld [vmem:[%s248 + $0x1c] sm:$0xf]
      %v574 = vld [vmem:[%s248 + $0x20] sm:$0x1]
      %v575 = vld [vmem:[%s248 + $0x24] sm:$0xe]
      %v576 = vld [vmem:[%s248 + $0x28] sm:$0xf]
      %v577 = vld [vmem:[%s248 + $0x2c] sm:$0x1]
      %v578 = vld [vmem:[%s248 + $0x30] sm:$0xe]
      %v579 = vld [vmem:[%s248 + $0x34] sm:$0xf]
      %v580 = vld [vmem:[%s248 + $0x38] sm:$0x1]
      %v581 = vld [vmem:[%s248 + $0x3c] sm:$0xe]
      %v582 = vld [vmem:[%s248 + $0x40] sm:$0xf]
      %v583 = vld [vmem:[%s248 + $0x44] sm:$0x1]
      %v584 = vld [vmem:[%s248 + $0x48] sm:$0xe]
      %v585 = vld [vmem:[%s248 + $0x4c] sm:$0xf]
      %v586 = vld [vmem:[%s248 + $0x50] sm:$0x1]
      %v587 = vld [vmem:[%s248 + $0x54] sm:$0xe]
      %v588 = vld [vmem:[%s248 + $0x58] sm:$0xf]
      %v589 = vld [vmem:[%s248 + $0x5c] sm:$0x1]
      %vm614 = vcmask 1042432
      %vm615 = vcmask 1046532
      %vm616 = vmor %vm614, %vm615
      %v617 = vrot.slane %v566, 5
      %v618 = vrot.slane %v617, 4
      %v619 = vrot.slane %v567, 5
      %v620 = vsel %vm616, %v618, %v619
      %v621 = vrot.slane %v619, 4
      %v622 = vrot.slane %v568, 5
      %v623 = vsel %vm616, %v621, %v622
      %v624 = vrot.slane %v569, 5
      %v625 = vrot.slane %v624, 4
      %v626 = vrot.slane %v570, 5
      %v627 = vsel %vm616, %v625, %v626
      %v628 = vrot.slane %v626, 4
      %v629 = vrot.slane %v571, 5
      %v630 = vsel %vm616, %v628, %v629
      %v631 = vrot.slane %v572, 5
      %v632 = vrot.slane %v631, 4
      %v633 = vrot.slane %v573, 5
      %v634 = vsel %vm616, %v632, %v633
      %v635 = vrot.slane %v633, 4
      %v636 = vrot.slane %v574, 5
      %v637 = vsel %vm616, %v635, %v636
      %v638 = vrot.slane %v575, 5
      %v639 = vrot.slane %v638, 4
      %v640 = vrot.slane %v576, 5
      %v641 = vsel %vm616, %v639, %v640
      %v642 = vrot.slane %v640, 4
      %v643 = vrot.slane %v577, 5
      %v644 = vsel %vm616, %v642, %v643
      %v645 = vrot.slane %v578, 5
      %v646 = vrot.slane %v645, 4
      %v647 = vrot.slane %v579, 5
      %v648 = vsel %vm616, %v646, %v647
      %v649 = vrot.slane %v647, 4
      %v650 = vrot.slane %v580, 5
      %v651 = vsel %vm616, %v649, %v650
      %v652 = vrot.slane %v581, 5
      %v653 = vrot.slane %v652, 4
      %v654 = vrot.slane %v582, 5
      %v655 = vsel %vm616, %v653, %v654
      %v656 = vrot.slane %v654, 4
      %v657 = vrot.slane %v583, 5
      %v658 = vsel %vm616, %v656, %v657
      %v659 = vrot.slane %v584, 5
      %v660 = vrot.slane %v659, 4
      %v661 = vrot.slane %v585, 5
      %v662 = vsel %vm616, %v660, %v661
      %v663 = vrot.slane %v661, 4
      %v664 = vrot.slane %v586, 5
      %v665 = vsel %vm616, %v663, %v664
      %v666 = vrot.slane %v587, 5
      %v667 = vrot.slane %v666, 4
      %v668 = vrot.slane %v588, 5
      %v669 = vsel %vm616, %v667, %v668
      %v670 = vrot.slane %v668, 4
      %v671 = vrot.slane %v589, 5
      %v672 = vsel %vm616, %v670, %v671
      %673 = vrot.lane.b32.xlu0 %v620, 16
      %v674 = vpop.permute.xlu0 %673
      %675 = vrot.lane.b32.xlu0 %v623, 16
      %v676 = vpop.permute.xlu0 %675
      %677 = vrot.lane.b32.xlu0 %v627, 16
      %v678 = vpop.permute.xlu0 %677
      %679 = vrot.lane.b32.xlu0 %v630, 16
      %v680 = vpop.permute.xlu0 %679
      %681 = vrot.lane.b32.xlu0 %v634, 16
      %v682 = vpop.permute.xlu0 %681
      %683 = vrot.lane.b32.xlu0 %v637, 16
      %v684 = vpop.permute.xlu0 %683
      %685 = vrot.lane.b32.xlu0 %v641, 16
      %v686 = vpop.permute.xlu0 %685
      %687 = vrot.lane.b32.xlu0 %v644, 16
      %v688 = vpop.permute.xlu0 %687
      %689 = vrot.lane.b32.xlu0 %v648, 16
      %v690 = vpop.permute.xlu0 %689
      %691 = vrot.lane.b32.xlu0 %v651, 16
      %v692 = vpop.permute.xlu0 %691
      %693 = vrot.lane.b32.xlu0 %v655, 16
      %v694 = vpop.permute.xlu0 %693
      %695 = vrot.lane.b32.xlu0 %v658, 16
      %v696 = vpop.permute.xlu0 %695
      %697 = vrot.lane.b32.xlu0 %v662, 16
      %v698 = vpop.permute.xlu0 %697
      %699 = vrot.lane.b32.xlu0 %v665, 16
      %v700 = vpop.permute.xlu0 %699
      %701 = vrot.lane.b32.xlu0 %v669, 16
      %v702 = vpop.permute.xlu0 %701
      %703 = vrot.lane.b32.xlu0 %v672, 16
      %v704 = vpop.permute.xlu0 %703
      %vm721 = vcmask 191616
      %722 = vst.msk [vmem:[#allocation2] sm:$0xf] %vm721, %v674
      %723 = vst.msk [vmem:[#allocation2 + $0x4] sm:$0xf] %vm721, %v676
      %724 = vst.msk [vmem:[#allocation2 + $0x8] sm:$0xf] %vm721, %v678
      %725 = vst.msk [vmem:[#allocation2 + $0xc] sm:$0xf] %vm721, %v680
      %726 = vst.msk [vmem:[#allocation2 + $0x10] sm:$0xf] %vm721, %v682
      %727 = vst.msk [vmem:[#allocation2 + $0x14] sm:$0xf] %vm721, %v684
      %728 = vst.msk [vmem:[#allocation2 + $0x18] sm:$0xf] %vm721, %v686
      %729 = vst.msk [vmem:[#allocation2 + $0x1c] sm:$0xf] %vm721, %v688
      %730 = vst.msk [vmem:[#allocation2 + $0x20] sm:$0xf] %vm721, %v690
      %731 = vst.msk [vmem:[#allocation2 + $0x24] sm:$0xf] %vm721, %v692
      %732 = vst.msk [vmem:[#allocation2 + $0x28] sm:$0xf] %vm721, %v694
      %733 = vst.msk [vmem:[#allocation2 + $0x2c] sm:$0xf] %vm721, %v696
      %734 = vst.msk [vmem:[#allocation2 + $0x30] sm:$0xf] %vm721, %v698
      %735 = vst.msk [vmem:[#allocation2 + $0x34] sm:$0xf] %vm721, %v700
      %736 = vst.msk [vmem:[#allocation2 + $0x38] sm:$0xf] %vm721, %v702
      %737 = vst.msk [vmem:[#allocation2 + $0x3c] sm:$0xf] %vm721, %v704
      %s738 = sadd.s32 %s245, 1
      %s739 = smul.u32 %s738, 3
      %s740 = smul.addr %s739, 4
      %s741 = scalar_lea.vmem %s224, %s740
      %v742 = vld [vmem:[%s741] sm:$0xf]
      %v743 = vld [vmem:[%s741 + $0x4] sm:$0xf]
      %v744 = vld [vmem:[%s741 + $0xc] sm:$0xf]
      %v745 = vld [vmem:[%s741 + $0x10] sm:$0xf]
      %v746 = vld [vmem:[%s741 + $0x18] sm:$0xf]
      %v747 = vld [vmem:[%s741 + $0x1c] sm:$0xf]
      %v748 = vld [vmem:[%s741 + $0x24] sm:$0xf]
      %v749 = vld [vmem:[%s741 + $0x28] sm:$0xf]
      %v750 = vld [vmem:[%s741 + $0x30] sm:$0xf]
      %v751 = vld [vmem:[%s741 + $0x34] sm:$0xf]
      %v752 = vld [vmem:[%s741 + $0x3c] sm:$0xf]
      %v753 = vld [vmem:[%s741 + $0x40] sm:$0xf]
      %v754 = vld [vmem:[%s741 + $0x48] sm:$0xf]
      %v755 = vld [vmem:[%s741 + $0x4c] sm:$0xf]
      %v756 = vld [vmem:[%s741 + $0x54] sm:$0xf]
      %v757 = vld [vmem:[%s741 + $0x58] sm:$0xf]
      %774 = vrot.lane.b32.xlu0 %v742, 24
      %v775 = vpop.permute.xlu0 %774
      %776 = vrot.lane.b32.xlu0 %v743, 24
      %v777 = vpop.permute.xlu0 %776
      %778 = vrot.lane.b32.xlu0 %v744, 24
      %v779 = vpop.permute.xlu0 %778
      %780 = vrot.lane.b32.xlu0 %v745, 24
      %v781 = vpop.permute.xlu0 %780
      %782 = vrot.lane.b32.xlu0 %v746, 24
      %v783 = vpop.permute.xlu0 %782
      %784 = vrot.lane.b32.xlu0 %v747, 24
      %v785 = vpop.permute.xlu0 %784
      %786 = vrot.lane.b32.xlu0 %v748, 24
      %v787 = vpop.permute.xlu0 %786
      %788 = vrot.lane.b32.xlu0 %v749, 24
      %v789 = vpop.permute.xlu0 %788
      %790 = vrot.lane.b32.xlu0 %v750, 24
      %v791 = vpop.permute.xlu0 %790
      %792 = vrot.lane.b32.xlu0 %v751, 24
      %v793 = vpop.permute.xlu0 %792
      %794 = vrot.lane.b32.xlu0 %v752, 24
      %v795 = vpop.permute.xlu0 %794
      %796 = vrot.lane.b32.xlu0 %v753, 24
      %v797 = vpop.permute.xlu0 %796
      %798 = vrot.lane.b32.xlu0 %v754, 24
      %v799 = vpop.permute.xlu0 %798
      %800 = vrot.lane.b32.xlu0 %v755, 24
      %v801 = vpop.permute.xlu0 %800
      %802 = vrot.lane.b32.xlu0 %v756, 24
      %v803 = vpop.permute.xlu0 %802
      %804 = vrot.lane.b32.xlu0 %v757, 24
      %v805 = vpop.permute.xlu0 %804
      %vm822 = vcmask 257216
      %823 = vst.msk [vmem:[#allocation2] sm:$0xf] %vm822, %v775
      %824 = vst.msk [vmem:[#allocation2 + $0x4] sm:$0xf] %vm822, %v777
      %825 = vst.msk [vmem:[#allocation2 + $0x8] sm:$0xf] %vm822, %v779
      %826 = vst.msk [vmem:[#allocation2 + $0xc] sm:$0xf] %vm822, %v781
      %827 = vst.msk [vmem:[#allocation2 + $0x10] sm:$0xf] %vm822, %v783
      %828 = vst.msk [vmem:[#allocation2 + $0x14] sm:$0xf] %vm822, %v785
      %829 = vst.msk [vmem:[#allocation2 + $0x18] sm:$0xf] %vm822, %v787
      %830 = vst.msk [vmem:[#allocation2 + $0x1c] sm:$0xf] %vm822, %v789
      %831 = vst.msk [vmem:[#allocation2 + $0x20] sm:$0xf] %vm822, %v791
      %832 = vst.msk [vmem:[#allocation2 + $0x24] sm:$0xf] %vm822, %v793
      %833 = vst.msk [vmem:[#allocation2 + $0x28] sm:$0xf] %vm822, %v795
      %834 = vst.msk [vmem:[#allocation2 + $0x2c] sm:$0xf] %vm822, %v797
      %835 = vst.msk [vmem:[#allocation2 + $0x30] sm:$0xf] %vm822, %v799
      %836 = vst.msk [vmem:[#allocation2 + $0x34] sm:$0xf] %vm822, %v801
      %837 = vst.msk [vmem:[#allocation2 + $0x38] sm:$0xf] %vm822, %v803
      %838 = vst.msk [vmem:[#allocation2 + $0x3c] sm:$0xf] %vm822, %v805
      %v839 = vld [vmem:[%s741] sm:$0xf]
      %v840 = vld [vmem:[%s741 + $0x4] sm:$0xf]
      %v841 = vld [vmem:[%s741 + $0x8] sm:$0x1]
      %v842 = vld [vmem:[%s741 + $0xc] sm:$0xf]
      %v843 = vld [vmem:[%s741 + $0x10] sm:$0xf]
      %v844 = vld [vmem:[%s741 + $0x14] sm:$0x1]
      %v845 = vld [vmem:[%s741 + $0x18] sm:$0xf]
      %v846 = vld [vmem:[%s741 + $0x1c] sm:$0xf]
      %v847 = vld [vmem:[%s741 + $0x20] sm:$0x1]
      %v848 = vld [vmem:[%s741 + $0x24] sm:$0xf]
      %v849 = vld [vmem:[%s741 + $0x28] sm:$0xf]
      %v850 = vld [vmem:[%s741 + $0x2c] sm:$0x1]
      %v851 = vld [vmem:[%s741 + $0x30] sm:$0xf]
      %v852 = vld [vmem:[%s741 + $0x34] sm:$0xf]
      %v853 = vld [vmem:[%s741 + $0x38] sm:$0x1]
      %v854 = vld [vmem:[%s741 + $0x3c] sm:$0xf]
      %v855 = vld [vmem:[%s741 + $0x40] sm:$0xf]
      %v856 = vld [vmem:[%s741 + $0x44] sm:$0x1]
      %v857 = vld [vmem:[%s741 + $0x48] sm:$0xf]
      %v858 = vld [vmem:[%s741 + $0x4c] sm:$0xf]
      %v859 = vld [vmem:[%s741 + $0x50] sm:$0x1]
      %v860 = vld [vmem:[%s741 + $0x54] sm:$0xf]
      %v861 = vld [vmem:[%s741 + $0x58] sm:$0xf]
      %v862 = vld [vmem:[%s741 + $0x5c] sm:$0x1]
      %v864 = vshrl.u32 %v839, 16
      %v866 = vrot.slane %v864, 4
      %v867 = vshll.u32 %v839, 16
      %v869 = vrot.slane %v867, 5
      %v870 = vor.u32 %v866, %v869
      %v871 = vrot.slane %v870, 4
      %v873 = vshll.u32 %v840, 16
      %v875 = vrot.slane %v873, 5
      %v876 = vsel %vm308, %v871, %v875
      %v877 = vshrl.u32 %v840, 16
      %v879 = vrot.slane %v877, 4
      %v880 = vor.u32 %v879, %v875
      %v881 = vrot.slane %v880, 4
      %v883 = vshll.u32 %v841, 16
      %v885 = vrot.slane %v883, 5
      %v886 = vsel %vm308, %v881, %v885
      %v888 = vshrl.u32 %v842, 16
      %v890 = vrot.slane %v888, 4
      %v891 = vshll.u32 %v842, 16
      %v893 = vrot.slane %v891, 5
      %v894 = vor.u32 %v890, %v893
      %v895 = vrot.slane %v894, 4
      %v897 = vshll.u32 %v843, 16
      %v899 = vrot.slane %v897, 5
      %v900 = vsel %vm308, %v895, %v899
      %v901 = vshrl.u32 %v843, 16
      %v903 = vrot.slane %v901, 4
      %v904 = vor.u32 %v903, %v899
      %v905 = vrot.slane %v904, 4
      %v907 = vshll.u32 %v844, 16
      %v909 = vrot.slane %v907, 5
      %v910 = vsel %vm308, %v905, %v909
      %v912 = vshrl.u32 %v845, 16
      %v914 = vrot.slane %v912, 4
      %v915 = vshll.u32 %v845, 16
      %v917 = vrot.slane %v915, 5
      %v918 = vor.u32 %v914, %v917
      %v919 = vrot.slane %v918, 4
      %v921 = vshll.u32 %v846, 16
      %v923 = vrot.slane %v921, 5
      %v924 = vsel %vm308, %v919, %v923
      %v925 = vshrl.u32 %v846, 16
      %v927 = vrot.slane %v925, 4
      %v928 = vor.u32 %v927, %v923
      %v929 = vrot.slane %v928, 4
      %v931 = vshll.u32 %v847, 16
      %v933 = vrot.slane %v931, 5
      %v934 = vsel %vm308, %v929, %v933
      %v936 = vshrl.u32 %v848, 16
      %v938 = vrot.slane %v936, 4
      %v939 = vshll.u32 %v848, 16
      %v941 = vrot.slane %v939, 5
      %v942 = vor.u32 %v938, %v941
      %v943 = vrot.slane %v942, 4
      %v945 = vshll.u32 %v849, 16
      %v947 = vrot.slane %v945, 5
      %v948 = vsel %vm308, %v943, %v947
      %v949 = vshrl.u32 %v849, 16
      %v951 = vrot.slane %v949, 4
      %v952 = vor.u32 %v951, %v947
      %v953 = vrot.slane %v952, 4
      %v955 = vshll.u32 %v850, 16
      %v957 = vrot.slane %v955, 5
      %v958 = vsel %vm308, %v953, %v957
      %v960 = vshrl.u32 %v851, 16
      %v962 = vrot.slane %v960, 4
      %v963 = vshll.u32 %v851, 16
      %v965 = vrot.slane %v963, 5
      %v966 = vor.u32 %v962, %v965
      %v967 = vrot.slane %v966, 4
      %v969 = vshll.u32 %v852, 16
      %v971 = vrot.slane %v969, 5
      %v972 = vsel %vm308, %v967, %v971
      %v973 = vshrl.u32 %v852, 16
      %v975 = vrot.slane %v973, 4
      %v976 = vor.u32 %v975, %v971
      %v977 = vrot.slane %v976, 4
      %v979 = vshll.u32 %v853, 16
      %v981 = vrot.slane %v979, 5
      %v982 = vsel %vm308, %v977, %v981
      %v984 = vshrl.u32 %v854, 16
      %v986 = vrot.slane %v984, 4
      %v987 = vshll.u32 %v854, 16
      %v989 = vrot.slane %v987, 5
      %v990 = vor.u32 %v986, %v989
      %v991 = vrot.slane %v990, 4
      %v993 = vshll.u32 %v855, 16
      %v995 = vrot.slane %v993, 5
      %v996 = vsel %vm308, %v991, %v995
      %v997 = vshrl.u32 %v855, 16
      %v999 = vrot.slane %v997, 4
      %v1000 = vor.u32 %v999, %v995
      %v1001 = vrot.slane %v1000, 4
      %v1003 = vshll.u32 %v856, 16
      %v1005 = vrot.slane %v1003, 5
      %v1006 = vsel %vm308, %v1001, %v1005
      %v1008 = vshrl.u32 %v857, 16
      %v1010 = vrot.slane %v1008, 4
      %v1011 = vshll.u32 %v857, 16
      %v1013 = vrot.slane %v1011, 5
      %v1014 = vor.u32 %v1010, %v1013
      %v1015 = vrot.slane %v1014, 4
      %v1017 = vshll.u32 %v858, 16
      %v1019 = vrot.slane %v1017, 5
      %v1020 = vsel %vm308, %v1015, %v1019
      %v1021 = vshrl.u32 %v858, 16
      %v1023 = vrot.slane %v1021, 4
      %v1024 = vor.u32 %v1023, %v1019
      %v1025 = vrot.slane %v1024, 4
      %v1027 = vshll.u32 %v859, 16
      %v1029 = vrot.slane %v1027, 5
      %v1030 = vsel %vm308, %v1025, %v1029
      %v1032 = vshrl.u32 %v860, 16
      %v1034 = vrot.slane %v1032, 4
      %v1035 = vshll.u32 %v860, 16
      %v1037 = vrot.slane %v1035, 5
      %v1038 = vor.u32 %v1034, %v1037
      %v1039 = vrot.slane %v1038, 4
      %v1041 = vshll.u32 %v861, 16
      %v1043 = vrot.slane %v1041, 5
      %v1044 = vsel %vm308, %v1039, %v1043
      %v1045 = vshrl.u32 %v861, 16
      %v1047 = vrot.slane %v1045, 4
      %v1048 = vor.u32 %v1047, %v1043
      %v1049 = vrot.slane %v1048, 4
      %v1051 = vshll.u32 %v862, 16
      %v1053 = vrot.slane %v1051, 5
      %v1054 = vsel %vm308, %v1049, %v1053
      %1055 = vrot.lane.b32.xlu0 %v876, 32
      %v1056 = vpop.permute.xlu0 %1055
      %1057 = vrot.lane.b32.xlu0 %v886, 32
      %v1058 = vpop.permute.xlu0 %1057
      %1059 = vrot.lane.b32.xlu0 %v900, 32
      %v1060 = vpop.permute.xlu0 %1059
      %1061 = vrot.lane.b32.xlu0 %v910, 32
      %v1062 = vpop.permute.xlu0 %1061
      %1063 = vrot.lane.b32.xlu0 %v924, 32
      %v1064 = vpop.permute.xlu0 %1063
      %1065 = vrot.lane.b32.xlu0 %v934, 32
      %v1066 = vpop.permute.xlu0 %1065
      %1067 = vrot.lane.b32.xlu0 %v948, 32
      %v1068 = vpop.permute.xlu0 %1067
      %1069 = vrot.lane.b32.xlu0 %v958, 32
      %v1070 = vpop.permute.xlu0 %1069
      %1071 = vrot.lane.b32.xlu0 %v972, 32
      %v1072 = vpop.permute.xlu0 %1071
      %1073 = vrot.lane.b32.xlu0 %v982, 32
      %v1074 = vpop.permute.xlu0 %1073
      %1075 = vrot.lane.b32.xlu0 %v996, 32
      %v1076 = vpop.permute.xlu0 %1075
      %1077 = vrot.lane.b32.xlu0 %v1006, 32
      %v1078 = vpop.permute.xlu0 %1077
      %1079 = vrot.lane.b32.xlu0 %v1020, 32
      %v1080 = vpop.permute.xlu0 %1079
      %1081 = vrot.lane.b32.xlu0 %v1030, 32
      %v1082 = vpop.permute.xlu0 %1081
      %1083 = vrot.lane.b32.xlu0 %v1044, 32
      %v1084 = vpop.permute.xlu0 %1083
      %1085 = vrot.lane.b32.xlu0 %v1054, 32
      %v1086 = vpop.permute.xlu0 %1085
      %vm1103 = vcmask 322816
      %1104 = vst.msk [vmem:[#allocation2] sm:$0xf] %vm1103, %v1056
      %1105 = vst.msk [vmem:[#allocation2 + $0x4] sm:$0xf] %vm1103, %v1058
      %1106 = vst.msk [vmem:[#allocation2 + $0x8] sm:$0xf] %vm1103, %v1060
      %1107 = vst.msk [vmem:[#allocation2 + $0xc] sm:$0xf] %vm1103, %v1062
      %1108 = vst.msk [vmem:[#allocation2 + $0x10] sm:$0xf] %vm1103, %v1064
      %1109 = vst.msk [vmem:[#allocation2 + $0x14] sm:$0xf] %vm1103, %v1066
      %1110 = vst.msk [vmem:[#allocation2 + $0x18] sm:$0xf] %vm1103, %v1068
      %1111 = vst.msk [vmem:[#allocation2 + $0x1c] sm:$0xf] %vm1103, %v1070
      %1112 = vst.msk [vmem:[#allocation2 + $0x20] sm:$0xf] %vm1103, %v1072
      %1113 = vst.msk [vmem:[#allocation2 + $0x24] sm:$0xf] %vm1103, %v1074
      %1114 = vst.msk [vmem:[#allocation2 + $0x28] sm:$0xf] %vm1103, %v1076
      %1115 = vst.msk [vmem:[#allocation2 + $0x2c] sm:$0xf] %vm1103, %v1078
      %1116 = vst.msk [vmem:[#allocation2 + $0x30] sm:$0xf] %vm1103, %v1080
      %1117 = vst.msk [vmem:[#allocation2 + $0x34] sm:$0xf] %vm1103, %v1082
      %1118 = vst.msk [vmem:[#allocation2 + $0x38] sm:$0xf] %vm1103, %v1084
      %1119 = vst.msk [vmem:[#allocation2 + $0x3c] sm:$0xf] %vm1103, %v1086
      %v1120 = vld [vmem:[%s741] sm:$0xe]
      %v1121 = vld [vmem:[%s741 + $0x4] sm:$0xf]
      %v1122 = vld [vmem:[%s741 + $0x8] sm:$0x1]
      %v1123 = vld [vmem:[%s741 + $0xc] sm:$0xe]
      %v1124 = vld [vmem:[%s741 + $0x10] sm:$0xf]
      %v1125 = vld [vmem:[%s741 + $0x14] sm:$0x1]
      %v1126 = vld [vmem:[%s741 + $0x18] sm:$0xe]
      %v1127 = vld [vmem:[%s741 + $0x1c] sm:$0xf]
      %v1128 = vld [vmem:[%s741 + $0x20] sm:$0x1]
      %v1129 = vld [vmem:[%s741 + $0x24] sm:$0xe]
      %v1130 = vld [vmem:[%s741 + $0x28] sm:$0xf]
      %v1131 = vld [vmem:[%s741 + $0x2c] sm:$0x1]
      %v1132 = vld [vmem:[%s741 + $0x30] sm:$0xe]
      %v1133 = vld [vmem:[%s741 + $0x34] sm:$0xf]
      %v1134 = vld [vmem:[%s741 + $0x38] sm:$0x1]
      %v1135 = vld [vmem:[%s741 + $0x3c] sm:$0xe]
      %v1136 = vld [vmem:[%s741 + $0x40] sm:$0xf]
      %v1137 = vld [vmem:[%s741 + $0x44] sm:$0x1]
      %v1138 = vld [vmem:[%s741 + $0x48] sm:$0xe]
      %v1139 = vld [vmem:[%s741 + $0x4c] sm:$0xf]
      %v1140 = vld [vmem:[%s741 + $0x50] sm:$0x1]
      %v1141 = vld [vmem:[%s741 + $0x54] sm:$0xe]
      %v1142 = vld [vmem:[%s741 + $0x58] sm:$0xf]
      %v1143 = vld [vmem:[%s741 + $0x5c] sm:$0x1]
      %v1168 = vrot.slane %v1120, 5
      %v1169 = vrot.slane %v1168, 4
      %v1170 = vrot.slane %v1121, 5
      %v1171 = vsel %vm616, %v1169, %v1170
      %v1172 = vrot.slane %v1170, 4
      %v1173 = vrot.slane %v1122, 5
      %v1174 = vsel %vm616, %v1172, %v1173
      %v1175 = vrot.slane %v1123, 5
      %v1176 = vrot.slane %v1175, 4
      %v1177 = vrot.slane %v1124, 5
      %v1178 = vsel %vm616, %v1176, %v1177
      %v1179 = vrot.slane %v1177, 4
      %v1180 = vrot.slane %v1125, 5
      %v1181 = vsel %vm616, %v1179, %v1180
      %v1182 = vrot.slane %v1126, 5
      %v1183 = vrot.slane %v1182, 4
      %v1184 = vrot.slane %v1127, 5
      %v1185 = vsel %vm616, %v1183, %v1184
      %v1186 = vrot.slane %v1184, 4
      %v1187 = vrot.slane %v1128, 5
      %v1188 = vsel %vm616, %v1186, %v1187
      %v1189 = vrot.slane %v1129, 5
      %v1190 = vrot.slane %v1189, 4
      %v1191 = vrot.slane %v1130, 5
      %v1192 = vsel %vm616, %v1190, %v1191
      %v1193 = vrot.slane %v1191, 4
      %v1194 = vrot.slane %v1131, 5
      %v1195 = vsel %vm616, %v1193, %v1194
      %v1196 = vrot.slane %v1132, 5
      %v1197 = vrot.slane %v1196, 4
      %v1198 = vrot.slane %v1133, 5
      %v1199 = vsel %vm616, %v1197, %v1198
      %v1200 = vrot.slane %v1198, 4
      %v1201 = vrot.slane %v1134, 5
      %v1202 = vsel %vm616, %v1200, %v1201
      %v1203 = vrot.slane %v1135, 5
      %v1204 = vrot.slane %v1203, 4
      %v1205 = vrot.slane %v1136, 5
      %v1206 = vsel %vm616, %v1204, %v1205
      %v1207 = vrot.slane %v1205, 4
      %v1208 = vrot.slane %v1137, 5
      %v1209 = vsel %vm616, %v1207, %v1208
      %v1210 = vrot.slane %v1138, 5
      %v1211 = vrot.slane %v1210, 4
      %v1212 = vrot.slane %v1139, 5
      %v1213 = vsel %vm616, %v1211, %v1212
      %v1214 = vrot.slane %v1212, 4
      %v1215 = vrot.slane %v1140, 5
      %v1216 = vsel %vm616, %v1214, %v1215
      %v1217 = vrot.slane %v1141, 5
      %v1218 = vrot.slane %v1217, 4
      %v1219 = vrot.slane %v1142, 5
      %v1220 = vsel %vm616, %v1218, %v1219
      %v1221 = vrot.slane %v1219, 4
      %v1222 = vrot.slane %v1143, 5
      %v1223 = vsel %vm616, %v1221, %v1222
      %1224 = vrot.lane.b32.xlu0 %v1171, 40
      %v1225 = vpop.permute.xlu0 %1224
      %1226 = vrot.lane.b32.xlu0 %v1174, 40
      %v1227 = vpop.permute.xlu0 %1226
      %1228 = vrot.lane.b32.xlu0 %v1178, 40
      %v1229 = vpop.permute.xlu0 %1228
      %1230 = vrot.lane.b32.xlu0 %v1181, 40
      %v1231 = vpop.permute.xlu0 %1230
      %1232 = vrot.lane.b32.xlu0 %v1185, 40
      %v1233 = vpop.permute.xlu0 %1232
      %1234 = vrot.lane.b32.xlu0 %v1188, 40
      %v1235 = vpop.permute.xlu0 %1234
      %1236 = vrot.lane.b32.xlu0 %v1192, 40
      %v1237 = vpop.permute.xlu0 %1236
      %1238 = vrot.lane.b32.xlu0 %v1195, 40
      %v1239 = vpop.permute.xlu0 %1238
      %1240 = vrot.lane.b32.xlu0 %v1199, 40
      %v1241 = vpop.permute.xlu0 %1240
      %1242 = vrot.lane.b32.xlu0 %v1202, 40
      %v1243 = vpop.permute.xlu0 %1242
      %1244 = vrot.lane.b32.xlu0 %v1206, 40
      %v1245 = vpop.permute.xlu0 %1244
      %1246 = vrot.lane.b32.xlu0 %v1209, 40
      %v1247 = vpop.permute.xlu0 %1246
      %1248 = vrot.lane.b32.xlu0 %v1213, 40
      %v1249 = vpop.permute.xlu0 %1248
      %1250 = vrot.lane.b32.xlu0 %v1216, 40
      %v1251 = vpop.permute.xlu0 %1250
      %1252 = vrot.lane.b32.xlu0 %v1220, 40
      %v1253 = vpop.permute.xlu0 %1252
      %1254 = vrot.lane.b32.xlu0 %v1223, 40
      %v1255 = vpop.permute.xlu0 %1254
      %vm1272 = vcmask 388416
      %1273 = vst.msk [vmem:[#allocation2] sm:$0xf] %vm1272, %v1225
      %1274 = vst.msk [vmem:[#allocation2 + $0x4] sm:$0xf] %vm1272, %v1227
      %1275 = vst.msk [vmem:[#allocation2 + $0x8] sm:$0xf] %vm1272, %v1229
      %1276 = vst.msk [vmem:[#allocation2 + $0xc] sm:$0xf] %vm1272, %v1231
      %1277 = vst.msk [vmem:[#allocation2 + $0x10] sm:$0xf] %vm1272, %v1233
      %1278 = vst.msk [vmem:[#allocation2 + $0x14] sm:$0xf] %vm1272, %v1235
      %1279 = vst.msk [vmem:[#allocation2 + $0x18] sm:$0xf] %vm1272, %v1237
      %1280 = vst.msk [vmem:[#allocation2 + $0x1c] sm:$0xf] %vm1272, %v1239
      %1281 = vst.msk [vmem:[#allocation2 + $0x20] sm:$0xf] %vm1272, %v1241
      %1282 = vst.msk [vmem:[#allocation2 + $0x24] sm:$0xf] %vm1272, %v1243
      %1283 = vst.msk [vmem:[#allocation2 + $0x28] sm:$0xf] %vm1272, %v1245
      %1284 = vst.msk [vmem:[#allocation2 + $0x2c] sm:$0xf] %vm1272, %v1247
      %1285 = vst.msk [vmem:[#allocation2 + $0x30] sm:$0xf] %vm1272, %v1249
      %1286 = vst.msk [vmem:[#allocation2 + $0x34] sm:$0xf] %vm1272, %v1251
      %1287 = vst.msk [vmem:[#allocation2 + $0x38] sm:$0xf] %vm1272, %v1253
      %1288 = vst.msk [vmem:[#allocation2 + $0x3c] sm:$0xf] %vm1272, %v1255
      %s1289 = sadd.s32 %s245, 2
      %s1290 = smul.u32 %s1289, 3
      %s1291 = smul.addr %s1290, 4
      %s1292 = scalar_lea.vmem %s224, %s1291
      %v1293 = vld [vmem:[%s1292] sm:$0xf]
      %v1294 = vld [vmem:[%s1292 + $0x4] sm:$0xf]
      %v1295 = vld [vmem:[%s1292 + $0xc] sm:$0xf]
      %v1296 = vld [vmem:[%s1292 + $0x10] sm:$0xf]
      %v1297 = vld [vmem:[%s1292 + $0x18] sm:$0xf]
      %v1298 = vld [vmem:[%s1292 + $0x1c] sm:$0xf]
      %v1299 = vld [vmem:[%s1292 + $0x24] sm:$0xf]
      %v1300 = vld [vmem:[%s1292 + $0x28] sm:$0xf]
      %v1301 = vld [vmem:[%s1292 + $0x30] sm:$0xf]
      %v1302 = vld [vmem:[%s1292 + $0x34] sm:$0xf]
      %v1303 = vld [vmem:[%s1292 + $0x3c] sm:$0xf]
      %v1304 = vld [vmem:[%s1292 + $0x40] sm:$0xf]
      %v1305 = vld [vmem:[%s1292 + $0x48] sm:$0xf]
      %v1306 = vld [vmem:[%s1292 + $0x4c] sm:$0xf]
      %v1307 = vld [vmem:[%s1292 + $0x54] sm:$0xf]
      %v1308 = vld [vmem:[%s1292 + $0x58] sm:$0xf]
      %1325 = vrot.lane.b32.xlu0 %v1293, 48
      %v1326 = vpop.permute.xlu0 %1325
      %1327 = vrot.lane.b32.xlu0 %v1294, 48
      %v1328 = vpop.permute.xlu0 %1327
      %1329 = vrot.lane.b32.xlu0 %v1295, 48
      %v1330 = vpop.permute.xlu0 %1329
      %1331 = vrot.lane.b32.xlu0 %v1296, 48
      %v1332 = vpop.permute.xlu0 %1331
      %1333 = vrot.lane.b32.xlu0 %v1297, 48
      %v1334 = vpop.permute.xlu0 %1333
      %1335 = vrot.lane.b32.xlu0 %v1298, 48
      %v1336 = vpop.permute.xlu0 %1335
      %1337 = vrot.lane.b32.xlu0 %v1299, 48
      %v1338 = vpop.permute.xlu0 %1337
      %1339 = vrot.lane.b32.xlu0 %v1300, 48
      %v1340 = vpop.permute.xlu0 %1339
      %1341 = vrot.lane.b32.xlu0 %v1301, 48
      %v1342 = vpop.permute.xlu0 %1341
      %1343 = vrot.lane.b32.xlu0 %v1302, 48
      %v1344 = vpop.permute.xlu0 %1343
      %1345 = vrot.lane.b32.xlu0 %v1303, 48
      %v1346 = vpop.permute.xlu0 %1345
      %1347 = vrot.lane.b32.xlu0 %v1304, 48
      %v1348 = vpop.permute.xlu0 %1347
      %1349 = vrot.lane.b32.xlu0 %v1305, 48
      %v1350 = vpop.permute.xlu0 %1349
      %1351 = vrot.lane.b32.xlu0 %v1306, 48
      %v1352 = vpop.permute.xlu0 %1351
      %1353 = vrot.lane.b32.xlu0 %v1307, 48
      %v1354 = vpop.permute.xlu0 %1353
      %1355 = vrot.lane.b32.xlu0 %v1308, 48
      %v1356 = vpop.permute.xlu0 %1355
      %vm1373 = vcmask 454016
      %1374 = vst.msk [vmem:[#allocation2] sm:$0xf] %vm1373, %v1326
      %1375 = vst.msk [vmem:[#allocation2 + $0x4] sm:$0xf] %vm1373, %v1328
      %1376 = vst.msk [vmem:[#allocation2 + $0x8] sm:$0xf] %vm1373, %v1330
      %1377 = vst.msk [vmem:[#allocation2 + $0xc] sm:$0xf] %vm1373, %v1332
      %1378 = vst.msk [vmem:[#allocation2 + $0x10] sm:$0xf] %vm1373, %v1334
      %1379 = vst.msk [vmem:[#allocation2 + $0x14] sm:$0xf] %vm1373, %v1336
      %1380 = vst.msk [vmem:[#allocation2 + $0x18] sm:$0xf] %vm1373, %v1338
      %1381 = vst.msk [vmem:[#allocation2 + $0x1c] sm:$0xf] %vm1373, %v1340
      %1382 = vst.msk [vmem:[#allocation2 + $0x20] sm:$0xf] %vm1373, %v1342
      %1383 = vst.msk [vmem:[#allocation2 + $0x24] sm:$0xf] %vm1373, %v1344
      %1384 = vst.msk [vmem:[#allocation2 + $0x28] sm:$0xf] %vm1373, %v1346
      %1385 = vst.msk [vmem:[#allocation2 + $0x2c] sm:$0xf] %vm1373, %v1348
      %1386 = vst.msk [vmem:[#allocation2 + $0x30] sm:$0xf] %vm1373, %v1350
      %1387 = vst.msk [vmem:[#allocation2 + $0x34] sm:$0xf] %vm1373, %v1352
      %1388 = vst.msk [vmem:[#allocation2 + $0x38] sm:$0xf] %vm1373, %v1354
      %1389 = vst.msk [vmem:[#allocation2 + $0x3c] sm:$0xf] %vm1373, %v1356
      %v1390 = vld [vmem:[%s1292] sm:$0xf]
      %v1391 = vld [vmem:[%s1292 + $0x4] sm:$0xf]
      %v1392 = vld [vmem:[%s1292 + $0x8] sm:$0x1]
      %v1393 = vld [vmem:[%s1292 + $0xc] sm:$0xf]
      %v1394 = vld [vmem:[%s1292 + $0x10] sm:$0xf]
      %v1395 = vld [vmem:[%s1292 + $0x14] sm:$0x1]
      %v1396 = vld [vmem:[%s1292 + $0x18] sm:$0xf]
      %v1397 = vld [vmem:[%s1292 + $0x1c] sm:$0xf]
      %v1398 = vld [vmem:[%s1292 + $0x20] sm:$0x1]
      %v1399 = vld [vmem:[%s1292 + $0x24] sm:$0xf]
      %v1400 = vld [vmem:[%s1292 + $0x28] sm:$0xf]
      %v1401 = vld [vmem:[%s1292 + $0x2c] sm:$0x1]
      %v1402 = vld [vmem:[%s1292 + $0x30] sm:$0xf]
      %v1403 = vld [vmem:[%s1292 + $0x34] sm:$0xf]
      %v1404 = vld [vmem:[%s1292 + $0x38] sm:$0x1]
      %v1405 = vld [vmem:[%s1292 + $0x3c] sm:$0xf]
      %v1406 = vld [vmem:[%s1292 + $0x40] sm:$0xf]
      %v1407 = vld [vmem:[%s1292 + $0x44] sm:$0x1]
      %v1408 = vld [vmem:[%s1292 + $0x48] sm:$0xf]
      %v1409 = vld [vmem:[%s1292 + $0x4c] sm:$0xf]
      %v1410 = vld [vmem:[%s1292 + $0x50] sm:$0x1]
      %v1411 = vld [vmem:[%s1292 + $0x54] sm:$0xf]
      %v1412 = vld [vmem:[%s1292 + $0x58] sm:$0xf]
      %v1413 = vld [vmem:[%s1292 + $0x5c] sm:$0x1]
      %v1415 = vshrl.u32 %v1390, 16
      %v1417 = vrot.slane %v1415, 4
      %v1418 = vshll.u32 %v1390, 16
      %v1420 = vrot.slane %v1418, 5
      %v1421 = vor.u32 %v1417, %v1420
      %v1422 = vrot.slane %v1421, 4
      %v1424 = vshll.u32 %v1391, 16
      %v1426 = vrot.slane %v1424, 5
      %v1427 = vsel %vm308, %v1422, %v1426
      %v1428 = vshrl.u32 %v1391, 16
      %v1430 = vrot.slane %v1428, 4
      %v1431 = vor.u32 %v1430, %v1426
      %v1432 = vrot.slane %v1431, 4
      %v1434 = vshll.u32 %v1392, 16
      %v1436 = vrot.slane %v1434, 5
      %v1437 = vsel %vm308, %v1432, %v1436
      %v1439 = vshrl.u32 %v1393, 16
      %v1441 = vrot.slane %v1439, 4
      %v1442 = vshll.u32 %v1393, 16
      %v1444 = vrot.slane %v1442, 5
      %v1445 = vor.u32 %v1441, %v1444
      %v1446 = vrot.slane %v1445, 4
      %v1448 = vshll.u32 %v1394, 16
      %v1450 = vrot.slane %v1448, 5
      %v1451 = vsel %vm308, %v1446, %v1450
      %v1452 = vshrl.u32 %v1394, 16
      %v1454 = vrot.slane %v1452, 4
      %v1455 = vor.u32 %v1454, %v1450
      %v1456 = vrot.slane %v1455, 4
      %v1458 = vshll.u32 %v1395, 16
      %v1460 = vrot.slane %v1458, 5
      %v1461 = vsel %vm308, %v1456, %v1460
      %v1463 = vshrl.u32 %v1396, 16
      %v1465 = vrot.slane %v1463, 4
      %v1466 = vshll.u32 %v1396, 16
      %v1468 = vrot.slane %v1466, 5
      %v1469 = vor.u32 %v1465, %v1468
      %v1470 = vrot.slane %v1469, 4
      %v1472 = vshll.u32 %v1397, 16
      %v1474 = vrot.slane %v1472, 5
      %v1475 = vsel %vm308, %v1470, %v1474
      %v1476 = vshrl.u32 %v1397, 16
      %v1478 = vrot.slane %v1476, 4
      %v1479 = vor.u32 %v1478, %v1474
      %v1480 = vrot.slane %v1479, 4
      %v1482 = vshll.u32 %v1398, 16
      %v1484 = vrot.slane %v1482, 5
      %v1485 = vsel %vm308, %v1480, %v1484
      %v1487 = vshrl.u32 %v1399, 16
      %v1489 = vrot.slane %v1487, 4
      %v1490 = vshll.u32 %v1399, 16
      %v1492 = vrot.slane %v1490, 5
      %v1493 = vor.u32 %v1489, %v1492
      %v1494 = vrot.slane %v1493, 4
      %v1496 = vshll.u32 %v1400, 16
      %v1498 = vrot.slane %v1496, 5
      %v1499 = vsel %vm308, %v1494, %v1498
      %v1500 = vshrl.u32 %v1400, 16
      %v1502 = vrot.slane %v1500, 4
      %v1503 = vor.u32 %v1502, %v1498
      %v1504 = vrot.slane %v1503, 4
      %v1506 = vshll.u32 %v1401, 16
      %v1508 = vrot.slane %v1506, 5
      %v1509 = vsel %vm308, %v1504, %v1508
      %v1511 = vshrl.u32 %v1402, 16
      %v1513 = vrot.slane %v1511, 4
      %v1514 = vshll.u32 %v1402, 16
      %v1516 = vrot.slane %v1514, 5
      %v1517 = vor.u32 %v1513, %v1516
      %v1518 = vrot.slane %v1517, 4
      %v1520 = vshll.u32 %v1403, 16
      %v1522 = vrot.slane %v1520, 5
      %v1523 = vsel %vm308, %v1518, %v1522
      %v1524 = vshrl.u32 %v1403, 16
      %v1526 = vrot.slane %v1524, 4
      %v1527 = vor.u32 %v1526, %v1522
      %v1528 = vrot.slane %v1527, 4
      %v1530 = vshll.u32 %v1404, 16
      %v1532 = vrot.slane %v1530, 5
      %v1533 = vsel %vm308, %v1528, %v1532
      %v1535 = vshrl.u32 %v1405, 16
      %v1537 = vrot.slane %v1535, 4
      %v1538 = vshll.u32 %v1405, 16
      %v1540 = vrot.slane %v1538, 5
      %v1541 = vor.u32 %v1537, %v1540
      %v1542 = vrot.slane %v1541, 4
      %v1544 = vshll.u32 %v1406, 16
      %v1546 = vrot.slane %v1544, 5
      %v1547 = vsel %vm308, %v1542, %v1546
      %v1548 = vshrl.u32 %v1406, 16
      %v1550 = vrot.slane %v1548, 4
      %v1551 = vor.u32 %v1550, %v1546
      %v1552 = vrot.slane %v1551, 4
      %v1554 = vshll.u32 %v1407, 16
      %v1556 = vrot.slane %v1554, 5
      %v1557 = vsel %vm308, %v1552, %v1556
      %v1559 = vshrl.u32 %v1408, 16
      %v1561 = vrot.slane %v1559, 4
      %v1562 = vshll.u32 %v1408, 16
      %v1564 = vrot.slane %v1562, 5
      %v1565 = vor.u32 %v1561, %v1564
      %v1566 = vrot.slane %v1565, 4
      %v1568 = vshll.u32 %v1409, 16
      %v1570 = vrot.slane %v1568, 5
      %v1571 = vsel %vm308, %v1566, %v1570
      %v1572 = vshrl.u32 %v1409, 16
      %v1574 = vrot.slane %v1572, 4
      %v1575 = vor.u32 %v1574, %v1570
      %v1576 = vrot.slane %v1575, 4
      %v1578 = vshll.u32 %v1410, 16
      %v1580 = vrot.slane %v1578, 5
      %v1581 = vsel %vm308, %v1576, %v1580
      %v1583 = vshrl.u32 %v1411, 16
      %v1585 = vrot.slane %v1583, 4
      %v1586 = vshll.u32 %v1411, 16
      %v1588 = vrot.slane %v1586, 5
      %v1589 = vor.u32 %v1585, %v1588
      %v1590 = vrot.slane %v1589, 4
      %v1592 = vshll.u32 %v1412, 16
      %v1594 = vrot.slane %v1592, 5
      %v1595 = vsel %vm308, %v1590, %v1594
      %v1596 = vshrl.u32 %v1412, 16
      %v1598 = vrot.slane %v1596, 4
      %v1599 = vor.u32 %v1598, %v1594
      %v1600 = vrot.slane %v1599, 4
      %v1602 = vshll.u32 %v1413, 16
      %v1604 = vrot.slane %v1602, 5
      %v1605 = vsel %vm308, %v1600, %v1604
      %1606 = vrot.lane.b32.xlu0 %v1427, 56
      %v1607 = vpop.permute.xlu0 %1606
      %1608 = vrot.lane.b32.xlu0 %v1437, 56
      %v1609 = vpop.permute.xlu0 %1608
      %1610 = vrot.lane.b32.xlu0 %v1451, 56
      %v1611 = vpop.permute.xlu0 %1610
      %1612 = vrot.lane.b32.xlu0 %v1461, 56
      %v1613 = vpop.permute.xlu0 %1612
      %1614 = vrot.lane.b32.xlu0 %v1475, 56
      %v1615 = vpop.permute.xlu0 %1614
      %1616 = vrot.lane.b32.xlu0 %v1485, 56
      %v1617 = vpop.permute.xlu0 %1616
      %1618 = vrot.lane.b32.xlu0 %v1499, 56
      %v1619 = vpop.permute.xlu0 %1618
      %1620 = vrot.lane.b32.xlu0 %v1509, 56
      %v1621 = vpop.permute.xlu0 %1620
      %1622 = vrot.lane.b32.xlu0 %v1523, 56
      %v1623 = vpop.permute.xlu0 %1622
      %1624 = vrot.lane.b32.xlu0 %v1533, 56
      %v1625 = vpop.permute.xlu0 %1624
      %1626 = vrot.lane.b32.xlu0 %v1547, 56
      %v1627 = vpop.permute.xlu0 %1626
      %1628 = vrot.lane.b32.xlu0 %v1557, 56
      %v1629 = vpop.permute.xlu0 %1628
      %1630 = vrot.lane.b32.xlu0 %v1571, 56
      %v1631 = vpop.permute.xlu0 %1630
      %1632 = vrot.lane.b32.xlu0 %v1581, 56
      %v1633 = vpop.permute.xlu0 %1632
      %1634 = vrot.lane.b32.xlu0 %v1595, 56
      %v1635 = vpop.permute.xlu0 %1634
      %1636 = vrot.lane.b32.xlu0 %v1605, 56
      %v1637 = vpop.permute.xlu0 %1636
      %vm1654 = vcmask 519616
      %1655 = vst.msk [vmem:[#allocation2] sm:$0xf] %vm1654, %v1607
      %1656 = vst.msk [vmem:[#allocation2 + $0x4] sm:$0xf] %vm1654, %v1609
      %1657 = vst.msk [vmem:[#allocation2 + $0x8] sm:$0xf] %vm1654, %v1611
      %1658 = vst.msk [vmem:[#allocation2 + $0xc] sm:$0xf] %vm1654, %v1613
      %1659 = vst.msk [vmem:[#allocation2 + $0x10] sm:$0xf] %vm1654, %v1615
      %1660 = vst.msk [vmem:[#allocation2 + $0x14] sm:$0xf] %vm1654, %v1617
      %1661 = vst.msk [vmem:[#allocation2 + $0x18] sm:$0xf] %vm1654, %v1619
      %1662 = vst.msk [vmem:[#allocation2 + $0x1c] sm:$0xf] %vm1654, %v1621
      %1663 = vst.msk [vmem:[#allocation2 + $0x20] sm:$0xf] %vm1654, %v1623
      %1664 = vst.msk [vmem:[#allocation2 + $0x24] sm:$0xf] %vm1654, %v1625
      %1665 = vst.msk [vmem:[#allocation2 + $0x28] sm:$0xf] %vm1654, %v1627
      %1666 = vst.msk [vmem:[#allocation2 + $0x2c] sm:$0xf] %vm1654, %v1629
      %1667 = vst.msk [vmem:[#allocation2 + $0x30] sm:$0xf] %vm1654, %v1631
      %1668 = vst.msk [vmem:[#allocation2 + $0x34] sm:$0xf] %vm1654, %v1633
      %1669 = vst.msk [vmem:[#allocation2 + $0x38] sm:$0xf] %vm1654, %v1635
      %1670 = vst.msk [vmem:[#allocation2 + $0x3c] sm:$0xf] %vm1654, %v1637
      %v1671 = vld [vmem:[%s1292] sm:$0xe]
      %v1672 = vld [vmem:[%s1292 + $0x4] sm:$0xf]
      %v1673 = vld [vmem:[%s1292 + $0x8] sm:$0x1]
      %v1674 = vld [vmem:[%s1292 + $0xc] sm:$0xe]
      %v1675 = vld [vmem:[%s1292 + $0x10] sm:$0xf]
      %v1676 = vld [vmem:[%s1292 + $0x14] sm:$0x1]
      %v1677 = vld [vmem:[%s1292 + $0x18] sm:$0xe]
      %v1678 = vld [vmem:[%s1292 + $0x1c] sm:$0xf]
      %v1679 = vld [vmem:[%s1292 + $0x20] sm:$0x1]
      %v1680 = vld [vmem:[%s1292 + $0x24] sm:$0xe]
      %v1681 = vld [vmem:[%s1292 + $0x28] sm:$0xf]
      %v1682 = vld [vmem:[%s1292 + $0x2c] sm:$0x1]
      %v1683 = vld [vmem:[%s1292 + $0x30] sm:$0xe]
      %v1684 = vld [vmem:[%s1292 + $0x34] sm:$0xf]
      %v1685 = vld [vmem:[%s1292 + $0x38] sm:$0x1]
      %v1686 = vld [vmem:[%s1292 + $0x3c] sm:$0xe]
      %v1687 = vld [vmem:[%s1292 + $0x40] sm:$0xf]
      %v1688 = vld [vmem:[%s1292 + $0x44] sm:$0x1]
      %v1689 = vld [vmem:[%s1292 + $0x48] sm:$0xe]
      %v1690 = vld [vmem:[%s1292 + $0x4c] sm:$0xf]
      %v1691 = vld [vmem:[%s1292 + $0x50] sm:$0x1]
      %v1692 = vld [vmem:[%s1292 + $0x54] sm:$0xe]
      %v1693 = vld [vmem:[%s1292 + $0x58] sm:$0xf]
      %v1694 = vld [vmem:[%s1292 + $0x5c] sm:$0x1]
      %v1719 = vrot.slane %v1671, 5
      %v1720 = vrot.slane %v1719, 4
      %v1721 = vrot.slane %v1672, 5
      %v1722 = vsel %vm616, %v1720, %v1721
      %v1723 = vrot.slane %v1721, 4
      %v1724 = vrot.slane %v1673, 5
      %v1725 = vsel %vm616, %v1723, %v1724
      %v1726 = vrot.slane %v1674, 5
      %v1727 = vrot.slane %v1726, 4
      %v1728 = vrot.slane %v1675, 5
      %v1729 = vsel %vm616, %v1727, %v1728
      %v1730 = vrot.slane %v1728, 4
      %v1731 = vrot.slane %v1676, 5
      %v1732 = vsel %vm616, %v1730, %v1731
      %v1733 = vrot.slane %v1677, 5
      %v1734 = vrot.slane %v1733, 4
      %v1735 = vrot.slane %v1678, 5
      %v1736 = vsel %vm616, %v1734, %v1735
      %v1737 = vrot.slane %v1735, 4
      %v1738 = vrot.slane %v1679, 5
      %v1739 = vsel %vm616, %v1737, %v1738
      %v1740 = vrot.slane %v1680, 5
      %v1741 = vrot.slane %v1740, 4
      %v1742 = vrot.slane %v1681, 5
      %v1743 = vsel %vm616, %v1741, %v1742
      %v1744 = vrot.slane %v1742, 4
      %v1745 = vrot.slane %v1682, 5
      %v1746 = vsel %vm616, %v1744, %v1745
      %v1747 = vrot.slane %v1683, 5
      %v1748 = vrot.slane %v1747, 4
      %v1749 = vrot.slane %v1684, 5
      %v1750 = vsel %vm616, %v1748, %v1749
      %v1751 = vrot.slane %v1749, 4
      %v1752 = vrot.slane %v1685, 5
      %v1753 = vsel %vm616, %v1751, %v1752
      %v1754 = vrot.slane %v1686, 5
      %v1755 = vrot.slane %v1754, 4
      %v1756 = vrot.slane %v1687, 5
      %v1757 = vsel %vm616, %v1755, %v1756
      %v1758 = vrot.slane %v1756, 4
      %v1759 = vrot.slane %v1688, 5
      %v1760 = vsel %vm616, %v1758, %v1759
      %v1761 = vrot.slane %v1689, 5
      %v1762 = vrot.slane %v1761, 4
      %v1763 = vrot.slane %v1690, 5
      %v1764 = vsel %vm616, %v1762, %v1763
      %v1765 = vrot.slane %v1763, 4
      %v1766 = vrot.slane %v1691, 5
      %v1767 = vsel %vm616, %v1765, %v1766
      %v1768 = vrot.slane %v1692, 5
      %v1769 = vrot.slane %v1768, 4
      %v1770 = vrot.slane %v1693, 5
      %v1771 = vsel %vm616, %v1769, %v1770
      %v1772 = vrot.slane %v1770, 4
      %v1773 = vrot.slane %v1694, 5
      %v1774 = vsel %vm616, %v1772, %v1773
      %1775 = vrot.lane.b32.xlu0 %v1722, 64
      %v1776 = vpop.permute.xlu0 %1775
      %1777 = vrot.lane.b32.xlu0 %v1725, 64
      %v1778 = vpop.permute.xlu0 %1777
      %1779 = vrot.lane.b32.xlu0 %v1729, 64
      %v1780 = vpop.permute.xlu0 %1779
      %1781 = vrot.lane.b32.xlu0 %v1732, 64
      %v1782 = vpop.permute.xlu0 %1781
      %1783 = vrot.lane.b32.xlu0 %v1736, 64
      %v1784 = vpop.permute.xlu0 %1783
      %1785 = vrot.lane.b32.xlu0 %v1739, 64
      %v1786 = vpop.permute.xlu0 %1785
      %1787 = vrot.lane.b32.xlu0 %v1743, 64
      %v1788 = vpop.permute.xlu0 %1787
      %1789 = vrot.lane.b32.xlu0 %v1746, 64
      %v1790 = vpop.permute.xlu0 %1789
      %1791 = vrot.lane.b32.xlu0 %v1750, 64
      %v1792 = vpop.permute.xlu0 %1791
      %1793 = vrot.lane.b32.xlu0 %v1753, 64
      %v1794 = vpop.permute.xlu0 %1793
      %1795 = vrot.lane.b32.xlu0 %v1757, 64
      %v1796 = vpop.permute.xlu0 %1795
      %1797 = vrot.lane.b32.xlu0 %v1760, 64
      %v1798 = vpop.permute.xlu0 %1797
      %1799 = vrot.lane.b32.xlu0 %v1764, 64
      %v1800 = vpop.permute.xlu0 %1799
      %1801 = vrot.lane.b32.xlu0 %v1767, 64
      %v1802 = vpop.permute.xlu0 %1801
      %1803 = vrot.lane.b32.xlu0 %v1771, 64
      %v1804 = vpop.permute.xlu0 %1803
      %1805 = vrot.lane.b32.xlu0 %v1774, 64
      %v1806 = vpop.permute.xlu0 %1805
      %vm1823 = vcmask 585216
      %1824 = vst.msk [vmem:[#allocation2] sm:$0xf] %vm1823, %v1776
      %1825 = vst.msk [vmem:[#allocation2 + $0x4] sm:$0xf] %vm1823, %v1778
      %1826 = vst.msk [vmem:[#allocation2 + $0x8] sm:$0xf] %vm1823, %v1780
      %1827 = vst.msk [vmem:[#allocation2 + $0xc] sm:$0xf] %vm1823, %v1782
      %1828 = vst.msk [vmem:[#allocation2 + $0x10] sm:$0xf] %vm1823, %v1784
      %1829 = vst.msk [vmem:[#allocation2 + $0x14] sm:$0xf] %vm1823, %v1786
      %1830 = vst.msk [vmem:[#allocation2 + $0x18] sm:$0xf] %vm1823, %v1788
      %1831 = vst.msk [vmem:[#allocation2 + $0x1c] sm:$0xf] %vm1823, %v1790
      %1832 = vst.msk [vmem:[#allocation2 + $0x20] sm:$0xf] %vm1823, %v1792
      %1833 = vst.msk [vmem:[#allocation2 + $0x24] sm:$0xf] %vm1823, %v1794
      %1834 = vst.msk [vmem:[#allocation2 + $0x28] sm:$0xf] %vm1823, %v1796
      %1835 = vst.msk [vmem:[#allocation2 + $0x2c] sm:$0xf] %vm1823, %v1798
      %1836 = vst.msk [vmem:[#allocation2 + $0x30] sm:$0xf] %vm1823, %v1800
      %1837 = vst.msk [vmem:[#allocation2 + $0x34] sm:$0xf] %vm1823, %v1802
      %1838 = vst.msk [vmem:[#allocation2 + $0x38] sm:$0xf] %vm1823, %v1804
      %1839 = vst.msk [vmem:[#allocation2 + $0x3c] sm:$0xf] %vm1823, %v1806
      %v1840 = vld [vmem:[#allocation2] sm:$0xf]
      %v1841 = vld [vmem:[#allocation2 + $0x4] sm:$0xf]
      %v1842 = vld [vmem:[#allocation2 + $0x8] sm:$0xf]
      %v1843 = vld [vmem:[#allocation2 + $0xc] sm:$0xf]
      %v1844 = vld [vmem:[#allocation2 + $0x10] sm:$0xf]
      %v1845 = vld [vmem:[#allocation2 + $0x14] sm:$0xf]
      %v1846 = vld [vmem:[#allocation2 + $0x18] sm:$0xf]
      %v1847 = vld [vmem:[#allocation2 + $0x1c] sm:$0xf]
      %v1848 = vld [vmem:[#allocation2 + $0x20] sm:$0xf]
      %v1849 = vld [vmem:[#allocation2 + $0x24] sm:$0xf]
      %v1850 = vld [vmem:[#allocation2 + $0x28] sm:$0xf]
      %v1851 = vld [vmem:[#allocation2 + $0x2c] sm:$0xf]
      %v1852 = vld [vmem:[#allocation2 + $0x30] sm:$0xf]
      %v1853 = vld [vmem:[#allocation2 + $0x34] sm:$0xf]
      %v1854 = vld [vmem:[#allocation2 + $0x38] sm:$0xf]
      %v1855 = vld [vmem:[#allocation2 + $0x3c] sm:$0xf]
      %v1856 = vld [vmem:[%s1] sm:$0xf]
      %v1857 = vld [vmem:[%s1 + $0x4] sm:$0xf]
      %v1858 = vld [vmem:[%s1 + $0x8] sm:$0xf]
      %v1859 = vld [vmem:[%s1 + $0xc] sm:$0xf]
      %v1860 = vld [vmem:[%s1 + $0x10] sm:$0xf]
      %v1861 = vld [vmem:[%s1 + $0x14] sm:$0xf]
      %v1862 = vld [vmem:[%s1 + $0x18] sm:$0xf]
      %v1863 = vld [vmem:[%s1 + $0x1c] sm:$0xf]
      %v1864 = vld [vmem:[%s1 + $0x20] sm:$0xf]
      %v1865 = vld [vmem:[%s2] sm:$0x1]
      %v1867 = vlaneseq
      %v1868 = vshrl.u32 %v1867, 7
      %v1869 = vsub.s32 0, %v1868
      %v1870 = vrot.slane %v1865, %v1869
      %v1888 = vunpack.c.l.b16 %v1840
      %v1889 = vunpack.c.l.b16 %v1841
      %v1890 = vunpack.c.l.b16 %v1842
      %v1891 = vunpack.c.l.b16 %v1843
      %v1892 = vunpack.c.l.b16 %v1844
      %v1893 = vunpack.c.l.b16 %v1845
      %v1894 = vunpack.c.l.b16 %v1846
      %v1895 = vunpack.c.l.b16 %v1847
      %v1896 = vunpack.c.l.b16 %v1848
      %v1897 = vunpack.c.l.b16 %v1849
      %v1898 = vunpack.c.l.b16 %v1850
      %v1899 = vunpack.c.l.b16 %v1851
      %v1900 = vunpack.c.l.b16 %v1852
      %v1901 = vunpack.c.l.b16 %v1853
      %v1902 = vunpack.c.l.b16 %v1854
      %v1903 = vunpack.c.l.b16 %v1855
      %v1904 = vpack.c.b16 %v1889, %v1888
      %v1905 = vpack.c.b16 %v1891, %v1890
      %v1906 = vpack.c.b16 %v1893, %v1892
      %v1907 = vpack.c.b16 %v1895, %v1894
      %v1908 = vpack.c.b16 %v1897, %v1896
      %v1909 = vpack.c.b16 %v1899, %v1898
      %v1910 = vpack.c.b16 %v1901, %v1900
      %v1911 = vpack.c.b16 %v1903, %v1902
      %v1921 = vunpack.c.l.b16 %v1856
      %v1922 = vunpack.c.l.b16 %v1857
      %v1923 = vunpack.c.l.b16 %v1858
      %v1924 = vunpack.c.l.b16 %v1859
      %v1925 = vunpack.c.l.b16 %v1860
      %v1926 = vunpack.c.l.b16 %v1861
      %v1927 = vunpack.c.l.b16 %v1862
      %v1928 = vunpack.c.l.b16 %v1863
      %v1929 = vunpack.c.l.b16 %v1864
      %v1930 = vpack.c.b16 %v1922, %v1921
      %v1931 = vpack.c.b16 %v1924, %v1923
      %v1932 = vpack.c.b16 %v1926, %v1925
      %v1933 = vpack.c.b16 %v1928, %v1927
      %v1934 = vpack.c.b16 %v1929, %v1929
      %vm1939 = vcmask 588800
      %v1941 = vsel %vm1939, %v1904, 0
      %v1944 = vsel %vm1939, %v1905, 0
      %v1947 = vsel %vm1939, %v1906, 0
      %v1950 = vsel %vm1939, %v1907, 0
      %v1953 = vsel %vm1939, %v1908, 0
      %v1956 = vsel %vm1939, %v1909, 0
      %v1959 = vsel %vm1939, %v1910, 0
      %v1962 = vsel %vm1939, %v1911, 0
      %vm1964 = vcmask 1043456
      %v1966 = vsel %vm1964, %v1934, 0
      %1968 = vmatprep.subr.bf16.mxu0 0
      %1969 = vmatpush1.bf16.msra.mxu0 0
      %1970 = vmatprep.subr.bf16.mxu0 0
      %1971 = vmatpush1.bf16.msra.mxu0 0
      %1972 = vmatprep.subr.bf16.mxu0 0
      %1973 = vmatpush1.bf16.msra.mxu0 0
      %1974 = vmatprep.subr.bf16.mxu0 0
      %1975 = vmatpush1.bf16.msra.mxu0 %v1966
      %1976 = vmatprep.subr.bf16.mxu0 0
      %1977 = vmatpush1.bf16.msra.mxu0 %v1933
      %1978 = vmatprep.subr.bf16.mxu0 0
      %1979 = vmatpush1.bf16.msra.mxu0 %v1932
      %1980 = vmatprep.subr.bf16.mxu0 0
      %1981 = vmatpush1.bf16.msra.mxu0 %v1931
      %1982 = vmatprep.subr.bf16.mxu0 0
      %1983 = vmatpush1.bf16.msra.mxu0 %v1930
      %1984 = vmatprep.subr.bf16.mxu0 0
      %1985 = vmatpush2.bf16.msra.mxu0 0
      %1986 = vmatprep.subr.bf16.mxu0 0
      %1987 = vmatpush2.bf16.msra.mxu0 0
      %1988 = vmatprep.subr.bf16.mxu0 0
      %1989 = vmatpush2.bf16.msra.mxu0 0
      %1990 = vmatprep.subr.bf16.mxu0 0
      %1991 = vmatpush2.bf16.msra.mxu0 0
      %1992 = vmatprep.subr.bf16.mxu0 0
      %1993 = vmatpush2.bf16.msra.mxu0 0
      %1994 = vmatprep.subr.bf16.mxu0 0
      %1995 = vmatpush2.bf16.msra.mxu0 0
      %1996 = vmatprep.subr.bf16.mxu0 0
      %1997 = vmatpush2.bf16.msra.mxu0 0
      %1998 = vmatprep.subr.bf16.mxu0 0
      %1999 = vmatpush2.bf16.msra.mxu0 0
      %2000 = vmatprep.mubr.bf16.mxu0 0
      %2001 = vmatmul.mubr.bf16.gmra.mxu0 %v1941
      %v2002 = vpop.f32.mrf.mxu0
      %v2003 = vadd.f32 %v1870, %v2002
      %v2004 = vpop.f32.mrf.mxu0
      %v2005 = vpop.f32.mrf.mxu0
      %v2006 = vadd.f32 %v1870, %v2005
      %v2007 = vpop.f32.mrf.mxu0
      %2008 = vmatprep.mubr.bf16.mxu0 0
      %2009 = vmatmul.mubr.bf16.gmra.mxu0 %v1944
      %v2010 = vpop.f32.mrf.mxu0
      %v2011 = vadd.f32 %v1870, %v2010
      %v2012 = vpop.f32.mrf.mxu0
      %v2013 = vpop.f32.mrf.mxu0
      %v2014 = vadd.f32 %v1870, %v2013
      %v2015 = vpop.f32.mrf.mxu0
      %2016 = vmatprep.mubr.bf16.mxu0 0
      %2017 = vmatmul.mubr.bf16.gmra.mxu0 %v1947
      %v2018 = vpop.f32.mrf.mxu0
      %v2019 = vadd.f32 %v1870, %v2018
      %v2020 = vpop.f32.mrf.mxu0
      %v2021 = vpop.f32.mrf.mxu0
      %v2022 = vadd.f32 %v1870, %v2021
      %v2023 = vpop.f32.mrf.mxu0
      %2024 = vmatprep.mubr.bf16.mxu0 0
      %2025 = vmatmul.mubr.bf16.gmra.mxu0 %v1950
      %v2026 = vpop.f32.mrf.mxu0
      %v2027 = vadd.f32 %v1870, %v2026
      %v2028 = vpop.f32.mrf.mxu0
      %v2029 = vpop.f32.mrf.mxu0
      %v2030 = vadd.f32 %v1870, %v2029
      %v2031 = vpop.f32.mrf.mxu0
      %2032 = vmatprep.mubr.bf16.mxu0 0
      %2033 = vmatmul.mubr.bf16.gmra.mxu0 %v1953
      %v2034 = vpop.f32.mrf.mxu0
      %v2035 = vadd.f32 %v1870, %v2034
      %v2036 = vpop.f32.mrf.mxu0
      %v2037 = vpop.f32.mrf.mxu0
      %v2038 = vadd.f32 %v1870, %v2037
      %v2039 = vpop.f32.mrf.mxu0
      %2040 = vmatprep.mubr.bf16.mxu0 0
      %2041 = vmatmul.mubr.bf16.gmra.mxu0 %v1956
      %v2042 = vpop.f32.mrf.mxu0
      %v2043 = vadd.f32 %v1870, %v2042
      %v2044 = vpop.f32.mrf.mxu0
      %v2045 = vpop.f32.mrf.mxu0
      %v2046 = vadd.f32 %v1870, %v2045
      %v2047 = vpop.f32.mrf.mxu0
      %2048 = vmatprep.mubr.bf16.mxu0 0
      %2049 = vmatmul.mubr.bf16.gmra.mxu0 %v1959
      %v2050 = vpop.f32.mrf.mxu0
      %v2051 = vadd.f32 %v1870, %v2050
      %v2052 = vpop.f32.mrf.mxu0
      %v2053 = vpop.f32.mrf.mxu0
      %v2054 = vadd.f32 %v1870, %v2053
      %v2055 = vpop.f32.mrf.mxu0
      %2056 = vmatprep.mubr.bf16.mxu0 0
      %2057 = vmatmul.mubr.bf16.gmra.mxu0 %v1962
      %v2058 = vpop.f32.mrf.mxu0
      %v2059 = vadd.f32 %v1870, %v2058
      %v2060 = vpop.f32.mrf.mxu0
      %v2061 = vpop.f32.mrf.mxu0
      %v2062 = vadd.f32 %v1870, %v2061
      %v2063 = vpop.f32.mrf.mxu0
      %2064 = vdwg.mxu0
      %vm2065 = vcmask 64512
      %v2066 = vsel %vm2065, %v2003, 0.0
      %v2067 = vsel %vm2065, %v2006, 0.0
      %v2068 = vadd.f32 %v2066, %v2067
      %v2069 = vsel %vm2065, %v2011, 0.0
      %v2070 = vadd.f32 %v2068, %v2069
      %v2071 = vsel %vm2065, %v2014, 0.0
      %v2072 = vadd.f32 %v2070, %v2071
      %v2073 = vsel %vm2065, %v2019, 0.0
      %v2074 = vadd.f32 %v2072, %v2073
      %v2075 = vsel %vm2065, %v2022, 0.0
      %v2076 = vadd.f32 %v2074, %v2075
      %v2077 = vsel %vm2065, %v2027, 0.0
      %v2078 = vadd.f32 %v2076, %v2077
      %v2079 = vsel %vm2065, %v2030, 0.0
      %v2080 = vadd.f32 %v2078, %v2079
      %v2081 = vsel %vm2065, %v2035, 0.0
      %v2082 = vadd.f32 %v2080, %v2081
      %v2083 = vsel %vm2065, %v2038, 0.0
      %v2084 = vadd.f32 %v2082, %v2083
      %v2085 = vsel %vm2065, %v2043, 0.0
      %v2086 = vadd.f32 %v2084, %v2085
      %v2087 = vsel %vm2065, %v2046, 0.0
      %v2088 = vadd.f32 %v2086, %v2087
      %v2089 = vsel %vm2065, %v2051, 0.0
      %v2090 = vadd.f32 %v2088, %v2089
      %v2091 = vsel %vm2065, %v2054, 0.0
      %v2092 = vadd.f32 %v2090, %v2091
      %v2093 = vsel %vm2065, %v2059, 0.0
      %v2094 = vadd.f32 %v2092, %v2093
      %v2095 = vsel %vm2065, %v2062, 0.0
      %v2096 = vadd.f32 %v2094, %v2095
      %v2097 = vrot.slane %v2096, 4
      %v2098 = vadd.f32 %v2096, %v2097
      %v2099 = vrot.slane %v2098, 2
      %v2100 = vadd.f32 %v2098, %v2099
      %v2101 = vrot.slane %v2100, 1
      %v2102 = vadd.f32 %v2100, %v2101
      %vm2103 = vcmask 57344
      %2104 = vst.msk [vmem:[%s243] sm:$0x1] %vm2103, %v2102
      %v2105 = vmul.f32 %v2003, %v2003
      %v2106 = vmul.f32 %v2006, %v2006
      %v2107 = vmul.f32 %v2011, %v2011
      %v2108 = vmul.f32 %v2014, %v2014
      %v2109 = vmul.f32 %v2019, %v2019
      %v2110 = vmul.f32 %v2022, %v2022
      %v2111 = vmul.f32 %v2027, %v2027
      %v2112 = vmul.f32 %v2030, %v2030
      %v2113 = vmul.f32 %v2035, %v2035
      %v2114 = vmul.f32 %v2038, %v2038
      %v2115 = vmul.f32 %v2043, %v2043
      %v2116 = vmul.f32 %v2046, %v2046
      %v2117 = vmul.f32 %v2051, %v2051
      %v2118 = vmul.f32 %v2054, %v2054
      %v2119 = vmul.f32 %v2059, %v2059
      %v2120 = vmul.f32 %v2062, %v2062
      %v2121 = vsel %vm2065, %v2105, 0.0
      %v2122 = vsel %vm2065, %v2106, 0.0
      %v2123 = vadd.f32 %v2121, %v2122
      %v2124 = vsel %vm2065, %v2107, 0.0
      %v2125 = vadd.f32 %v2123, %v2124
      %v2126 = vsel %vm2065, %v2108, 0.0
      %v2127 = vadd.f32 %v2125, %v2126
      %v2128 = vsel %vm2065, %v2109, 0.0
      %v2129 = vadd.f32 %v2127, %v2128
      %v2130 = vsel %vm2065, %v2110, 0.0
      %v2131 = vadd.f32 %v2129, %v2130
      %v2132 = vsel %vm2065, %v2111, 0.0
      %v2133 = vadd.f32 %v2131, %v2132
      %v2134 = vsel %vm2065, %v2112, 0.0
      %v2135 = vadd.f32 %v2133, %v2134
      %v2136 = vsel %vm2065, %v2113, 0.0
      %v2137 = vadd.f32 %v2135, %v2136
      %v2138 = vsel %vm2065, %v2114, 0.0
      %v2139 = vadd.f32 %v2137, %v2138
      %v2140 = vsel %vm2065, %v2115, 0.0
      %v2141 = vadd.f32 %v2139, %v2140
      %v2142 = vsel %vm2065, %v2116, 0.0
      %v2143 = vadd.f32 %v2141, %v2142
      %v2144 = vsel %vm2065, %v2117, 0.0
      %v2145 = vadd.f32 %v2143, %v2144
      %v2146 = vsel %vm2065, %v2118, 0.0
      %v2147 = vadd.f32 %v2145, %v2146
      %v2148 = vsel %vm2065, %v2119, 0.0
      %v2149 = vadd.f32 %v2147, %v2148
      %v2150 = vsel %vm2065, %v2120, 0.0
      %v2151 = vadd.f32 %v2149, %v2150
      %v2152 = vrot.slane %v2151, 4
      %v2153 = vadd.f32 %v2151, %v2152
      %v2154 = vrot.slane %v2153, 2
      %v2155 = vadd.f32 %v2153, %v2154
      %v2156 = vrot.slane %v2155, 1
      %v2157 = vadd.f32 %v2155, %v2156
      %2158 = vst.msk [vmem:[%s243 + $0x1] sm:$0x1] %vm2103, %v2157
      %2159 = vst.msk [vmem:[%s234] sm:$0xff] %vm2065, %v2003
      %2160 = vst.msk [vmem:[%s234 + $0x8] sm:$0xff] %vm2065, %v2006
      %2161 = vst.msk [vmem:[%s234 + $0x10] sm:$0xff] %vm2065, %v2011
      %2162 = vst.msk [vmem:[%s234 + $0x18] sm:$0xff] %vm2065, %v2014
      %2163 = vst.msk [vmem:[%s234 + $0x20] sm:$0xff] %vm2065, %v2019
      %2164 = vst.msk [vmem:[%s234 + $0x28] sm:$0xff] %vm2065, %v2022
      %2165 = vst.msk [vmem:[%s234 + $0x30] sm:$0xff] %vm2065, %v2027
      %2166 = vst.msk [vmem:[%s234 + $0x38] sm:$0xff] %vm2065, %v2030
      %2167 = vst.msk [vmem:[%s234 + $0x40] sm:$0xff] %vm2065, %v2035
      %2168 = vst.msk [vmem:[%s234 + $0x48] sm:$0xff] %vm2065, %v2038
      %2169 = vst.msk [vmem:[%s234 + $0x50] sm:$0xff] %vm2065, %v2043
      %2170 = vst.msk [vmem:[%s234 + $0x58] sm:$0xff] %vm2065, %v2046
      %2171 = vst.msk [vmem:[%s234 + $0x60] sm:$0xff] %vm2065, %v2051
      %2172 = vst.msk [vmem:[%s234 + $0x68] sm:$0xff] %vm2065, %v2054
      %2173 = vst.msk [vmem:[%s234 + $0x70] sm:$0xff] %vm2065, %v2059
      %2174 = vst.msk [vmem:[%s234 + $0x78] sm:$0xff] %vm2065, %v2062
      %s2175 = smul.u32 8, %s21
      %p2176 = scmp.lt.s32.totalorder %s20, 1
      %s2177 = scalar_select %p2176, %s20, 1
      %p2178 = scmp.lt.s32.totalorder %s2175, 15
      %s2179 = scalar_select %p2178, %s2175, 15
      %s2180 = smul.addr %s2179, 2
      %s2181 = smul.addr %s2177, 32
      %s2182 = sadd.s32 %s2180, %s2181
      %s2183 = smul.addr %s2182, 8
      %s2184 = scalar_lea.vmem %s3, %s2183
      %p2185 = scmp.lt.s32.totalorder %s20, 1
      %s2186 = scalar_select %p2185, %s20, 1
      %p2187 = scmp.lt.s32.totalorder %s21, 1
      %s2188 = scalar_select %p2187, %s21, 1
      %s2189 = smul.addr %s2186, 2
      %s2190 = sadd.s32 %s2188, %s2189
      %s2191 = smul.addr %s2190, 2
      %s2192 = scalar_lea.vmem %s4, %s2191
      // Predicated region
      $region33: #{fcn_conv_forward.7} parent=31 // pred_check
        %p2193 = pneg %p116
      $region34: #{fcn_conv_forward.7} parent=31 // pred_check_branch
        %2195 = sbr.rel (%p2193) target = $region36
      $region35: #{fcn_conv_forward.7} parent=31 // pred_region
        %s2196 = smul.u32 8, %s21
      $region36: #{fcn_conv_forward.7} parent=31 // pred_fallthru
        _
      // Predicated region
      $region37: #{fcn_conv_forward.7} parent=31 // pred_check
        %p2197 = pneg %p144
      $region38: #{fcn_conv_forward.7} parent=31 // pred_check_branch
        %2199 = sbr.rel (%p2197) target = $region40
      $region39: #{fcn_conv_forward.7} parent=31 // pred_region
        _
      $region40: #{fcn_conv_forward.7} parent=31 // pred_fallthru
        _
    $region32: #{fcn_conv_forward.7} parent=5 // pred_fallthru
      _
    %p2200 = scmp.le.s32.totalorder 2, %s11
    // Predicated region
    $region41: #{fcn_conv_forward.7} parent=5 // pred_check
      %p2201 = pneg %p2200
    $region42: #{fcn_conv_forward.7} parent=5 // pred_check_branch
      %2203 = sbr.rel (%p2201) target = $region44
    $region43: #{fcn_conv_forward.7} parent=5 // pred_region
      %s2204 = ssub.s32 %s11, 2
      // Predicated region
      $region45: #{fcn_conv_forward.7} parent=43 // pred_check
        %p2205 = pneg %p122
      $region46: #{fcn_conv_forward.7} parent=43 // pred_check_branch
        %2207 = sbr.rel (%p2205) target = $region48
      $region47: #{fcn_conv_forward.7} parent=43 // pred_region
        %s2208 = smul.u32 8, %s23
        %p2209 = scmp.lt.s32.totalorder %s22, 1
        %s2210 = scalar_select %p2209, %s22, 1
        %p2211 = scmp.lt.s32.totalorder %s2208, 15
        %s2212 = scalar_select %p2211, %s2208, 15
        %s2213 = smul.addr %s2212, 2
        %s2214 = smul.addr %s2210, 32
        %s2215 = sadd.s32 %s2213, %s2214
        %s2216 = smul.addr %s2215, 8
        %s2217 = scalar_lea.vmem %s3, %s2216
      $region48: #{fcn_conv_forward.7} parent=43 // pred_fallthru
        _
      // Predicated region
      $region49: #{fcn_conv_forward.7} parent=43 // pred_check
        %p2218 = pneg %p150
      $region50: #{fcn_conv_forward.7} parent=43 // pred_check_branch
        %2220 = sbr.rel (%p2218) target = $region52
      $region51: #{fcn_conv_forward.7} parent=43 // pred_region
        %p2221 = scmp.lt.s32.totalorder %s22, 1
        %s2222 = scalar_select %p2221, %s22, 1
        %p2223 = scmp.lt.s32.totalorder %s23, 1
        %s2224 = scalar_select %p2223, %s23, 1
        %s2225 = smul.addr %s2222, 2
        %s2226 = sadd.s32 %s2224, %s2225
        %s2227 = smul.addr %s2226, 2
        %s2228 = scalar_lea.vmem %s4, %s2227
      $region52: #{fcn_conv_forward.7} parent=43 // pred_fallthru
        _
    $region44: #{fcn_conv_forward.7} parent=5 // pred_fallthru
      _
  $region6: #{fcn_conv_forward.7} parent=0 // loop_footer
    %s15 = sadd.s32 1, %s11
  $region7: #{fcn_conv_forward.7} parent=0 // loop_footer_branch
    %10 = sbr.rel target = $region3
  $region8: #{fcn_conv_forward.7} parent=0 // loop_exit
    _

// kernel: fcn_conv_forward.5
$region0: #{fcn_conv_forward.5}
  #allocation0 [shape = 'u32[]', space=smem, size = 0x4, offset = 0x4, fixed_abs, tag = 'smem constant byte address 0x4 - core index']
  #allocation1 [shape = 'u32[144,128]{1,0:T(1,128)}', space=vmem, size = 0x12000, scoped, tag = 'internal scratch']
  #allocation2 [shape = 'bf16[128,36]{1,0:T(8,128)(2,1)}', space=vmem, size = 0x8000, scoped, tag = 'scratch operand']
  %s0 = inlined_call_operand.vmem [shape: bf16[2,18,18,4], index: 0, kind: input, shape index: {}]
  %s1 = inlined_call_operand.vmem [shape: bf16[36,8], index: 1, kind: input, shape index: {}]
  %s2 = inlined_call_operand.vmem [shape: f32[1,8], index: 2, kind: input, shape index: {}]
  %s3 = inlined_call_operand.vmem [shape: f32[2,16,16,8], index: 3, kind: output, shape index: {0}]
  %s4 = inlined_call_operand.vmem [shape: f32[2,2,2,8], index: 4, kind: output, shape index: {1}]
  %5 = xla_tuple %s3, %s4
  %s6 = sld [smem:[#allocation0]]
  $region53: #{fcn_conv_forward.5} parent=0
    _
  %s8 = ssub.s32 1, %s6
  %s9 = scalar_select 0, %s8, %s6
  loop: start=0, step=1, limit=6
  $region2: #{fcn_conv_forward.5} parent=0 // loop_pre_header
    _
  $region3: #{fcn_conv_forward.5} parent=0 // loop_header
    %s11 = sphi 0, %s15
    %p12 = scmp.ge.s32.totalorder %s11, 6
    %s18 = sphi 0, %s30
    %s19 = sphi 0, %s26
    %s20 = sphi 0, %s18
    %s21 = sphi 0, %s19
    %s22 = sphi 0, %s20
    %s23 = sphi 0, %s21
    %s33 = sphi 0, %s35
    %s36 = sphi 0, %s33
    %s37 = sphi 0, %s36
    %s53 = sphi 0, %s37
    %s57 = sphi 0, %s57
    %s59 = sphi 0, %s57
    %s60 = sphi 0, %s59
    %s74 = sphi 0, %s60
    %s78 = sphi 0, %s78
    %s80 = sphi 0, %s78
    %s81 = sphi 0, %s80
    %s95 = sphi 0, %s81
    %s103 = sphi 0, %s105
    %s106 = sphi 0, %s103
    %s107 = sphi 0, %s106
    %s123 = sphi 0, %s107
    %s131 = sphi 0, %s133
    %s134 = sphi 0, %s131
    %s135 = sphi 0, %s134
    %s151 = sphi 0, %s135
  $region4: #{fcn_conv_forward.5} parent=0 // loop_header_branch
    %14 = sbr.rel (%p12) target = $region8
  $region5: #{fcn_conv_forward.5} parent=0 // loop_body
    %s16 = ssub.s32 %s11, 1
    %s17 = ssub.s32 %s11, 2
    %s24 = sadd.s32 1, %s19
    %p25 = scmp.ge.s32.totalorder %s24, 2
    %s26 = scalar_select %p25, 0, %s24
    %s27 = sadd.s32 1, %s18
    %s28 = scalar_select %p25, %s27, %s18
    %p29 = scmp.ge.s32.totalorder %s28, 2
    %s30 = scalar_select %p29, 0, %s28
    %s31 = ssub.s32 %s18, %s30
    %p32 = scmp.eq.s32.totalorder %s31, 0
    %s34 = sadd.s32 %s33, 1
    %s35 = scalar_select %p32, %s33, %s34
    %p38 = pneg %p32
    %p39 = scmp.eq.s32.totalorder %s11, 3
    %p40 = por %p38, %p39
    %p41 = scmp.ne.s32.totalorder %s33, %s36
    %p42 = scmp.eq.s32.totalorder %s11, 0
    %p43 = por %p41, %p42
    %p44 = scmp.ne.s32.totalorder %s33, %s36
    %p45 = scmp.eq.s32.totalorder %s16, 3
    %p46 = por %p44, %p45
    %p47 = scmp.ne.s32.totalorder %s36, %s37
    %p48 = scmp.eq.s32.totalorder %s16, 0
    %p49 = por %p47, %p48
    %p50 = scmp.ne.s32.totalorder %s36, %s37
    %p51 = scmp.eq.s32.totalorder %s17, 3
    %p52 = por %p50, %p51
    %p54 = scmp.ne.s32.totalorder %s37, %s53
    %p55 = scmp.eq.s32.totalorder %s17, 0
    %p56 = por %p54, %p55
    %s58 = sadd.s32 %s57, 1
    %p61 = scmp.eq.s32.totalorder %s11, 3
    %p62 = scmp.ne.s32.totalorder %s57, %s59
    %p63 = scmp.eq.s32.totalorder %s11, 0
    %p64 = por %p62, %p63
    %p65 = scmp.ne.s32.totalorder %s57, %s59
    %p66 = scmp.eq.s32.totalorder %s16, 3
    %p67 = por %p65, %p66
    %p68 = scmp.ne.s32.totalorder %s59, %s60
    %p69 = scmp.eq.s32.totalorder %s16, 0
    %p70 = por %p68, %p69
    %p71 = scmp.ne.s32.totalorder %s59, %s60
    %p72 = scmp.eq.s32.totalorder %s17, 3
    %p73 = por %p71, %p72
    %p75 = scmp.ne.s32.totalorder %s60, %s74
    %p76 = scmp.eq.s32.totalorder %s17, 0
    %p77 = por %p75, %p76
    %s79 = sadd.s32 %s78, 1
    %p82 = scmp.eq.s32.totalorder %s11, 3
    %p83 = scmp.ne.s32.totalorder %s78, %s80
    %p84 = scmp.eq.s32.totalorder %s11, 0
    %p85 = por %p83, %p84
    %p86 = scmp.ne.s32.totalorder %s78, %s80
    %p87 = scmp.eq.s32.totalorder %s16, 3
    %p88 = por %p86, %p87
    %p89 = scmp.ne.s32.totalorder %s80, %s81
    %p90 = scmp.eq.s32.totalorder %s16, 0
    %p91 = por %p89, %p90
    %p92 = scmp.ne.s32.totalorder %s80, %s81
    %p93 = scmp.eq.s32.totalorder %s17, 3
    %p94 = por %p92, %p93
    %p96 = scmp.ne.s32.totalorder %s81, %s95
    %p97 = scmp.eq.s32.totalorder %s17, 0
    %p98 = por %p96, %p97
    %s99 = ssub.s32 %s18, %s30
    %s100 = ssub.s32 %s19, %s26
    %s101 = sor.u32 %s99, %s100
    %p102 = scmp.eq.s32.totalorder %s101, 0
    %s104 = sadd.s32 %s103, 1
    %s105 = scalar_select %p102, %s103, %s104
    %p108 = pneg %p102
    %p109 = scmp.eq.s32.totalorder %s11, 3
    %p110 = por %p108, %p109
    %p111 = scmp.ne.s32.totalorder %s103, %s106
    %p112 = scmp.eq.s32.totalorder %s11, 0
    %p113 = por %p111, %p112
    %p114 = scmp.ne.s32.totalorder %s103, %s106
    %p115 = scmp.eq.s32.totalorder %s16, 3
    %p116 = por %p114, %p115
    %p117 = scmp.ne.s32.totalorder %s106, %s107
    %p118 = scmp.eq.s32.totalorder %s16, 0
    %p119 = por %p117, %p118
    %p120 = scmp.ne.s32.totalorder %s106, %s107
    %p121 = scmp.eq.s32.totalorder %s17, 3
    %p122 = por %p120, %p121
    %p124 = scmp.ne.s32.totalorder %s107, %s123
    %p125 = scmp.eq.s32.totalorder %s17, 0
    %p126 = por %p124, %p125
    %s127 = ssub.s32 %s18, %s30
    %s128 = ssub.s32 %s19, %s26
    %s129 = sor.u32 %s127, %s128
    %p130 = scmp.eq.s32.totalorder %s129, 0
    %s132 = sadd.s32 %s131, 1
    %s133 = scalar_select %p130, %s131, %s132
    %p136 = pneg %p130
    %p137 = scmp.eq.s32.totalorder %s11, 3
    %p138 = por %p136, %p137
    %p139 = scmp.ne.s32.totalorder %s131, %s134
    %p140 = scmp.eq.s32.totalorder %s11, 0
    %p141 = por %p139, %p140
    %p142 = scmp.ne.s32.totalorder %s131, %s134
    %p143 = scmp.eq.s32.totalorder %s16, 3
    %p144 = por %p142, %p143
    %p145 = scmp.ne.s32.totalorder %s134, %s135
    %p146 = scmp.eq.s32.totalorder %s16, 0
    %p147 = por %p145, %p146
    %p148 = scmp.ne.s32.totalorder %s134, %s135
    %p149 = scmp.eq.s32.totalorder %s17, 3
    %p150 = por %p148, %p149
    %p152 = scmp.ne.s32.totalorder %s135, %s151
    %p153 = scmp.eq.s32.totalorder %s17, 0
    %p154 = por %p152, %p153
    %p155 = scmp.le.s32.totalorder 1, %s11
    %p156 = scmp.lt.s32.totalorder %s11, 5
    %p157 = pnand %p155, %p156
    %p158 = pneg %p157
    // Predicated region
    $region9: #{fcn_conv_forward.5} parent=5 // pred_check
      _
    $region10: #{fcn_conv_forward.5} parent=5 // pred_check_branch
      %160 = sbr.rel (%p157) target = $region12
    $region11: #{fcn_conv_forward.5} parent=5 // pred_region
      %s161 = ssub.s32 %s11, 1
      // Predicated region
      $region13: #{fcn_conv_forward.5} parent=11 // pred_check
        %p162 = pneg %p70
      $region14: #{fcn_conv_forward.5} parent=11 // pred_check_branch
        %164 = sbr.rel (%p162) target = $region16
      $region15: #{fcn_conv_forward.5} parent=11 // pred_region
        _
      $region16: #{fcn_conv_forward.5} parent=11 // pred_fallthru
        _
      // Predicated region
      $region17: #{fcn_conv_forward.5} parent=11 // pred_check
        %p165 = pneg %p91
      $region18: #{fcn_conv_forward.5} parent=11 // pred_check_branch
        %167 = sbr.rel (%p165) target = $region20
      $region19: #{fcn_conv_forward.5} parent=11 // pred_region
        _
      $region20: #{fcn_conv_forward.5} parent=11 // pred_fallthru
        _
    $region12: #{fcn_conv_forward.5} parent=5 // pred_fallthru
      _
    %p168 = scmp.lt.s32.totalorder %s11, 4
    // Predicated region
    $region21: #{fcn_conv_forward.5} parent=5 // pred_check
      %p169 = pneg %p168
    $region22: #{fcn_conv_forward.5} parent=5 // pred_check_branch
      %171 = sbr.rel (%p169) target = $region24
    $region23: #{fcn_conv_forward.5} parent=5 // pred_region
      // Predicated region
      $region25: #{fcn_conv_forward.5} parent=23 // pred_check
        %p172 = pneg %p43
      $region26: #{fcn_conv_forward.5} parent=23 // pred_check_branch
        %174 = sbr.rel (%p172) target = $region28
      $region27: #{fcn_conv_forward.5} parent=23 // pred_region
        %p175 = scmp.lt.s32.totalorder %s18, 1
        %s176 = scalar_select %p175, %s18, 1
        %s177 = smul.addr %s176, 54
        %s178 = smul.addr %s177, 4
        %s179 = scalar_lea.vmem %s0, %s178
      $region28: #{fcn_conv_forward.5} parent=23 // pred_fallthru
        _
    $region24: #{fcn_conv_forward.5} parent=5 // pred_fallthru
      _
    %p180 = scmp.le.s32.totalorder 1, %s11
    %p181 = scmp.lt.s32.totalorder %s11, 5
    %p182 = pnand %p180, %p181
    %p183 = pneg %p182
    // Predicated region
    $region29: #{fcn_conv_forward.5} parent=5 // pred_check
      _
    $region30: #{fcn_conv_forward.5} parent=5 // pred_check_branch
      %185 = sbr.rel (%p182) target = $region32
    $region31: #{fcn_conv_forward.5} parent=5 // pred_region
      %s186 = ssub.s32 %s11, 1
      %p187 = scmp.lt.s32.totalorder %s20, 1
      %s188 = scalar_select %p187, %s20, 1
      %s189 = smul.addr %s188, 54
      %s190 = smul.addr %s189, 4
      %s191 = scalar_lea.vmem %s0, %s190
      %p192 = pneg %p49
      %p193 = pneg %p46
      %p194 = pneg %p70
      %p195 = pneg %p67
      %p196 = pneg %p91
      %p197 = pneg %p88
      %p198 = pneg %p119
      %p199 = pneg %p116
      %s200 = smul.u32 8, %s21
      %p201 = scmp.lt.s32.totalorder %s20, 1
      %s202 = scalar_select %p201, %s20, 1
      %p203 = scmp.lt.s32.totalorder %s200, 15
      %s204 = scalar_select %p203, %s200, 15
      %s205 = smul.addr %s204, 2
      %s206 = smul.addr %s202, 32
      %s207 = sadd.s32 %s205, %s206
      %s208 = smul.addr %s207, 8
      %s209 = scalar_lea.vmem %s3, %s208
      %p210 = pneg %p147
      %p211 = pneg %p144
      %p212 = scmp.lt.s32.totalorder %s20, 1
      %s213 = scalar_select %p212, %s20, 1
      %p214 = scmp.lt.s32.totalorder %s21, 1
      %s215 = scalar_select %p214, %s21, 1
      %s216 = smul.addr %s213, 2
      %s217 = sadd.s32 %s215, %s216
      %s218 = smul.addr %s217, 2
      %s219 = scalar_lea.vmem %s4, %s218
      %p220 = scmp.lt.s32.totalorder %s20, 1
      %s221 = scalar_select %p220, %s20, 1
      %s222 = smul.addr %s221, 54
      %s223 = smul.addr %s222, 4
      %s224 = scalar_lea.vmem %s0, %s223
      %s225 = smul.u32 8, %s21
      %p226 = scmp.lt.s32.totalorder %s20, 1
      %s227 = scalar_select %p226, %s20, 1
      %p228 = scmp.lt.s32.totalorder %s225, 15
      %s229 = scalar_select %p228, %s225, 15
      %s230 = smul.addr %s229, 2
      %s231 = smul.addr %s227, 32
      %s232 = sadd.s32 %s230, %s231
      %s233 = smul.addr %s232, 8
      %s234 = scalar_lea.vmem %s3, %s233
      %s235 = smul.u32 8, %s21
      %p236 = scmp.lt.s32.totalorder %s20, 1
      %s237 = scalar_select %p236, %s20, 1
      %p238 = scmp.lt.s32.totalorder %s21, 1
      %s239 = scalar_select %p238, %s21, 1
      %s240 = smul.addr %s237, 2
      %s241 = sadd.s32 %s239, %s240
      %s242 = smul.addr %s241, 2
      %s243 = scalar_lea.vmem %s4, %s242
      %s245 = smul.u32 %s21, 8
      %s246 = smul.u32 %s245, 3
      %s247 = smul.addr %s246, 4
      %s248 = scalar_lea.vmem %s224, %s247
      %v249 = vld [vmem:[%s248] sm:$0xf]
      %v250 = vld [vmem:[%s248 + $0x4] sm:$0xf]
      %v251 = vld [vmem:[%s248 + $0xc] sm:$0xf]
      %v252 = vld [vmem:[%s248 + $0x10] sm:$0xf]
      %v253 = vld [vmem:[%s248 + $0x18] sm:$0xf]
      %v254 = vld [vmem:[%s248 + $0x1c] sm:$0xf]
      %v255 = vld [vmem:[%s248 + $0x24] sm:$0xf]
      %v256 = vld [vmem:[%s248 + $0x28] sm:$0xf]
      %v257 = vld [vmem:[%s248 + $0x30] sm:$0xf]
      %v258 = vld [vmem:[%s248 + $0x34] sm:$0xf]
      %v259 = vld [vmem:[%s248 + $0x3c] sm:$0xf]
      %v260 = vld [vmem:[%s248 + $0x40] sm:$0xf]
      %v261 = vld [vmem:[%s248 + $0x48] sm:$0xf]
      %v262 = vld [vmem:[%s248 + $0x4c] sm:$0xf]
      %v263 = vld [vmem:[%s248 + $0x54] sm:$0xf]
      %v264 = vld [vmem:[%s248 + $0x58] sm:$0xf]
      %vm265 = vcmask 27648
      %266 = vst.msk [vmem:[#allocation2] sm:$0xf] %vm265, %v249
      %267 = vst.msk [vmem:[#allocation2 + $0x4] sm:$0xf] %vm265, %v250
      %268 = vst.msk [vmem:[#allocation2 + $0x8] sm:$0xf] %vm265, %v251
      %269 = vst.msk [vmem:[#allocation2 + $0xc] sm:$0xf] %vm265, %v252
      %270 = vst.msk [vmem:[#allocation2 + $0x10] sm:$0xf] %vm265, %v253
      %271 = vst.msk [vmem:[#allocation2 + $0x14] sm:$0xf] %vm265, %v254
      %272 = vst.msk [vmem:[#allocation2 + $0x18] sm:$0xf] %vm265, %v255
      %273 = vst.msk [vmem:[#allocation2 + $0x1c] sm:$0xf] %vm265, %v256
      %274 = vst.msk [vmem:[#allocation2 + $0x20] sm:$0xf] %vm265, %v257
      %275 = vst.msk [vmem:[#allocation2 + $0x24] sm:$0xf] %vm265, %v258
      %276 = vst.msk [vmem:[#allocation2 + $0x28] sm:$0xf] %vm265, %v259
      %277 = vst.msk [vmem:[#allocation2 + $0x2c] sm:$0xf] %vm265, %v260
      %278 = vst.msk [vmem:[#allocation2 + $0x30] sm:$0xf] %vm265, %v261
      %279 = vst.msk [vmem:[#allocation2 + $0x34] sm:$0xf] %vm265, %v262
      %280 = vst.msk [vmem:[#allocation2 + $0x38] sm:$0xf] %vm265, %v263
      %281 = vst.msk [vmem:[#allocation2 + $0x3c] sm:$0xf] %vm265, %v264
      %v282 = vld [vmem:[%s248] sm:$0xf]
      %v283 = vld [vmem:[%s248 + $0x4] sm:$0xf]
      %v284 = vld [vmem:[%s248 + $0x8] sm:$0x1]
      %v285 = vld [vmem:[%s248 + $0xc] sm:$0xf]
      %v286 = vld [vmem:[%s248 + $0x10] sm:$0xf]
      %v287 = vld [vmem:[%s248 + $0x14] sm:$0x1]
      %v288 = vld [vmem:[%s248 + $0x18] sm:$0xf]
      %v289 = vld [vmem:[%s248 + $0x1c] sm:$0xf]
      %v290 = vld [vmem:[%s248 + $0x20] sm:$0x1]
      %v291 = vld [vmem:[%s248 + $0x24] sm:$0xf]
      %v292 = vld [vmem:[%s248 + $0x28] sm:$0xf]
      %v293 = vld [vmem:[%s248 + $0x2c] sm:$0x1]
      %v294 = vld [vmem:[%s248 + $0x30] sm:$0xf]
      %v295 = vld [vmem:[%s248 + $0x34] sm:$0xf]
      %v296 = vld [vmem:[%s248 + $0x38] sm:$0x1]
      %v297 = vld [vmem:[%s248 + $0x3c] sm:$0xf]
      %v298 = vld [vmem:[%s248 + $0x40] sm:$0xf]
      %v299 = vld [vmem:[%s248 + $0x44] sm:$0x1]
      %v300 = vld [vmem:[%s248 + $0x48] sm:$0xf]
      %v301 = vld [vmem:[%s248 + $0x4c] sm:$0xf]
      %v302 = vld [vmem:[%s248 + $0x50] sm:$0x1]
      %v303 = vld [vmem:[%s248 + $0x54] sm:$0xf]
      %v304 = vld [vmem:[%s248 + $0x58] sm:$0xf]
      %v305 = vld [vmem:[%s248 + $0x5c] sm:$0x1]
      %vm306 = vsmask.f32 3328
      %vm307 = vsmask.f32 7440
      %vm308 = vmor %vm306, %vm307
      %v310 = vshrl.u32 %v282, 16
      %v312 = vrot.slane %v310, 4
      %v313 = vshll.u32 %v282, 16
      %v315 = vrot.slane %v313, 5
      %v316 = vor.u32 %v312, %v315
      %v317 = vrot.slane %v316, 4
      %v319 = vshll.u32 %v283, 16
      %v321 = vrot.slane %v319, 5
      %v322 = vsel %vm308, %v317, %v321
      %v323 = vshrl.u32 %v283, 16
      %v325 = vrot.slane %v323, 4
      %v326 = vor.u32 %v325, %v321
      %v327 = vrot.slane %v326, 4
      %v329 = vshll.u32 %v284, 16
      %v331 = vrot.slane %v329, 5
      %v332 = vsel %vm308, %v327, %v331
      %v334 = vshrl.u32 %v285, 16
      %v336 = vrot.slane %v334, 4
      %v337 = vshll.u32 %v285, 16
      %v339 = vrot.slane %v337, 5
      %v340 = vor.u32 %v336, %v339
      %v341 = vrot.slane %v340, 4
      %v343 = vshll.u32 %v286, 16
      %v345 = vrot.slane %v343, 5
      %v346 = vsel %vm308, %v341, %v345
      %v347 = vshrl.u32 %v286, 16
      %v349 = vrot.slane %v347, 4
      %v350 = vor.u32 %v349, %v345
      %v351 = vrot.slane %v350, 4
      %v353 = vshll.u32 %v287, 16
      %v355 = vrot.slane %v353, 5
      %v356 = vsel %vm308, %v351, %v355
      %v358 = vshrl.u32 %v288, 16
      %v360 = vrot.slane %v358, 4
      %v361 = vshll.u32 %v288, 16
      %v363 = vrot.slane %v361, 5
      %v364 = vor.u32 %v360, %v363
      %v365 = vrot.slane %v364, 4
      %v367 = vshll.u32 %v289, 16
      %v369 = vrot.slane %v367, 5
      %v370 = vsel %vm308, %v365, %v369
      %v371 = vshrl.u32 %v289, 16
      %v373 = vrot.slane %v371, 4
      %v374 = vor.u32 %v373, %v369
      %v375 = vrot.slane %v374, 4
      %v377 = vshll.u32 %v290, 16
      %v379 = vrot.slane %v377, 5
      %v380 = vsel %vm308, %v375, %v379
      %v382 = vshrl.u32 %v291, 16
      %v384 = vrot.slane %v382, 4
      %v385 = vshll.u32 %v291, 16
      %v387 = vrot.slane %v385, 5
      %v388 = vor.u32 %v384, %v387
      %v389 = vrot.slane %v388, 4
      %v391 = vshll.u32 %v292, 16
      %v393 = vrot.slane %v391, 5
      %v394 = vsel %vm308, %v389, %v393
      %v395 = vshrl.u32 %v292, 16
      %v397 = vrot.slane %v395, 4
      %v398 = vor.u32 %v397, %v393
      %v399 = vrot.slane %v398, 4
      %v401 = vshll.u32 %v293, 16
      %v403 = vrot.slane %v401, 5
      %v404 = vsel %vm308, %v399, %v403
      %v406 = vshrl.u32 %v294, 16
      %v408 = vrot.slane %v406, 4
      %v409 = vshll.u32 %v294, 16
      %v411 = vrot.slane %v409, 5
      %v412 = vor.u32 %v408, %v411
      %v413 = vrot.slane %v412, 4
      %v415 = vshll.u32 %v295, 16
      %v417 = vrot.slane %v415, 5
      %v418 = vsel %vm308, %v413, %v417
      %v419 = vshrl.u32 %v295, 16
      %v421 = vrot.slane %v419, 4
      %v422 = vor.u32 %v421, %v417
      %v423 = vrot.slane %v422, 4
      %v425 = vshll.u32 %v296, 16
      %v427 = vrot.slane %v425, 5
      %v428 = vsel %vm308, %v423, %v427
      %v430 = vshrl.u32 %v297, 16
      %v432 = vrot.slane %v430, 4
      %v433 = vshll.u32 %v297, 16
      %v435 = vrot.slane %v433, 5
      %v436 = vor.u32 %v432, %v435
      %v437 = vrot.slane %v436, 4
      %v439 = vshll.u32 %v298, 16
      %v441 = vrot.slane %v439, 5
      %v442 = vsel %vm308, %v437, %v441
      %v443 = vshrl.u32 %v298, 16
      %v445 = vrot.slane %v443, 4
      %v446 = vor.u32 %v445, %v441
      %v447 = vrot.slane %v446, 4
      %v449 = vshll.u32 %v299, 16
      %v451 = vrot.slane %v449, 5
      %v452 = vsel %vm308, %v447, %v451
      %v454 = vshrl.u32 %v300, 16
      %v456 = vrot.slane %v454, 4
      %v457 = vshll.u32 %v300, 16
      %v459 = vrot.slane %v457, 5
      %v460 = vor.u32 %v456, %v459
      %v461 = vrot.slane %v460, 4
      %v463 = vshll.u32 %v301, 16
      %v465 = vrot.slane %v463, 5
      %v466 = vsel %vm308, %v461, %v465
      %v467 = vshrl.u32 %v301, 16
      %v469 = vrot.slane %v467, 4
      %v470 = vor.u32 %v469, %v465
      %v471 = vrot.slane %v470, 4
      %v473 = vshll.u32 %v302, 16
      %v475 = vrot.slane %v473, 5
      %v476 = vsel %vm308, %v471, %v475
      %v478 = vshrl.u32 %v303, 16
      %v480 = vrot.slane %v478, 4
      %v481 = vshll.u32 %v303, 16
      %v483 = vrot.slane %v481, 5
      %v484 = vor.u32 %v480, %v483
      %v485 = vrot.slane %v484, 4
      %v487 = vshll.u32 %v304, 16
      %v489 = vrot.slane %v487, 5
      %v490 = vsel %vm308, %v485, %v489
      %v491 = vshrl.u32 %v304, 16
      %v493 = vrot.slane %v491, 4
      %v494 = vor.u32 %v493, %v489
      %v495 = vrot.slane %v494, 4
      %v497 = vshll.u32 %v305, 16
      %v499 = vrot.slane %v497, 5
      %v500 = vsel %vm308, %v495, %v499
      %501 = vrot.lane.b32.xlu0 %v322, 4
      %v502 = vpop.permute.xlu0 %501
      %503 = vrot.lane.b32.xlu0 %v332, 4
      %v504 = vpop.permute.xlu0 %503
      %505 = vrot.lane.b32.xlu0 %v346, 4
      %v506 = vpop.permute.xlu0 %505
      %507 = vrot.lane.b32.xlu0 %v356, 4
      %v508 = vpop.permute.xlu0 %507
      %509 = vrot.lane.b32.xlu0 %v370, 4
      %v510 = vpop.permute.xlu0 %509
      %511 = vrot.lane.b32.xlu0 %v380, 4
      %v512 = vpop.permute.xlu0 %511
      %513 = vrot.lane.b32.xlu0 %v394, 4
      %v514 = vpop.permute.xlu0 %513
      %515 = vrot.lane.b32.xlu0 %v404, 4
      %v516 = vpop.permute.xlu0 %515
      %517 = vrot.lane.b32.xlu0 %v418, 4
      %v518 = vpop.permute.xlu0 %517
      %519 = vrot.lane.b32.xlu0 %v428, 4
      %v520 = vpop.permute.xlu0 %519
      %521 = vrot.lane.b32.xlu0 %v442, 4
      %v522 = vpop.permute.xlu0 %521
      %523 = vrot.lane.b32.xlu0 %v452, 4
      %v524 = vpop.permute.xlu0 %523
      %525 = vrot.lane.b32.xlu0 %v466, 4
      %v526 = vpop.permute.xlu0 %525
      %527 = vrot.lane.b32.xlu0 %v476, 4
      %v528 = vpop.permute.xlu0 %527
      %529 = vrot.lane.b32.xlu0 %v490, 4
      %v530 = vpop.permute.xlu0 %529
      %531 = vrot.lane.b32.xlu0 %v500, 4
      %v532 = vpop.permute.xlu0 %531
      %vm549 = vcmask 60448
      %550 = vst.msk [vmem:[#allocation2] sm:$0xf] %vm549, %v502
      %551 = vst.msk [vmem:[#allocation2 + $0x4] sm:$0xf] %vm549, %v504
      %552 = vst.msk [vmem:[#allocation2 + $0x8] sm:$0xf] %vm549, %v506
      %553 = vst.msk [vmem:[#allocation2 + $0xc] sm:$0xf] %vm549, %v508
      %554 = vst.msk [vmem:[#allocation2 + $0x10] sm:$0xf] %vm549, %v510
      %555 = vst.msk [vmem:[#allocation2 + $0x14] sm:$0xf] %vm549, %v512
      %556 = vst.msk [vmem:[#allocation2 + $0x18] sm:$0xf] %vm549, %v514
      %557 = vst.msk [vmem:[#allocation2 + $0x1c] sm:$0xf] %vm549, %v516
      %558 = vst.msk [vmem:[#allocation2 + $0x20] sm:$0xf] %vm549, %v518
      %559 = vst.msk [vmem:[#allocation2 + $0x24] sm:$0xf] %vm549, %v520
      %560 = vst.msk [vmem:[#allocation2 + $0x28] sm:$0xf] %vm549, %v522
      %561 = vst.msk [vmem:[#allocation2 + $0x2c] sm:$0xf] %vm549, %v524
      %562 = vst.msk [vmem:[#allocation2 + $0x30] sm:$0xf] %vm549, %v526
      %563 = vst.msk [vmem:[#allocation2 + $0x34] sm:$0xf] %vm549, %v528
      %564 = vst.msk [vmem:[#allocation2 + $0x38] sm:$0xf] %vm549, %v530
      %565 = vst.msk [vmem:[#allocation2 + $0x3c] sm:$0xf] %vm549, %v532
      %v566 = vld [vmem:[%s248] sm:$0xe]
      %v567 = vld [vmem:[%s248 + $0x4] sm:$0xf]
      %v568 = vld [vmem:[%s248 + $0x8] sm:$0x1]
      %v569 = vld [vmem:[%s248 + $0xc] sm:$0xe]
      %v570 = vld [vmem:[%s248 + $0x10] sm:$0xf]
      %v571 = vld [vmem:[%s248 + $0x14] sm:$0x1]
      %v572 = vld [vmem:[%s248 + $0x18] sm:$0xe]
      %v573 = vld [vmem:[%s248 + $0x1c] sm:$0xf]
      %v574 = vld [vmem:[%s248 + $0x20] sm:$0x1]
      %v575 = vld [vmem:[%s248 + $0x24] sm:$0xe]
      %v576 = vld [vmem:[%s248 + $0x28] sm:$0xf]
      %v577 = vld [vmem:[%s248 + $0x2c] sm:$0x1]
      %v578 = vld [vmem:[%s248 + $0x30] sm:$0xe]
      %v579 = vld [vmem:[%s248 + $0x34] sm:$0xf]
      %v580 = vld [vmem:[%s248 + $0x38] sm:$0x1]
      %v581 = vld [vmem:[%s248 + $0x3c] sm:$0xe]
      %v582 = vld [vmem:[%s248 + $0x40] sm:$0xf]
      %v583 = vld [vmem:[%s248 + $0x44] sm:$0x1]
      %v584 = vld [vmem:[%s248 + $0x48] sm:$0xe]
      %v585 = vld [vmem:[%s248 + $0x4c] sm:$0xf]
      %v586 = vld [vmem:[%s248 + $0x50] sm:$0x1]
      %v587 = vld [vmem:[%s248 + $0x54] sm:$0xe]
      %v588 = vld [vmem:[%s248 + $0x58] sm:$0xf]
      %v589 = vld [vmem:[%s248 + $0x5c] sm:$0x1]
      %vm614 = vcmask 1042432
      %vm615 = vcmask 1046532
      %vm616 = vmor %vm614, %vm615
      %v617 = vrot.slane %v566, 5
      %v618 = vrot.slane %v617, 4
      %v619 = vrot.slane %v567, 5
      %v620 = vsel %vm616, %v618, %v619
      %v621 = vrot.slane %v619, 4
      %v622 = vrot.slane %v568, 5
      %v623 = vsel %vm616, %v621, %v622
      %v624 = vrot.slane %v569, 5
      %v625 = vrot.slane %v624, 4
      %v626 = vrot.slane %v570, 5
      %v627 = vsel %vm616, %v625, %v626
      %v628 = vrot.slane %v626, 4
      %v629 = vrot.slane %v571, 5
      %v630 = vsel %vm616, %v628, %v629
      %v631 = vrot.slane %v572, 5
      %v632 = vrot.slane %v631, 4
      %v633 = vrot.slane %v573, 5
      %v634 = vsel %vm616, %v632, %v633
      %v635 = vrot.slane %v633, 4
      %v636 = vrot.slane %v574, 5
      %v637 = vsel %vm616, %v635, %v636
      %v638 = vrot.slane %v575, 5
      %v639 = vrot.slane %v638, 4
      %v640 = vrot.slane %v576, 5
      %v641 = vsel %vm616, %v639, %v640
      %v642 = vrot.slane %v640, 4
      %v643 = vrot.slane %v577, 5
      %v644 = vsel %vm616, %v642, %v643
      %v645 = vrot.slane %v578, 5
      %v646 = vrot.slane %v645, 4
      %v647 = vrot.slane %v579, 5
      %v648 = vsel %vm616, %v646, %v647
      %v649 = vrot.slane %v647, 4
      %v650 = vrot.slane %v580, 5
      %v651 = vsel %vm616, %v649, %v650
      %v652 = vrot.slane %v581, 5
      %v653 = vrot.slane %v652, 4
      %v654 = vrot.slane %v582, 5
      %v655 = vsel %vm616, %v653, %v654
      %v656 = vrot.slane %v654, 4
      %v657 = vrot.slane %v583, 5
      %v658 = vsel %vm616, %v656, %v657
      %v659 = vrot.slane %v584, 5
      %v660 = vrot.slane %v659, 4
      %v661 = vrot.slane %v585, 5
      %v662 = vsel %vm616, %v660, %v661
      %v663 = vrot.slane %v661, 4
      %v664 = vrot.slane %v586, 5
      %v665 = vsel %vm616, %v663, %v664
      %v666 = vrot.slane %v587, 5
      %v667 = vrot.slane %v666, 4
      %v668 = vrot.slane %v588, 5
      %v669 = vsel %vm616, %v667, %v668
      %v670 = vrot.slane %v668, 4
      %v671 = vrot.slane %v589, 5
      %v672 = vsel %vm616, %v670, %v671
      %673 = vrot.lane.b32.xlu0 %v620, 8
      %v674 = vpop.permute.xlu0 %673
      %675 = vrot.lane.b32.xlu0 %v623, 8
      %v676 = vpop.permute.xlu0 %675
      %677 = vrot.lane.b32.xlu0 %v627, 8
      %v678 = vpop.permute.xlu0 %677
      %679 = vrot.lane.b32.xlu0 %v630, 8
      %v680 = vpop.permute.xlu0 %679
      %681 = vrot.lane.b32.xlu0 %v634, 8
      %v682 = vpop.permute.xlu0 %681
      %683 = vrot.lane.b32.xlu0 %v637, 8
      %v684 = vpop.permute.xlu0 %683
      %685 = vrot.lane.b32.xlu0 %v641, 8
      %v686 = vpop.permute.xlu0 %685
      %687 = vrot.lane.b32.xlu0 %v644, 8
      %v688 = vpop.permute.xlu0 %687
      %689 = vrot.lane.b32.xlu0 %v648, 8
      %v690 = vpop.permute.xlu0 %689
      %691 = vrot.lane.b32.xlu0 %v651, 8
      %v692 = vpop.permute.xlu0 %691
      %693 = vrot.lane.b32.xlu0 %v655, 8
      %v694 = vpop.permute.xlu0 %693
      %695 = vrot.lane.b32.xlu0 %v658, 8
      %v696 = vpop.permute.xlu0 %695
      %697 = vrot.lane.b32.xlu0 %v662, 8
      %v698 = vpop.permute.xlu0 %697
      %699 = vrot.lane.b32.xlu0 %v665, 8
      %v700 = vpop.permute.xlu0 %699
      %701 = vrot.lane.b32.xlu0 %v669, 8
      %v702 = vpop.permute.xlu0 %701
      %703 = vrot.lane.b32.xlu0 %v672, 8
      %v704 = vpop.permute.xlu0 %703
      %vm721 = vcmask 93248
      %722 = vst.msk [vmem:[#allocation2] sm:$0xf] %vm721, %v674
      %723 = vst.msk [vmem:[#allocation2 + $0x4] sm:$0xf] %vm721, %v676
      %724 = vst.msk [vmem:[#allocation2 + $0x8] sm:$0xf] %vm721, %v678
      %725 = vst.msk [vmem:[#allocation2 + $0xc] sm:$0xf] %vm721, %v680
      %726 = vst.msk [vmem:[#allocation2 + $0x10] sm:$0xf] %vm721, %v682
      %727 = vst.msk [vmem:[#allocation2 + $0x14] sm:$0xf] %vm721, %v684
      %728 = vst.msk [vmem:[#allocation2 + $0x18] sm:$0xf] %vm721, %v686
      %729 = vst.msk [vmem:[#allocation2 + $0x1c] sm:$0xf] %vm721, %v688
      %730 = vst.msk [vmem:[#allocation2 + $0x20] sm:$0xf] %vm721, %v690
      %731 = vst.msk [vmem:[#allocation2 + $0x24] sm:$0xf] %vm721, %v692
      %732 = vst.msk [vmem:[#allocation2 + $0x28] sm:$0xf] %vm721, %v694
      %733 = vst.msk [vmem:[#allocation2 + $0x2c] sm:$0xf] %vm721, %v696
      %734 = vst.msk [vmem:[#allocation2 + $0x30] sm:$0xf] %vm721, %v698
      %735 = vst.msk [vmem:[#allocation2 + $0x34] sm:$0xf] %vm721, %v700
      %736 = vst.msk [vmem:[#allocation2 + $0x38] sm:$0xf] %vm721, %v702
      %737 = vst.msk [vmem:[#allocation2 + $0x3c] sm:$0xf] %vm721, %v704
      %s738 = sadd.s32 %s245, 1
      %s739 = smul.u32 %s738, 3
      %s740 = smul.addr %s739, 4
      %s741 = scalar_lea.vmem %s224, %s740
      %v742 = vld [vmem:[%s741] sm:$0xf]
      %v743 = vld [vmem:[%s741 + $0x4] sm:$0xf]
      %v744 = vld [vmem:[%s741 + $0xc] sm:$0xf]
      %v745 = vld [vmem:[%s741 + $0x10] sm:$0xf]
      %v746 = vld [vmem:[%s741 + $0x18] sm:$0xf]
      %v747 = vld [vmem:[%s741 + $0x1c] sm:$0xf]
      %v748 = vld [vmem:[%s741 + $0x24] sm:$0xf]
      %v749 = vld [vmem:[%s741 + $0x28] sm:$0xf]
      %v750 = vld [vmem:[%s741 + $0x30] sm:$0xf]
      %v751 = vld [vmem:[%s741 + $0x34] sm:$0xf]
      %v752 = vld [vmem:[%s741 + $0x3c] sm:$0xf]
      %v753 = vld [vmem:[%s741 + $0x40] sm:$0xf]
      %v754 = vld [vmem:[%s741 + $0x48] sm:$0xf]
      %v755 = vld [vmem:[%s741 + $0x4c] sm:$0xf]
      %v756 = vld [vmem:[%s741 + $0x54] sm:$0xf]
      %v757 = vld [vmem:[%s741 + $0x58] sm:$0xf]
      %774 = vrot.lane.b32.xlu0 %v742, 12
      %v775 = vpop.permute.xlu0 %774
      %776 = vrot.lane.b32.xlu0 %v743, 12
      %v777 = vpop.permute.xlu0 %776
      %778 = vrot.lane.b32.xlu0 %v744, 12
      %v779 = vpop.permute.xlu0 %778
      %780 = vrot.lane.b32.xlu0 %v745, 12
      %v781 = vpop.permute.xlu0 %780
      %782 = vrot.lane.b32.xlu0 %v746, 12
      %v783 = vpop.permute.xlu0 %782
      %784 = vrot.lane.b32.xlu0 %v747, 12
      %v785 = vpop.permute.xlu0 %784
      %786 = vrot.lane.b32.xlu0 %v748, 12
      %v787 = vpop.permute.xlu0 %786
      %788 = vrot.lane.b32.xlu0 %v749, 12
      %v789 = vpop.permute.xlu0 %788
      %790 = vrot.lane.b32.xlu0 %v750, 12
      %v791 = vpop.permute.xlu0 %790
      %792 = vrot.lane.b32.xlu0 %v751, 12
      %v793 = vpop.permute.xlu0 %792
      %794 = vrot.lane.b32.xlu0 %v752, 12
      %v795 = vpop.permute.xlu0 %794
      %796 = vrot.lane.b32.xlu0 %v753, 12
      %v797 = vpop.permute.xlu0 %796
      %798 = vrot.lane.b32.xlu0 %v754, 12
      %v799 = vpop.permute.xlu0 %798
      %800 = vrot.lane.b32.xlu0 %v755, 12
      %v801 = vpop.permute.xlu0 %800
      %802 = vrot.lane.b32.xlu0 %v756, 12
      %v803 = vpop.permute.xlu0 %802
      %804 = vrot.lane.b32.xlu0 %v757, 12
      %v805 = vpop.permute.xlu0 %804
      %vm822 = vcmask 126048
      %823 = vst.msk [vmem:[#allocation2] sm:$0xf] %vm822, %v775
      %824 = vst.msk [vmem:[#allocation2 + $0x4] sm:$0xf] %vm822, %v777
      %825 = vst.msk [vmem:[#allocation2 + $0x8] sm:$0xf] %vm822, %v779
      %826 = vst.msk [vmem:[#allocation2 + $0xc] sm:$0xf] %vm822, %v781
      %827 = vst.msk [vmem:[#allocation2 + $0x10] sm:$0xf] %vm822, %v783
      %828 = vst.msk [vmem:[#allocation2 + $0x14] sm:$0xf] %vm822, %v785
      %829 = vst.msk [vmem:[#allocation2 + $0x18] sm:$0xf] %vm822, %v787
      %830 = vst.msk [vmem:[#allocation2 + $0x1c] sm:$0xf] %vm822, %v789
      %831 = vst.msk [vmem:[#allocation2 + $0x20] sm:$0xf] %vm822, %v791
      %832 = vst.msk [vmem:[#allocation2 + $0x24] sm:$0xf] %vm822, %v793
      %833 = vst.msk [vmem:[#allocation2 + $0x28] sm:$0xf] %vm822, %v795
      %834 = vst.msk [vmem:[#allocation2 + $0x2c] sm:$0xf] %vm822, %v797
      %835 = vst.msk [vmem:[#allocation2 + $0x30] sm:$0xf] %vm822, %v799
      %836 = vst.msk [vmem:[#allocation2 + $0x34] sm:$0xf] %vm822, %v801
      %837 = vst.msk [vmem:[#allocation2 + $0x38] sm:$0xf] %vm822, %v803
      %838 = vst.msk [vmem:[#allocation2 + $0x3c] sm:$0xf] %vm822, %v805
      %v839 = vld [vmem:[%s741] sm:$0xf]
      %v840 = vld [vmem:[%s741 + $0x4] sm:$0xf]
      %v841 = vld [vmem:[%s741 + $0x8] sm:$0x1]
      %v842 = vld [vmem:[%s741 + $0xc] sm:$0xf]
      %v843 = vld [vmem:[%s741 + $0x10] sm:$0xf]
      %v844 = vld [vmem:[%s741 + $0x14] sm:$0x1]
      %v845 = vld [vmem:[%s741 + $0x18] sm:$0xf]
      %v846 = vld [vmem:[%s741 + $0x1c] sm:$0xf]
      %v847 = vld [vmem:[%s741 + $0x20] sm:$0x1]
      %v848 = vld [vmem:[%s741 + $0x24] sm:$0xf]
      %v849 = vld [vmem:[%s741 + $0x28] sm:$0xf]
      %v850 = vld [vmem:[%s741 + $0x2c] sm:$0x1]
      %v851 = vld [vmem:[%s741 + $0x30] sm:$0xf]
      %v852 = vld [vmem:[%s741 + $0x34] sm:$0xf]
      %v853 = vld [vmem:[%s741 + $0x38] sm:$0x1]
      %v854 = vld [vmem:[%s741 + $0x3c] sm:$0xf]
      %v855 = vld [vmem:[%s741 + $0x40] sm:$0xf]
      %v856 = vld [vmem:[%s741 + $0x44] sm:$0x1]
      %v857 = vld [vmem:[%s741 + $0x48] sm:$0xf]
      %v858 = vld [vmem:[%s741 + $0x4c] sm:$0xf]
      %v859 = vld [vmem:[%s741 + $0x50] sm:$0x1]
      %v860 = vld [vmem:[%s741 + $0x54] sm:$0xf]
      %v861 = vld [vmem:[%s741 + $0x58] sm:$0xf]
      %v862 = vld [vmem:[%s741 + $0x5c] sm:$0x1]
      %v864 = vshrl.u32 %v839, 16
      %v866 = vrot.slane %v864, 4
      %v867 = vshll.u32 %v839, 16
      %v869 = vrot.slane %v867, 5
      %v870 = vor.u32 %v866, %v869
      %v871 = vrot.slane %v870, 4
      %v873 = vshll.u32 %v840, 16
      %v875 = vrot.slane %v873, 5
      %v876 = vsel %vm308, %v871, %v875
      %v877 = vshrl.u32 %v840, 16
      %v879 = vrot.slane %v877, 4
      %v880 = vor.u32 %v879, %v875
      %v881 = vrot.slane %v880, 4
      %v883 = vshll.u32 %v841, 16
      %v885 = vrot.slane %v883, 5
      %v886 = vsel %vm308, %v881, %v885
      %v888 = vshrl.u32 %v842, 16
      %v890 = vrot.slane %v888, 4
      %v891 = vshll.u32 %v842, 16
      %v893 = vrot.slane %v891, 5
      %v894 = vor.u32 %v890, %v893
      %v895 = vrot.slane %v894, 4
      %v897 = vshll.u32 %v843, 16
      %v899 = vrot.slane %v897, 5
      %v900 = vsel %vm308, %v895, %v899
      %v901 = vshrl.u32 %v843, 16
      %v903 = vrot.slane %v901, 4
      %v904 = vor.u32 %v903, %v899
      %v905 = vrot.slane %v904, 4
      %v907 = vshll.u32 %v844, 16
      %v909 = vrot.slane %v907, 5
      %v910 = vsel %vm308, %v905, %v909
      %v912 = vshrl.u32 %v845, 16
      %v914 = vrot.slane %v912, 4
      %v915 = vshll.u32 %v845, 16
      %v917 = vrot.slane %v915, 5
      %v918 = vor.u32 %v914, %v917
      %v919 = vrot.slane %v918, 4
      %v921 = vshll.u32 %v846, 16
      %v923 = vrot.slane %v921, 5
      %v924 = vsel %vm308, %v919, %v923
      %v925 = vshrl.u32 %v846, 16
      %v927 = vrot.slane %v925, 4
      %v928 = vor.u32 %v927, %v923
      %v929 = vrot.slane %v928, 4
      %v931 = vshll.u32 %v847, 16
      %v933 = vrot.slane %v931, 5
      %v934 = vsel %vm308, %v929, %v933
      %v936 = vshrl.u32 %v848, 16
      %v938 = vrot.slane %v936, 4
      %v939 = vshll.u32 %v848, 16
      %v941 = vrot.slane %v939, 5
      %v942 = vor.u32 %v938, %v941
      %v943 = vrot.slane %v942, 4
      %v945 = vshll.u32 %v849, 16
      %v947 = vrot.slane %v945, 5
      %v948 = vsel %vm308, %v943, %v947
      %v949 = vshrl.u32 %v849, 16
      %v951 = vrot.slane %v949, 4
      %v952 = vor.u32 %v951, %v947
      %v953 = vrot.slane %v952, 4
      %v955 = vshll.u32 %v850, 16
      %v957 = vrot.slane %v955, 5
      %v958 = vsel %vm308, %v953, %v957
      %v960 = vshrl.u32 %v851, 16
      %v962 = vrot.slane %v960, 4
      %v963 = vshll.u32 %v851, 16
      %v965 = vrot.slane %v963, 5
      %v966 = vor.u32 %v962, %v965
      %v967 = vrot.slane %v966, 4
      %v969 = vshll.u32 %v852, 16
      %v971 = vrot.slane %v969, 5
      %v972 = vsel %vm308, %v967, %v971
      %v973 = vshrl.u32 %v852, 16
      %v975 = vrot.slane %v973, 4
      %v976 = vor.u32 %v975, %v971
      %v977 = vrot.slane %v976, 4
      %v979 = vshll.u32 %v853, 16
      %v981 = vrot.slane %v979, 5
      %v982 = vsel %vm308, %v977, %v981
      %v984 = vshrl.u32 %v854, 16
      %v986 = vrot.slane %v984, 4
      %v987 = vshll.u32 %v854, 16
      %v989 = vrot.slane %v987, 5
      %v990 = vor.u32 %v986, %v989
      %v991 = vrot.slane %v990, 4
      %v993 = vshll.u32 %v855, 16
      %v995 = vrot.slane %v993, 5
      %v996 = vsel %vm308, %v991, %v995
      %v997 = vshrl.u32 %v855, 16
      %v999 = vrot.slane %v997, 4
      %v1000 = vor.u32 %v999, %v995
      %v1001 = vrot.slane %v1000, 4
      %v1003 = vshll.u32 %v856, 16
      %v1005 = vrot.slane %v1003, 5
      %v1006 = vsel %vm308, %v1001, %v1005
      %v1008 = vshrl.u32 %v857, 16
      %v1010 = vrot.slane %v1008, 4
      %v1011 = vshll.u32 %v857, 16
      %v1013 = vrot.slane %v1011, 5
      %v1014 = vor.u32 %v1010, %v1013
      %v1015 = vrot.slane %v1014, 4
      %v1017 = vshll.u32 %v858, 16
      %v1019 = vrot.slane %v1017, 5
      %v1020 = vsel %vm308, %v1015, %v1019
      %v1021 = vshrl.u32 %v858, 16
      %v1023 = vrot.slane %v1021, 4
      %v1024 = vor.u32 %v1023, %v1019
      %v1025 = vrot.slane %v1024, 4
      %v1027 = vshll.u32 %v859, 16
      %v1029 = vrot.slane %v1027, 5
      %v1030 = vsel %vm308, %v1025, %v1029
      %v1032 = vshrl.u32 %v860, 16
      %v1034 = vrot.slane %v1032, 4
      %v1035 = vshll.u32 %v860, 16
      %v1037 = vrot.slane %v1035, 5
      %v1038 = vor.u32 %v1034, %v1037
      %v1039 = vrot.slane %v1038, 4
      %v1041 = vshll.u32 %v861, 16
      %v1043 = vrot.slane %v1041, 5
      %v1044 = vsel %vm308, %v1039, %v1043
      %v1045 = vshrl.u32 %v861, 16
      %v1047 = vrot.slane %v1045, 4
      %v1048 = vor.u32 %v1047, %v1043
      %v1049 = vrot.slane %v1048, 4
      %v1051 = vshll.u32 %v862, 16
      %v1053 = vrot.slane %v1051, 5
      %v1054 = vsel %vm308, %v1049, %v1053
      %1055 = vrot.lane.b32.xlu0 %v876, 16
      %v1056 = vpop.permute.xlu0 %1055
      %1057 = vrot.lane.b32.xlu0 %v886, 16
      %v1058 = vpop.permute.xlu0 %1057
      %1059 = vrot.lane.b32.xlu0 %v900, 16
      %v1060 = vpop.permute.xlu0 %1059
      %1061 = vrot.lane.b32.xlu0 %v910, 16
      %v1062 = vpop.permute.xlu0 %1061
      %1063 = vrot.lane.b32.xlu0 %v924, 16
      %v1064 = vpop.permute.xlu0 %1063
      %1065 = vrot.lane.b32.xlu0 %v934, 16
      %v1066 = vpop.permute.xlu0 %1065
      %1067 = vrot.lane.b32.xlu0 %v948, 16
      %v1068 = vpop.permute.xlu0 %1067
      %1069 = vrot.lane.b32.xlu0 %v958, 16
      %v1070 = vpop.permute.xlu0 %1069
      %1071 = vrot.lane.b32.xlu0 %v972, 16
      %v1072 = vpop.permute.xlu0 %1071
      %1073 = vrot.lane.b32.xlu0 %v982, 16
      %v1074 = vpop.permute.xlu0 %1073
      %1075 = vrot.lane.b32.xlu0 %v996, 16
      %v1076 = vpop.permute.xlu0 %1075
      %1077 = vrot.lane.b32.xlu0 %v1006, 16
      %v1078 = vpop.permute.xlu0 %1077
      %1079 = vrot.lane.b32.xlu0 %v1020, 16
      %v1080 = vpop.permute.xlu0 %1079
      %1081 = vrot.lane.b32.xlu0 %v1030, 16
      %v1082 = vpop.permute.xlu0 %1081
      %1083 = vrot.lane.b32.xlu0 %v1044, 16
      %v1084 = vpop.permute.xlu0 %1083
      %1085 = vrot.lane.b32.xlu0 %v1054, 16
      %v1086 = vpop.permute.xlu0 %1085
      %vm1103 = vcmask 158848
      %1104 = vst.msk [vmem:[#allocation2] sm:$0xf] %vm1103, %v1056
      %1105 = vst.msk [vmem:[#allocation2 + $0x4] sm:$0xf] %vm1103, %v1058
      %1106 = vst.msk [vmem:[#allocation2 + $0x8] sm:$0xf] %vm1103, %v1060
      %1107 = vst.msk [vmem:[#allocation2 + $0xc] sm:$0xf] %vm1103, %v1062
      %1108 = vst.msk [vmem:[#allocation2 + $0x10] sm:$0xf] %vm1103, %v1064
      %1109 = vst.msk [vmem:[#allocation2 + $0x14] sm:$0xf] %vm1103, %v1066
      %1110 = vst.msk [vmem:[#allocation2 + $0x18] sm:$0xf] %vm1103, %v1068
      %1111 = vst.msk [vmem:[#allocation2 + $0x1c] sm:$0xf] %vm1103, %v1070
      %1112 = vst.msk [vmem:[#allocation2 + $0x20] sm:$0xf] %vm1103, %v1072
      %1113 = vst.msk [vmem:[#allocation2 + $0x24] sm:$0xf] %vm1103, %v1074
      %1114 = vst.msk [vmem:[#allocation2 + $0x28] sm:$0xf] %vm1103, %v1076
      %1115 = vst.msk [vmem:[#allocation2 + $0x2c] sm:$0xf] %vm1103, %v1078
      %1116 = vst.msk [vmem:[#allocation2 + $0x30] sm:$0xf] %vm1103, %v1080
      %1117 = vst.msk [vmem:[#allocation2 + $0x34] sm:$0xf] %vm1103, %v1082
      %1118 = vst.msk [vmem:[#allocation2 + $0x38] sm:$0xf] %vm1103, %v1084
      %1119 = vst.msk [vmem:[#allocation2 + $0x3c] sm:$0xf] %vm1103, %v1086
      %v1120 = vld [vmem:[%s741] sm:$0xe]
      %v1121 = vld [vmem:[%s741 + $0x4] sm:$0xf]
      %v1122 = vld [vmem:[%s741 + $0x8] sm:$0x1]
      %v1123 = vld [vmem:[%s741 + $0xc] sm:$0xe]
      %v1124 = vld [vmem:[%s741 + $0x10] sm:$0xf]
      %v1125 = vld [vmem:[%s741 + $0x14] sm:$0x1]
      %v1126 = vld [vmem:[%s741 + $0x18] sm:$0xe]
      %v1127 = vld [vmem:[%s741 + $0x1c] sm:$0xf]
      %v1128 = vld [vmem:[%s741 + $0x20] sm:$0x1]
      %v1129 = vld [vmem:[%s741 + $0x24] sm:$0xe]
      %v1130 = vld [vmem:[%s741 + $0x28] sm:$0xf]
      %v1131 = vld [vmem:[%s741 + $0x2c] sm:$0x1]
      %v1132 = vld [vmem:[%s741 + $0x30] sm:$0xe]
      %v1133 = vld [vmem:[%s741 + $0x34] sm:$0xf]
      %v1134 = vld [vmem:[%s741 + $0x38] sm:$0x1]
      %v1135 = vld [vmem:[%s741 + $0x3c] sm:$0xe]
      %v1136 = vld [vmem:[%s741 + $0x40] sm:$0xf]
      %v1137 = vld [vmem:[%s741 + $0x44] sm:$0x1]
      %v1138 = vld [vmem:[%s741 + $0x48] sm:$0xe]
      %v1139 = vld [vmem:[%s741 + $0x4c] sm:$0xf]
      %v1140 = vld [vmem:[%s741 + $0x50] sm:$0x1]
      %v1141 = vld [vmem:[%s741 + $0x54] sm:$0xe]
      %v1142 = vld [vmem:[%s741 + $0x58] sm:$0xf]
      %v1143 = vld [vmem:[%s741 + $0x5c] sm:$0x1]
      %v1168 = vrot.slane %v1120, 5
      %v1169 = vrot.slane %v1168, 4
      %v1170 = vrot.slane %v1121, 5
      %v1171 = vsel %vm616, %v1169, %v1170
      %v1172 = vrot.slane %v1170, 4
      %v1173 = vrot.slane %v1122, 5
      %v1174 = vsel %vm616, %v1172, %v1173
      %v1175 = vrot.slane %v1123, 5
      %v1176 = vrot.slane %v1175, 4
      %v1177 = vrot.slane %v1124, 5
      %v1178 = vsel %vm616, %v1176, %v1177
      %v1179 = vrot.slane %v1177, 4
      %v1180 = vrot.slane %v1125, 5
      %v1181 = vsel %vm616, %v1179, %v1180
      %v1182 = vrot.slane %v1126, 5
      %v1183 = vrot.slane %v1182, 4
      %v1184 = vrot.slane %v1127, 5
      %v1185 = vsel %vm616, %v1183, %v1184
      %v1186 = vrot.slane %v1184, 4
      %v1187 = vrot.slane %v1128, 5
      %v1188 = vsel %vm616, %v1186, %v1187
      %v1189 = vrot.slane %v1129, 5
      %v1190 = vrot.slane %v1189, 4
      %v1191 = vrot.slane %v1130, 5
      %v1192 = vsel %vm616, %v1190, %v1191
      %v1193 = vrot.slane %v1191, 4
      %v1194 = vrot.slane %v1131, 5
      %v1195 = vsel %vm616, %v1193, %v1194
      %v1196 = vrot.slane %v1132, 5
      %v1197 = vrot.slane %v1196, 4
      %v1198 = vrot.slane %v1133, 5
      %v1199 = vsel %vm616, %v1197, %v1198
      %v1200 = vrot.slane %v1198, 4
      %v1201 = vrot.slane %v1134, 5
      %v1202 = vsel %vm616, %v1200, %v1201
      %v1203 = vrot.slane %v1135, 5
      %v1204 = vrot.slane %v1203, 4
      %v1205 = vrot.slane %v1136, 5
      %v1206 = vsel %vm616, %v1204, %v1205
      %v1207 = vrot.slane %v1205, 4
      %v1208 = vrot.slane %v1137, 5
      %v1209 = vsel %vm616, %v1207, %v1208
      %v1210 = vrot.slane %v1138, 5
      %v1211 = vrot.slane %v1210, 4
      %v1212 = vrot.slane %v1139, 5
      %v1213 = vsel %vm616, %v1211, %v1212
      %v1214 = vrot.slane %v1212, 4
      %v1215 = vrot.slane %v1140, 5
      %v1216 = vsel %vm616, %v1214, %v1215
      %v1217 = vrot.slane %v1141, 5
      %v1218 = vrot.slane %v1217, 4
      %v1219 = vrot.slane %v1142, 5
      %v1220 = vsel %vm616, %v1218, %v1219
      %v1221 = vrot.slane %v1219, 4
      %v1222 = vrot.slane %v1143, 5
      %v1223 = vsel %vm616, %v1221, %v1222
      %1224 = vrot.lane.b32.xlu0 %v1171, 20
      %v1225 = vpop.permute.xlu0 %1224
      %1226 = vrot.lane.b32.xlu0 %v1174, 20
      %v1227 = vpop.permute.xlu0 %1226
      %1228 = vrot.lane.b32.xlu0 %v1178, 20
      %v1229 = vpop.permute.xlu0 %1228
      %1230 = vrot.lane.b32.xlu0 %v1181, 20
      %v1231 = vpop.permute.xlu0 %1230
      %1232 = vrot.lane.b32.xlu0 %v1185, 20
      %v1233 = vpop.permute.xlu0 %1232
      %1234 = vrot.lane.b32.xlu0 %v1188, 20
      %v1235 = vpop.permute.xlu0 %1234
      %1236 = vrot.lane.b32.xlu0 %v1192, 20
      %v1237 = vpop.permute.xlu0 %1236
      %1238 = vrot.lane.b32.xlu0 %v1195, 20
      %v1239 = vpop.permute.xlu0 %1238
      %1240 = vrot.lane.b32.xlu0 %v1199, 20
      %v1241 = vpop.permute.xlu0 %1240
      %1242 = vrot.lane.b32.xlu0 %v1202, 20
      %v1243 = vpop.permute.xlu0 %1242
      %1244 = vrot.lane.b32.xlu0 %v1206, 20
      %v1245 = vpop.permute.xlu0 %1244
      %1246 = vrot.lane.b32.xlu0 %v1209, 20
      %v1247 = vpop.permute.xlu0 %1246
      %1248 = vrot.lane.b32.xlu0 %v1213, 20
      %v1249 = vpop.permute.xlu0 %1248
      %1250 = vrot.lane.b32.xlu0 %v1216, 20
      %v1251 = vpop.permute.xlu0 %1250
      %1252 = vrot.lane.b32.xlu0 %v1220, 20
      %v1253 = vpop.permute.xlu0 %1252
      %1254 = vrot.lane.b32.xlu0 %v1223, 20
      %v1255 = vpop.permute.xlu0 %1254
      %vm1272 = vcmask 191648
      %1273 = vst.msk [vmem:[#allocation2] sm:$0xf] %vm1272, %v1225
      %1274 = vst.msk [vmem:[#allocation2 + $0x4] sm:$0xf] %vm1272, %v1227
      %1275 = vst.msk [vmem:[#allocation2 + $0x8] sm:$0xf] %vm1272, %v1229
      %1276 = vst.msk [vmem:[#allocation2 + $0xc] sm:$0xf] %vm1272, %v1231
      %1277 = vst.msk [vmem:[#allocation2 + $0x10] sm:$0xf] %vm1272, %v1233
      %1278 = vst.msk [vmem:[#allocation2 + $0x14] sm:$0xf] %vm1272, %v1235
      %1279 = vst.msk [vmem:[#allocation2 + $0x18] sm:$0xf] %vm1272, %v1237
      %1280 = vst.msk [vmem:[#allocation2 + $0x1c] sm:$0xf] %vm1272, %v1239
      %1281 = vst.msk [vmem:[#allocation2 + $0x20] sm:$0xf] %vm1272, %v1241
      %1282 = vst.msk [vmem:[#allocation2 + $0x24] sm:$0xf] %vm1272, %v1243
      %1283 = vst.msk [vmem:[#allocation2 + $0x28] sm:$0xf] %vm1272, %v1245
      %1284 = vst.msk [vmem:[#allocation2 + $0x2c] sm:$0xf] %vm1272, %v1247
      %1285 = vst.msk [vmem:[#allocation2 + $0x30] sm:$0xf] %vm1272, %v1249
      %1286 = vst.msk [vmem:[#allocation2 + $0x34] sm:$0xf] %vm1272, %v1251
      %1287 = vst.msk [vmem:[#allocation2 + $0x38] sm:$0xf] %vm1272, %v1253
      %1288 = vst.msk [vmem:[#allocation2 + $0x3c] sm:$0xf] %vm1272, %v1255
      %s1289 = sadd.s32 %s245, 2
      %s1290 = smul.u32 %s1289, 3
      %s1291 = smul.addr %s1290, 4
      %s1292 = scalar_lea.vmem %s224, %s1291
      %v1293 = vld [vmem:[%s1292] sm:$0xf]
      %v1294 = vld [vmem:[%s1292 + $0x4] sm:$0xf]
      %v1295 = vld [vmem:[%s1292 + $0xc] sm:$0xf]
      %v1296 = vld [vmem:[%s1292 + $0x10] sm:$0xf]
      %v1297 = vld [vmem:[%s1292 + $0x18] sm:$0xf]
      %v1298 = vld [vmem:[%s1292 + $0x1c] sm:$0xf]
      %v1299 = vld [vmem:[%s1292 + $0x24] sm:$0xf]
      %v1300 = vld [vmem:[%s1292 + $0x28] sm:$0xf]
      %v1301 = vld [vmem:[%s1292 + $0x30] sm:$0xf]
      %v1302 = vld [vmem:[%s1292 + $0x34] sm:$0xf]
      %v1303 = vld [vmem:[%s1292 + $0x3c] sm:$0xf]
      %v1304 = vld [vmem:[%s1292 + $0x40] sm:$0xf]
      %v1305 = vld [vmem:[%s1292 + $0x48] sm:$0xf]
      %v1306 = vld [vmem:[%s1292 + $0x4c] sm:$0xf]
      %v1307 = vld [vmem:[%s1292 + $0x54] sm:$0xf]
      %v1308 = vld [vmem:[%s1292 + $0x58] sm:$0xf]
      %1325 = vrot.lane.b32.xlu0 %v1293, 24
      %v1326 = vpop.permute.xlu0 %1325
      %1327 = vrot.lane.b32.xlu0 %v1294, 24
      %v1328 = vpop.permute.xlu0 %1327
      %1329 = vrot.lane.b32.xlu0 %v1295, 24
      %v1330 = vpop.permute.xlu0 %1329
      %1331 = vrot.lane.b32.xlu0 %v1296, 24
      %v1332 = vpop.permute.xlu0 %1331
      %1333 = vrot.lane.b32.xlu0 %v1297, 24
      %v1334 = vpop.permute.xlu0 %1333
      %1335 = vrot.lane.b32.xlu0 %v1298, 24
      %v1336 = vpop.permute.xlu0 %1335
      %1337 = vrot.lane.b32.xlu0 %v1299, 24
      %v1338 = vpop.permute.xlu0 %1337
      %1339 = vrot.lane.b32.xlu0 %v1300, 24
      %v1340 = vpop.permute.xlu0 %1339
      %1341 = vrot.lane.b32.xlu0 %v1301, 24
      %v1342 = vpop.permute.xlu0 %1341
      %1343 = vrot.lane.b32.xlu0 %v1302, 24
      %v1344 = vpop.permute.xlu0 %1343
      %1345 = vrot.lane.b32.xlu0 %v1303, 24
      %v1346 = vpop.permute.xlu0 %1345
      %1347 = vrot.lane.b32.xlu0 %v1304, 24
      %v1348 = vpop.permute.xlu0 %1347
      %1349 = vrot.lane.b32.xlu0 %v1305, 24
      %v1350 = vpop.permute.xlu0 %1349
      %1351 = vrot.lane.b32.xlu0 %v1306, 24
      %v1352 = vpop.permute.xlu0 %1351
      %1353 = vrot.lane.b32.xlu0 %v1307, 24
      %v1354 = vpop.permute.xlu0 %1353
      %1355 = vrot.lane.b32.xlu0 %v1308, 24
      %v1356 = vpop.permute.xlu0 %1355
      %vm1373 = vcmask 224448
      %1374 = vst.msk [vmem:[#allocation2] sm:$0xf] %vm1373, %v1326
      %1375 = vst.msk [vmem:[#allocation2 + $0x4] sm:$0xf] %vm1373, %v1328
      %1376 = vst.msk [vmem:[#allocation2 + $0x8] sm:$0xf] %vm1373, %v1330
      %1377 = vst.msk [vmem:[#allocation2 + $0xc] sm:$0xf] %vm1373, %v1332
      %1378 = vst.msk [vmem:[#allocation2 + $0x10] sm:$0xf] %vm1373, %v1334
      %1379 = vst.msk [vmem:[#allocation2 + $0x14] sm:$0xf] %vm1373, %v1336
      %1380 = vst.msk [vmem:[#allocation2 + $0x18] sm:$0xf] %vm1373, %v1338
      %1381 = vst.msk [vmem:[#allocation2 + $0x1c] sm:$0xf] %vm1373, %v1340
      %1382 = vst.msk [vmem:[#allocation2 + $0x20] sm:$0xf] %vm1373, %v1342
      %1383 = vst.msk [vmem:[#allocation2 + $0x24] sm:$0xf] %vm1373, %v1344
      %1384 = vst.msk [vmem:[#allocation2 + $0x28] sm:$0xf] %vm1373, %v1346
      %1385 = vst.msk [vmem:[#allocation2 + $0x2c] sm:$0xf] %vm1373, %v1348
      %1386 = vst.msk [vmem:[#allocation2 + $0x30] sm:$0xf] %vm1373, %v1350
      %1387 = vst.msk [vmem:[#allocation2 + $0x34] sm:$0xf] %vm1373, %v1352
      %1388 = vst.msk [vmem:[#allocation2 + $0x38] sm:$0xf] %vm1373, %v1354
      %1389 = vst.msk [vmem:[#allocation2 + $0x3c] sm:$0xf] %vm1373, %v1356
      %v1390 = vld [vmem:[%s1292] sm:$0xf]
      %v1391 = vld [vmem:[%s1292 + $0x4] sm:$0xf]
      %v1392 = vld [vmem:[%s1292 + $0x8] sm:$0x1]
      %v1393 = vld [vmem:[%s1292 + $0xc] sm:$0xf]
      %v1394 = vld [vmem:[%s1292 + $0x10] sm:$0xf]
      %v1395 = vld [vmem:[%s1292 + $0x14] sm:$0x1]
      %v1396 = vld [vmem:[%s1292 + $0x18] sm:$0xf]
      %v1397 = vld [vmem:[%s1292 + $0x1c] sm:$0xf]
      %v1398 = vld [vmem:[%s1292 + $0x20] sm:$0x1]
      %v1399 = vld [vmem:[%s1292 + $0x24] sm:$0xf]
      %v1400 = vld [vmem:[%s1292 + $0x28] sm:$0xf]
      %v1401 = vld [vmem:[%s1292 + $0x2c] sm:$0x1]
      %v1402 = vld [vmem:[%s1292 + $0x30] sm:$0xf]
      %v1403 = vld [vmem:[%s1292 + $0x34] sm:$0xf]
      %v1404 = vld [vmem:[%s1292 + $0x38] sm:$0x1]
      %v1405 = vld [vmem:[%s1292 + $0x3c] sm:$0xf]
      %v1406 = vld [vmem:[%s1292 + $0x40] sm:$0xf]
      %v1407 = vld [vmem:[%s1292 + $0x44] sm:$0x1]
      %v1408 = vld [vmem:[%s1292 + $0x48] sm:$0xf]
      %v1409 = vld [vmem:[%s1292 + $0x4c] sm:$0xf]
      %v1410 = vld [vmem:[%s1292 + $0x50] sm:$0x1]
      %v1411 = vld [vmem:[%s1292 + $0x54] sm:$0xf]
      %v1412 = vld [vmem:[%s1292 + $0x58] sm:$0xf]
      %v1413 = vld [vmem:[%s1292 + $0x5c] sm:$0x1]
      %v1415 = vshrl.u32 %v1390, 16
      %v1417 = vrot.slane %v1415, 4
      %v1418 = vshll.u32 %v1390, 16
      %v1420 = vrot.slane %v1418, 5
      %v1421 = vor.u32 %v1417, %v1420
      %v1422 = vrot.slane %v1421, 4
      %v1424 = vshll.u32 %v1391, 16
      %v1426 = vrot.slane %v1424, 5
      %v1427 = vsel %vm308, %v1422, %v1426
      %v1428 = vshrl.u32 %v1391, 16
      %v1430 = vrot.slane %v1428, 4
      %v1431 = vor.u32 %v1430, %v1426
      %v1432 = vrot.slane %v1431, 4
      %v1434 = vshll.u32 %v1392, 16
      %v1436 = vrot.slane %v1434, 5
      %v1437 = vsel %vm308, %v1432, %v1436
      %v1439 = vshrl.u32 %v1393, 16
      %v1441 = vrot.slane %v1439, 4
      %v1442 = vshll.u32 %v1393, 16
      %v1444 = vrot.slane %v1442, 5
      %v1445 = vor.u32 %v1441, %v1444
      %v1446 = vrot.slane %v1445, 4
      %v1448 = vshll.u32 %v1394, 16
      %v1450 = vrot.slane %v1448, 5
      %v1451 = vsel %vm308, %v1446, %v1450
      %v1452 = vshrl.u32 %v1394, 16
      %v1454 = vrot.slane %v1452, 4
      %v1455 = vor.u32 %v1454, %v1450
      %v1456 = vrot.slane %v1455, 4
      %v1458 = vshll.u32 %v1395, 16
      %v1460 = vrot.slane %v1458, 5
      %v1461 = vsel %vm308, %v1456, %v1460
      %v1463 = vshrl.u32 %v1396, 16
      %v1465 = vrot.slane %v1463, 4
      %v1466 = vshll.u32 %v1396, 16
      %v1468 = vrot.slane %v1466, 5
      %v1469 = vor.u32 %v1465, %v1468
      %v1470 = vrot.slane %v1469, 4
      %v1472 = vshll.u32 %v1397, 16
      %v1474 = vrot.slane %v1472, 5
      %v1475 = vsel %vm308, %v1470, %v1474
      %v1476 = vshrl.u32 %v1397, 16
      %v1478 = vrot.slane %v1476, 4
      %v1479 = vor.u32 %v1478, %v1474
      %v1480 = vrot.slane %v1479, 4
      %v1482 = vshll.u32 %v1398, 16
      %v1484 = vrot.slane %v1482, 5
      %v1485 = vsel %vm308, %v1480, %v1484
      %v1487 = vshrl.u32 %v1399, 16
      %v1489 = vrot.slane %v1487, 4
      %v1490 = vshll.u32 %v1399, 16
      %v1492 = vrot.slane %v1490, 5
      %v1493 = vor.u32 %v1489, %v1492
      %v1494 = vrot.slane %v1493, 4
      %v1496 = vshll.u32 %v1400, 16
      %v1498 = vrot.slane %v1496, 5
      %v1499 = vsel %vm308, %v1494, %v1498
      %v1500 = vshrl.u32 %v1400, 16
      %v1502 = vrot.slane %v1500, 4
      %v1503 = vor.u32 %v1502, %v1498
      %v1504 = vrot.slane %v1503, 4
      %v1506 = vshll.u32 %v1401, 16
      %v1508 = vrot.slane %v1506, 5
      %v1509 = vsel %vm308, %v1504, %v1508
      %v1511 = vshrl.u32 %v1402, 16
      %v1513 = vrot.slane %v1511, 4
      %v1514 = vshll.u32 %v1402, 16
      %v1516 = vrot.slane %v1514, 5
      %v1517 = vor.u32 %v1513, %v1516
      %v1518 = vrot.slane %v1517, 4
      %v1520 = vshll.u32 %v1403, 16
      %v1522 = vrot.slane %v1520, 5
      %v1523 = vsel %vm308, %v1518, %v1522
      %v1524 = vshrl.u32 %v1403, 16
      %v1526 = vrot.slane %v1524, 4
      %v1527 = vor.u32 %v1526, %v1522
      %v1528 = vrot.slane %v1527, 4
      %v1530 = vshll.u32 %v1404, 16
      %v1532 = vrot.slane %v1530, 5
      %v1533 = vsel %vm308, %v1528, %v1532
      %v1535 = vshrl.u32 %v1405, 16
      %v1537 = vrot.slane %v1535, 4
      %v1538 = vshll.u32 %v1405, 16
      %v1540 = vrot.slane %v1538, 5
      %v1541 = vor.u32 %v1537, %v1540
      %v1542 = vrot.slane %v1541, 4
      %v1544 = vshll.u32 %v1406, 16
      %v1546 = vrot.slane %v1544, 5
      %v1547 = vsel %vm308, %v1542, %v1546
      %v1548 = vshrl.u32 %v1406, 16
      %v1550 = vrot.slane %v1548, 4
      %v1551 = vor.u32 %v1550, %v1546
      %v1552 = vrot.slane %v1551, 4
      %v1554 = vshll.u32 %v1407, 16
      %v1556 = vrot.slane %v1554, 5
      %v1557 = vsel %vm308, %v1552, %v1556
      %v1559 = vshrl.u32 %v1408, 16
      %v1561 = vrot.slane %v1559, 4
      %v1562 = vshll.u32 %v1408, 16
      %v1564 = vrot.slane %v1562, 5
      %v1565 = vor.u32 %v1561, %v1564
      %v1566 = vrot.slane %v1565, 4
      %v1568 = vshll.u32 %v1409, 16
      %v1570 = vrot.slane %v1568, 5
      %v1571 = vsel %vm308, %v1566, %v1570
      %v1572 = vshrl.u32 %v1409, 16
      %v1574 = vrot.slane %v1572, 4
      %v1575 = vor.u32 %v1574, %v1570
      %v1576 = vrot.slane %v1575, 4
      %v1578 = vshll.u32 %v1410, 16
      %v1580 = vrot.slane %v1578, 5
      %v1581 = vsel %vm308, %v1576, %v1580
      %v1583 = vshrl.u32 %v1411, 16
      %v1585 = vrot.slane %v1583, 4
      %v1586 = vshll.u32 %v1411, 16
      %v1588 = vrot.slane %v1586, 5
      %v1589 = vor.u32 %v1585, %v1588
      %v1590 = vrot.slane %v1589, 4
      %v1592 = vshll.u32 %v1412, 16
      %v1594 = vrot.slane %v1592, 5
      %v1595 = vsel %vm308, %v1590, %v1594
      %v1596 = vshrl.u32 %v1412, 16
      %v1598 = vrot.slane %v1596, 4
      %v1599 = vor.u32 %v1598, %v1594
      %v1600 = vrot.slane %v1599, 4
      %v1602 = vshll.u32 %v1413, 16
      %v1604 = vrot.slane %v1602, 5
      %v1605 = vsel %vm308, %v1600, %v1604
      %1606 = vrot.lane.b32.xlu0 %v1427, 28
      %v1607 = vpop.permute.xlu0 %1606
      %1608 = vrot.lane.b32.xlu0 %v1437, 28
      %v1609 = vpop.permute.xlu0 %1608
      %1610 = vrot.lane.b32.xlu0 %v1451, 28
      %v1611 = vpop.permute.xlu0 %1610
      %1612 = vrot.lane.b32.xlu0 %v1461, 28
      %v1613 = vpop.permute.xlu0 %1612
      %1614 = vrot.lane.b32.xlu0 %v1475, 28
      %v1615 = vpop.permute.xlu0 %1614
      %1616 = vrot.lane.b32.xlu0 %v1485, 28
      %v1617 = vpop.permute.xlu0 %1616
      %1618 = vrot.lane.b32.xlu0 %v1499, 28
      %v1619 = vpop.permute.xlu0 %1618
      %1620 = vrot.lane.b32.xlu0 %v1509, 28
      %v1621 = vpop.permute.xlu0 %1620
      %1622 = vrot.lane.b32.xlu0 %v1523, 28
      %v1623 = vpop.permute.xlu0 %1622
      %1624 = vrot.lane.b32.xlu0 %v1533, 28
      %v1625 = vpop.permute.xlu0 %1624
      %1626 = vrot.lane.b32.xlu0 %v1547, 28
      %v1627 = vpop.permute.xlu0 %1626
      %1628 = vrot.lane.b32.xlu0 %v1557, 28
      %v1629 = vpop.permute.xlu0 %1628
      %1630 = vrot.lane.b32.xlu0 %v1571, 28
      %v1631 = vpop.permute.xlu0 %1630
      %1632 = vrot.lane.b32.xlu0 %v1581, 28
      %v1633 = vpop.permute.xlu0 %1632
      %1634 = vrot.lane.b32.xlu0 %v1595, 28
      %v1635 = vpop.permute.xlu0 %1634
      %1636 = vrot.lane.b32.xlu0 %v1605, 28
      %v1637 = vpop.permute.xlu0 %1636
      %vm1654 = vcmask 257248
      %1655 = vst.msk [vmem:[#allocation2] sm:$0xf] %vm1654, %v1607
      %1656 = vst.msk [vmem:[#allocation2 + $0x4] sm:$0xf] %vm1654, %v1609
      %1657 = vst.msk [vmem:[#allocation2 + $0x8] sm:$0xf] %vm1654, %v1611
      %1658 = vst.msk [vmem:[#allocation2 + $0xc] sm:$0xf] %vm1654, %v1613
      %1659 = vst.msk [vmem:[#allocation2 + $0x10] sm:$0xf] %vm1654, %v1615
      %1660 = vst.msk [vmem:[#allocation2 + $0x14] sm:$0xf] %vm1654, %v1617
      %1661 = vst.msk [vmem:[#allocation2 + $0x18] sm:$0xf] %vm1654, %v1619
      %1662 = vst.msk [vmem:[#allocation2 + $0x1c] sm:$0xf] %vm1654, %v1621
      %1663 = vst.msk [vmem:[#allocation2 + $0x20] sm:$0xf] %vm1654, %v1623
      %1664 = vst.msk [vmem:[#allocation2 + $0x24] sm:$0xf] %vm1654, %v1625
      %1665 = vst.msk [vmem:[#allocation2 + $0x28] sm:$0xf] %vm1654, %v1627
      %1666 = vst.msk [vmem:[#allocation2 + $0x2c] sm:$0xf] %vm1654, %v1629
      %1667 = vst.msk [vmem:[#allocation2 + $0x30] sm:$0xf] %vm1654, %v1631
      %1668 = vst.msk [vmem:[#allocation2 + $0x34] sm:$0xf] %vm1654, %v1633
      %1669 = vst.msk [vmem:[#allocation2 + $0x38] sm:$0xf] %vm1654, %v1635
      %1670 = vst.msk [vmem:[#allocation2 + $0x3c] sm:$0xf] %vm1654, %v1637
      %v1671 = vld [vmem:[%s1292] sm:$0xe]
      %v1672 = vld [vmem:[%s1292 + $0x4] sm:$0xf]
      %v1673 = vld [vmem:[%s1292 + $0x8] sm:$0x1]
      %v1674 = vld [vmem:[%s1292 + $0xc] sm:$0xe]
      %v1675 = vld [vmem:[%s1292 + $0x10] sm:$0xf]
      %v1676 = vld [vmem:[%s1292 + $0x14] sm:$0x1]
      %v1677 = vld [vmem:[%s1292 + $0x18] sm:$0xe]
      %v1678 = vld [vmem:[%s1292 + $0x1c] sm:$0xf]
      %v1679 = vld [vmem:[%s1292 + $0x20] sm:$0x1]
      %v1680 = vld [vmem:[%s1292 + $0x24] sm:$0xe]
      %v1681 = vld [vmem:[%s1292 + $0x28] sm:$0xf]
      %v1682 = vld [vmem:[%s1292 + $0x2c] sm:$0x1]
      %v1683 = vld [vmem:[%s1292 + $0x30] sm:$0xe]
      %v1684 = vld [vmem:[%s1292 + $0x34] sm:$0xf]
      %v1685 = vld [vmem:[%s1292 + $0x38] sm:$0x1]
      %v1686 = vld [vmem:[%s1292 + $0x3c] sm:$0xe]
      %v1687 = vld [vmem:[%s1292 + $0x40] sm:$0xf]
      %v1688 = vld [vmem:[%s1292 + $0x44] sm:$0x1]
      %v1689 = vld [vmem:[%s1292 + $0x48] sm:$0xe]
      %v1690 = vld [vmem:[%s1292 + $0x4c] sm:$0xf]
      %v1691 = vld [vmem:[%s1292 + $0x50] sm:$0x1]
      %v1692 = vld [vmem:[%s1292 + $0x54] sm:$0xe]
      %v1693 = vld [vmem:[%s1292 + $0x58] sm:$0xf]
      %v1694 = vld [vmem:[%s1292 + $0x5c] sm:$0x1]
      %v1719 = vrot.slane %v1671, 5
      %v1720 = vrot.slane %v1719, 4
      %v1721 = vrot.slane %v1672, 5
      %v1722 = vsel %vm616, %v1720, %v1721
      %v1723 = vrot.slane %v1721, 4
      %v1724 = vrot.slane %v1673, 5
      %v1725 = vsel %vm616, %v1723, %v1724
      %v1726 = vrot.slane %v1674, 5
      %v1727 = vrot.slane %v1726, 4
      %v1728 = vrot.slane %v1675, 5
      %v1729 = vsel %vm616, %v1727, %v1728
      %v1730 = vrot.slane %v1728, 4
      %v1731 = vrot.slane %v1676, 5
      %v1732 = vsel %vm616, %v1730, %v1731
      %v1733 = vrot.slane %v1677, 5
      %v1734 = vrot.slane %v1733, 4
      %v1735 = vrot.slane %v1678, 5
      %v1736 = vsel %vm616, %v1734, %v1735
      %v1737 = vrot.slane %v1735, 4
      %v1738 = vrot.slane %v1679, 5
      %v1739 = vsel %vm616, %v1737, %v1738
      %v1740 = vrot.slane %v1680, 5
      %v1741 = vrot.slane %v1740, 4
      %v1742 = vrot.slane %v1681, 5
      %v1743 = vsel %vm616, %v1741, %v1742
      %v1744 = vrot.slane %v1742, 4
      %v1745 = vrot.slane %v1682, 5
      %v1746 = vsel %vm616, %v1744, %v1745
      %v1747 = vrot.slane %v1683, 5
      %v1748 = vrot.slane %v1747, 4
      %v1749 = vrot.slane %v1684, 5
      %v1750 = vsel %vm616, %v1748, %v1749
      %v1751 = vrot.slane %v1749, 4
      %v1752 = vrot.slane %v1685, 5
      %v1753 = vsel %vm616, %v1751, %v1752
      %v1754 = vrot.slane %v1686, 5
      %v1755 = vrot.slane %v1754, 4
      %v1756 = vrot.slane %v1687, 5
      %v1757 = vsel %vm616, %v1755, %v1756
      %v1758 = vrot.slane %v1756, 4
      %v1759 = vrot.slane %v1688, 5
      %v1760 = vsel %vm616, %v1758, %v1759
      %v1761 = vrot.slane %v1689, 5
      %v1762 = vrot.slane %v1761, 4
      %v1763 = vrot.slane %v1690, 5
      %v1764 = vsel %vm616, %v1762, %v1763
      %v1765 = vrot.slane %v1763, 4
      %v1766 = vrot.slane %v1691, 5
      %v1767 = vsel %vm616, %v1765, %v1766
      %v1768 = vrot.slane %v1692, 5
      %v1769 = vrot.slane %v1768, 4
      %v1770 = vrot.slane %v1693, 5
      %v1771 = vsel %vm616, %v1769, %v1770
      %v1772 = vrot.slane %v1770, 4
      %v1773 = vrot.slane %v1694, 5
      %v1774 = vsel %vm616, %v1772, %v1773
      %1775 = vrot.lane.b32.xlu0 %v1722, 32
      %v1776 = vpop.permute.xlu0 %1775
      %1777 = vrot.lane.b32.xlu0 %v1725, 32
      %v1778 = vpop.permute.xlu0 %1777
      %1779 = vrot.lane.b32.xlu0 %v1729, 32
      %v1780 = vpop.permute.xlu0 %1779
      %1781 = vrot.lane.b32.xlu0 %v1732, 32
      %v1782 = vpop.permute.xlu0 %1781
      %1783 = vrot.lane.b32.xlu0 %v1736, 32
      %v1784 = vpop.permute.xlu0 %1783
      %1785 = vrot.lane.b32.xlu0 %v1739, 32
      %v1786 = vpop.permute.xlu0 %1785
      %1787 = vrot.lane.b32.xlu0 %v1743, 32
      %v1788 = vpop.permute.xlu0 %1787
      %1789 = vrot.lane.b32.xlu0 %v1746, 32
      %v1790 = vpop.permute.xlu0 %1789
      %1791 = vrot.lane.b32.xlu0 %v1750, 32
      %v1792 = vpop.permute.xlu0 %1791
      %1793 = vrot.lane.b32.xlu0 %v1753, 32
      %v1794 = vpop.permute.xlu0 %1793
      %1795 = vrot.lane.b32.xlu0 %v1757, 32
      %v1796 = vpop.permute.xlu0 %1795
      %1797 = vrot.lane.b32.xlu0 %v1760, 32
      %v1798 = vpop.permute.xlu0 %1797
      %1799 = vrot.lane.b32.xlu0 %v1764, 32
      %v1800 = vpop.permute.xlu0 %1799
      %1801 = vrot.lane.b32.xlu0 %v1767, 32
      %v1802 = vpop.permute.xlu0 %1801
      %1803 = vrot.lane.b32.xlu0 %v1771, 32
      %v1804 = vpop.permute.xlu0 %1803
      %1805 = vrot.lane.b32.xlu0 %v1774, 32
      %v1806 = vpop.permute.xlu0 %1805
      %vm1823 = vcmask 290048
      %1824 = vst.msk [vmem:[#allocation2] sm:$0xf] %vm1823, %v1776
      %1825 = vst.msk [vmem:[#allocation2 + $0x4] sm:$0xf] %vm1823, %v1778
      %1826 = vst.msk [vmem:[#allocation2 + $0x8] sm:$0xf] %vm1823, %v1780
      %1827 = vst.msk [vmem:[#allocation2 + $0xc] sm:$0xf] %vm1823, %v1782
      %1828 = vst.msk [vmem:[#allocation2 + $0x10] sm:$0xf] %vm1823, %v1784
      %1829 = vst.msk [vmem:[#allocation2 + $0x14] sm:$0xf] %vm1823, %v1786
      %1830 = vst.msk [vmem:[#allocation2 + $0x18] sm:$0xf] %vm1823, %v1788
      %1831 = vst.msk [vmem:[#allocation2 + $0x1c] sm:$0xf] %vm1823, %v1790
      %1832 = vst.msk [vmem:[#allocation2 + $0x20] sm:$0xf] %vm1823, %v1792
      %1833 = vst.msk [vmem:[#allocation2 + $0x24] sm:$0xf] %vm1823, %v1794
      %1834 = vst.msk [vmem:[#allocation2 + $0x28] sm:$0xf] %vm1823, %v1796
      %1835 = vst.msk [vmem:[#allocation2 + $0x2c] sm:$0xf] %vm1823, %v1798
      %1836 = vst.msk [vmem:[#allocation2 + $0x30] sm:$0xf] %vm1823, %v1800
      %1837 = vst.msk [vmem:[#allocation2 + $0x34] sm:$0xf] %vm1823, %v1802
      %1838 = vst.msk [vmem:[#allocation2 + $0x38] sm:$0xf] %vm1823, %v1804
      %1839 = vst.msk [vmem:[#allocation2 + $0x3c] sm:$0xf] %vm1823, %v1806
      %v1840 = vld [vmem:[#allocation2] sm:$0xf]
      %v1841 = vld [vmem:[#allocation2 + $0x4] sm:$0xf]
      %v1842 = vld [vmem:[#allocation2 + $0x8] sm:$0xf]
      %v1843 = vld [vmem:[#allocation2 + $0xc] sm:$0xf]
      %v1844 = vld [vmem:[#allocation2 + $0x10] sm:$0xf]
      %v1845 = vld [vmem:[#allocation2 + $0x14] sm:$0xf]
      %v1846 = vld [vmem:[#allocation2 + $0x18] sm:$0xf]
      %v1847 = vld [vmem:[#allocation2 + $0x1c] sm:$0xf]
      %v1848 = vld [vmem:[#allocation2 + $0x20] sm:$0xf]
      %v1849 = vld [vmem:[#allocation2 + $0x24] sm:$0xf]
      %v1850 = vld [vmem:[#allocation2 + $0x28] sm:$0xf]
      %v1851 = vld [vmem:[#allocation2 + $0x2c] sm:$0xf]
      %v1852 = vld [vmem:[#allocation2 + $0x30] sm:$0xf]
      %v1853 = vld [vmem:[#allocation2 + $0x34] sm:$0xf]
      %v1854 = vld [vmem:[#allocation2 + $0x38] sm:$0xf]
      %v1855 = vld [vmem:[#allocation2 + $0x3c] sm:$0xf]
      %v1856 = vld [vmem:[%s1] sm:$0xf]
      %v1857 = vld [vmem:[%s1 + $0x4] sm:$0xf]
      %v1858 = vld [vmem:[%s1 + $0x8] sm:$0xf]
      %v1859 = vld [vmem:[%s1 + $0xc] sm:$0xf]
      %v1860 = vld [vmem:[%s1 + $0x10] sm:$0x3]
      %v1861 = vld [vmem:[%s2] sm:$0x1]
      %v1863 = vlaneseq
      %v1864 = vshrl.u32 %v1863, 7
      %v1865 = vsub.s32 0, %v1864
      %v1866 = vrot.slane %v1861, %v1865
      %v1884 = vunpack.c.l.b16 %v1840
      %v1885 = vunpack.c.l.b16 %v1841
      %v1886 = vunpack.c.l.b16 %v1842
      %v1887 = vunpack.c.l.b16 %v1843
      %v1888 = vunpack.c.l.b16 %v1844
      %v1889 = vunpack.c.l.b16 %v1845
      %v1890 = vunpack.c.l.b16 %v1846
      %v1891 = vunpack.c.l.b16 %v1847
      %v1892 = vunpack.c.l.b16 %v1848
      %v1893 = vunpack.c.l.b16 %v1849
      %v1894 = vunpack.c.l.b16 %v1850
      %v1895 = vunpack.c.l.b16 %v1851
      %v1896 = vunpack.c.l.b16 %v1852
      %v1897 = vunpack.c.l.b16 %v1853
      %v1898 = vunpack.c.l.b16 %v1854
      %v1899 = vunpack.c.l.b16 %v1855
      %v1900 = vpack.c.b16 %v1885, %v1884
      %v1901 = vpack.c.b16 %v1887, %v1886
      %v1902 = vpack.c.b16 %v1889, %v1888
      %v1903 = vpack.c.b16 %v1891, %v1890
      %v1904 = vpack.c.b16 %v1893, %v1892
      %v1905 = vpack.c.b16 %v1895, %v1894
      %v1906 = vpack.c.b16 %v1897, %v1896
      %v1907 = vpack.c.b16 %v1899, %v1898
      %v1913 = vunpack.c.l.b16 %v1856
      %v1914 = vunpack.c.l.b16 %v1857
      %v1915 = vunpack.c.l.b16 %v1858
      %v1916 = vunpack.c.l.b16 %v1859
      %v1917 = vunpack.c.l.b16 %v1860
      %v1918 = vpack.c.b16 %v1914, %v1913
      %v1919 = vpack.c.b16 %v1916, %v1915
      %v1920 = vpack.c.b16 %v1917, %v1917
      %vm1923 = vcmask 293888
      %v1925 = vsel %vm1923, %v1900, 0
      %v1928 = vsel %vm1923, %v1901, 0
      %v1931 = vsel %vm1923, %v1902, 0
      %v1934 = vsel %vm1923, %v1903, 0
      %v1937 = vsel %vm1923, %v1904, 0
      %v1940 = vsel %vm1923, %v1905, 0
      %v1943 = vsel %vm1923, %v1906, 0
      %v1946 = vsel %vm1923, %v1907, 0
      %vm1948 = vcmask 1041408
      %v1950 = vsel %vm1948, %v1920, 0
      %1952 = vmatprep.subr.bf16.mxu0 0
      %1953 = vmatpush1.bf16.msra.mxu0 0
      %1954 = vmatprep.subr.bf16.mxu0 0
      %1955 = vmatpush1.bf16.msra.mxu0 0
      %1956 = vmatprep.subr.bf16.mxu0 0
      %1957 = vmatpush1.bf16.msra.mxu0 0
      %1958 = vmatprep.subr.bf16.mxu0 0
      %1959 = vmatpush1.bf16.msra.mxu0 0
      %1960 = vmatprep.subr.bf16.mxu0 0
      %1961 = vmatpush1.bf16.msra.mxu0 0
      %1962 = vmatprep.subr.bf16.mxu0 0
      %1963 = vmatpush1.bf16.msra.mxu0 %v1950
      %1964 = vmatprep.subr.bf16.mxu0 0
      %1965 = vmatpush1.bf16.msra.mxu0 %v1919
      %1966 = vmatprep.subr.bf16.mxu0 0
      %1967 = vmatpush1.bf16.msra.mxu0 %v1918
      %1968 = vmatprep.subr.bf16.mxu0 0
      %1969 = vmatpush2.bf16.msra.mxu0 0
      %1970 = vmatprep.subr.bf16.mxu0 0
      %1971 = vmatpush2.bf16.msra.mxu0 0
      %1972 = vmatprep.subr.bf16.mxu0 0
      %1973 = vmatpush2.bf16.msra.mxu0 0
      %1974 = vmatprep.subr.bf16.mxu0 0
      %1975 = vmatpush2.bf16.msra.mxu0 0
      %1976 = vmatprep.subr.bf16.mxu0 0
      %1977 = vmatpush2.bf16.msra.mxu0 0
      %1978 = vmatprep.subr.bf16.mxu0 0
      %1979 = vmatpush2.bf16.msra.mxu0 0
      %1980 = vmatprep.subr.bf16.mxu0 0
      %1981 = vmatpush2.bf16.msra.mxu0 0
      %1982 = vmatprep.subr.bf16.mxu0 0
      %1983 = vmatpush2.bf16.msra.mxu0 0
      %1984 = vmatprep.mubr.bf16.mxu0 0
      %1985 = vmatmul.mubr.bf16.gmra.mxu0 %v1925
      %v1986 = vpop.f32.mrf.mxu0
      %v1987 = vadd.f32 %v1866, %v1986
      %v1988 = vpop.f32.mrf.mxu0
      %v1989 = vpop.f32.mrf.mxu0
      %v1990 = vadd.f32 %v1866, %v1989
      %v1991 = vpop.f32.mrf.mxu0
      %1992 = vmatprep.mubr.bf16.mxu0 0
      %1993 = vmatmul.mubr.bf16.gmra.mxu0 %v1928
      %v1994 = vpop.f32.mrf.mxu0
      %v1995 = vadd.f32 %v1866, %v1994
      %v1996 = vpop.f32.mrf.mxu0
      %v1997 = vpop.f32.mrf.mxu0
      %v1998 = vadd.f32 %v1866, %v1997
      %v1999 = vpop.f32.mrf.mxu0
      %2000 = vmatprep.mubr.bf16.mxu0 0
      %2001 = vmatmul.mubr.bf16.gmra.mxu0 %v1931
      %v2002 = vpop.f32.mrf.mxu0
      %v2003 = vadd.f32 %v1866, %v2002
      %v2004 = vpop.f32.mrf.mxu0
      %v2005 = vpop.f32.mrf.mxu0
      %v2006 = vadd.f32 %v1866, %v2005
      %v2007 = vpop.f32.mrf.mxu0
      %2008 = vmatprep.mubr.bf16.mxu0 0
      %2009 = vmatmul.mubr.bf16.gmra.mxu0 %v1934
      %v2010 = vpop.f32.mrf.mxu0
      %v2011 = vadd.f32 %v1866, %v2010
      %v2012 = vpop.f32.mrf.mxu0
      %v2013 = vpop.f32.mrf.mxu0
      %v2014 = vadd.f32 %v1866, %v2013
      %v2015 = vpop.f32.mrf.mxu0
      %2016 = vmatprep.mubr.bf16.mxu0 0
      %2017 = vmatmul.mubr.bf16.gmra.mxu0 %v1937
      %v2018 = vpop.f32.mrf.mxu0
      %v2019 = vadd.f32 %v1866, %v2018
      %v2020 = vpop.f32.mrf.mxu0
      %v2021 = vpop.f32.mrf.mxu0
      %v2022 = vadd.f32 %v1866, %v2021
      %v2023 = vpop.f32.mrf.mxu0
      %2024 = vmatprep.mubr.bf16.mxu0 0
      %2025 = vmatmul.mubr.bf16.gmra.mxu0 %v1940
      %v2026 = vpop.f32.mrf.mxu0
      %v2027 = vadd.f32 %v1866, %v2026
      %v2028 = vpop.f32.mrf.mxu0
      %v2029 = vpop.f32.mrf.mxu0
      %v2030 = vadd.f32 %v1866, %v2029
      %v2031 = vpop.f32.mrf.mxu0
      %2032 = vmatprep.mubr.bf16.mxu0 0
      %2033 = vmatmul.mubr.bf16.gmra.mxu0 %v1943
      %v2034 = vpop.f32.mrf.mxu0
      %v2035 = vadd.f32 %v1866, %v2034
      %v2036 = vpop.f32.mrf.mxu0
      %v2037 = vpop.f32.mrf.mxu0
      %v2038 = vadd.f32 %v1866, %v2037
      %v2039 = vpop.f32.mrf.mxu0
      %2040 = vmatprep.mubr.bf16.mxu0 0
      %2041 = vmatmul.mubr.bf16.gmra.mxu0 %v1946
      %v2042 = vpop.f32.mrf.mxu0
      %v2043 = vadd.f32 %v1866, %v2042
      %v2044 = vpop.f32.mrf.mxu0
      %v2045 = vpop.f32.mrf.mxu0
      %v2046 = vadd.f32 %v1866, %v2045
      %v2047 = vpop.f32.mrf.mxu0
      %2048 = vdwg.mxu0
      %vm2049 = vcmask 64512
      %v2050 = vsel %vm2049, %v1987, 0.0
      %v2051 = vsel %vm2049, %v1990, 0.0
      %v2052 = vadd.f32 %v2050, %v2051
      %v2053 = vsel %vm2049, %v1995, 0.0
      %v2054 = vadd.f32 %v2052, %v2053
      %v2055 = vsel %vm2049, %v1998, 0.0
      %v2056 = vadd.f32 %v2054, %v2055
      %v2057 = vsel %vm2049, %v2003, 0.0
      %v2058 = vadd.f32 %v2056, %v2057
      %v2059 = vsel %vm2049, %v2006, 0.0
      %v2060 = vadd.f32 %v2058, %v2059
      %v2061 = vsel %vm2049, %v2011, 0.0
      %v2062 = vadd.f32 %v2060, %v2061
      %v2063 = vsel %vm2049, %v2014, 0.0
      %v2064 = vadd.f32 %v2062, %v2063
      %v2065 = vsel %vm2049, %v2019, 0.0
      %v2066 = vadd.f32 %v2064, %v2065
      %v2067 = vsel %vm2049, %v2022, 0.0
      %v2068 = vadd.f32 %v2066, %v2067
      %v2069 = vsel %vm2049, %v2027, 0.0
      %v2070 = vadd.f32 %v2068, %v2069
      %v2071 = vsel %vm2049, %v2030, 0.0
      %v2072 = vadd.f32 %v2070, %v2071
      %v2073 = vsel %vm2049, %v2035, 0.0
      %v2074 = vadd.f32 %v2072, %v2073
      %v2075 = vsel %vm2049, %v2038, 0.0
      %v2076 = vadd.f32 %v2074, %v2075
      %v2077 = vsel %vm2049, %v2043, 0.0
      %v2078 = vadd.f32 %v2076, %v2077
      %v2079 = vsel %vm2049, %v2046, 0.0
      %v2080 = vadd.f32 %v2078, %v2079
      %v2081 = vrot.slane %v2080, 4
      %v2082 = vadd.f32 %v2080, %v2081
      %v2083 = vrot.slane %v2082, 2
      %v2084 = vadd.f32 %v2082, %v2083
      %v2085 = vrot.slane %v2084, 1
      %v2086 = vadd.f32 %v2084, %v2085
      %vm2087 = vcmask 57344
      %2088 = vst.msk [vmem:[%s243] sm:$0x1] %vm2087, %v2086
      %v2089 = vmul.f32 %v1987, %v1987
      %v2090 = vmul.f32 %v1990, %v1990
      %v2091 = vmul.f32 %v1995, %v1995
      %v2092 = vmul.f32 %v1998, %v1998
      %v2093 = vmul.f32 %v2003, %v2003
      %v2094 = vmul.f32 %v2006, %v2006
      %v2095 = vmul.f32 %v2011, %v2011
      %v2096 = vmul.f32 %v2014, %v2014
      %v2097 = vmul.f32 %v2019, %v2019
      %v2098 = vmul.f32 %v2022, %v2022
      %v2099 = vmul.f32 %v2027, %v2027
      %v2100 = vmul.f32 %v2030, %v2030
      %v2101 = vmul.f32 %v2035, %v2035
      %v2102 = vmul.f32 %v2038, %v2038
      %v2103 = vmul.f32 %v2043, %v2043
      %v2104 = vmul.f32 %v2046, %v2046
      %v2105 = vsel %vm2049, %v2089, 0.0
      %v2106 = vsel %vm2049, %v2090, 0.0
      %v2107 = vadd.f32 %v2105, %v2106
      %v2108 = vsel %vm2049, %v2091, 0.0
      %v2109 = vadd.f32 %v2107, %v2108
      %v2110 = vsel %vm2049, %v2092, 0.0
      %v2111 = vadd.f32 %v2109, %v2110
      %v2112 = vsel %vm2049, %v2093, 0.0
      %v2113 = vadd.f32 %v2111, %v2112
      %v2114 = vsel %vm2049, %v2094, 0.0
      %v2115 = vadd.f32 %v2113, %v2114
      %v2116 = vsel %vm2049, %v2095, 0.0
      %v2117 = vadd.f32 %v2115, %v2116
      %v2118 = vsel %vm2049, %v2096, 0.0
      %v2119 = vadd.f32 %v2117, %v2118
      %v2120 = vsel %vm2049, %v2097, 0.0
      %v2121 = vadd.f32 %v2119, %v2120
      %v2122 = vsel %vm2049, %v2098, 0.0
      %v2123 = vadd.f32 %v2121, %v2122
      %v2124 = vsel %vm2049, %v2099, 0.0
      %v2125 = vadd.f32 %v2123, %v2124
      %v2126 = vsel %vm2049, %v2100, 0.0
      %v2127 = vadd.f32 %v2125, %v2126
      %v2128 = vsel %vm2049, %v2101, 0.0
      %v2129 = vadd.f32 %v2127, %v2128
      %v2130 = vsel %vm2049, %v2102, 0.0
      %v2131 = vadd.f32 %v2129, %v2130
      %v2132 = vsel %vm2049, %v2103, 0.0
      %v2133 = vadd.f32 %v2131, %v2132
      %v2134 = vsel %vm2049, %v2104, 0.0
      %v2135 = vadd.f32 %v2133, %v2134
      %v2136 = vrot.slane %v2135, 4
      %v2137 = vadd.f32 %v2135, %v2136
      %v2138 = vrot.slane %v2137, 2
      %v2139 = vadd.f32 %v2137, %v2138
      %v2140 = vrot.slane %v2139, 1
      %v2141 = vadd.f32 %v2139, %v2140
      %2142 = vst.msk [vmem:[%s243 + $0x1] sm:$0x1] %vm2087, %v2141
      %2143 = vst.msk [vmem:[%s234] sm:$0xff] %vm2049, %v1987
      %2144 = vst.msk [vmem:[%s234 + $0x8] sm:$0xff] %vm2049, %v1990
      %2145 = vst.msk [vmem:[%s234 + $0x10] sm:$0xff] %vm2049, %v1995
      %2146 = vst.msk [vmem:[%s234 + $0x18] sm:$0xff] %vm2049, %v1998
      %2147 = vst.msk [vmem:[%s234 + $0x20] sm:$0xff] %vm2049, %v2003
      %2148 = vst.msk [vmem:[%s234 + $0x28] sm:$0xff] %vm2049, %v2006
      %2149 = vst.msk [vmem:[%s234 + $0x30] sm:$0xff] %vm2049, %v2011
      %2150 = vst.msk [vmem:[%s234 + $0x38] sm:$0xff] %vm2049, %v2014
      %2151 = vst.msk [vmem:[%s234 + $0x40] sm:$0xff] %vm2049, %v2019
      %2152 = vst.msk [vmem:[%s234 + $0x48] sm:$0xff] %vm2049, %v2022
      %2153 = vst.msk [vmem:[%s234 + $0x50] sm:$0xff] %vm2049, %v2027
      %2154 = vst.msk [vmem:[%s234 + $0x58] sm:$0xff] %vm2049, %v2030
      %2155 = vst.msk [vmem:[%s234 + $0x60] sm:$0xff] %vm2049, %v2035
      %2156 = vst.msk [vmem:[%s234 + $0x68] sm:$0xff] %vm2049, %v2038
      %2157 = vst.msk [vmem:[%s234 + $0x70] sm:$0xff] %vm2049, %v2043
      %2158 = vst.msk [vmem:[%s234 + $0x78] sm:$0xff] %vm2049, %v2046
      %s2159 = smul.u32 8, %s21
      %p2160 = scmp.lt.s32.totalorder %s20, 1
      %s2161 = scalar_select %p2160, %s20, 1
      %p2162 = scmp.lt.s32.totalorder %s2159, 15
      %s2163 = scalar_select %p2162, %s2159, 15
      %s2164 = smul.addr %s2163, 2
      %s2165 = smul.addr %s2161, 32
      %s2166 = sadd.s32 %s2164, %s2165
      %s2167 = smul.addr %s2166, 8
      %s2168 = scalar_lea.vmem %s3, %s2167
      %p2169 = scmp.lt.s32.totalorder %s20, 1
      %s2170 = scalar_select %p2169, %s20, 1
      %p2171 = scmp.lt.s32.totalorder %s21, 1
      %s2172 = scalar_select %p2171, %s21, 1
      %s2173 = smul.addr %s2170, 2
      %s2174 = sadd.s32 %s2172, %s2173
      %s2175 = smul.addr %s2174, 2
      %s2176 = scalar_lea.vmem %s4, %s2175
      // Predicated region
      $region33: #{fcn_conv_forward.5} parent=31 // pred_check
        %p2177 = pneg %p116
      $region34: #{fcn_conv_forward.5} parent=31 // pred_check_branch
        %2179 = sbr.rel (%p2177) target = $region36
      $region35: #{fcn_conv_forward.5} parent=31 // pred_region
        %s2180 = smul.u32 8, %s21
      $region36: #{fcn_conv_forward.5} parent=31 // pred_fallthru
        _
      // Predicated region
      $region37: #{fcn_conv_forward.5} parent=31 // pred_check
        %p2181 = pneg %p144
      $region38: #{fcn_conv_forward.5} parent=31 // pred_check_branch
        %2183 = sbr.rel (%p2181) target = $region40
      $region39: #{fcn_conv_forward.5} parent=31 // pred_region
        _
      $region40: #{fcn_conv_forward.5} parent=31 // pred_fallthru
        _
    $region32: #{fcn_conv_forward.5} parent=5 // pred_fallthru
      _
    %p2184 = scmp.le.s32.totalorder 2, %s11
    // Predicated region
    $region41: #{fcn_conv_forward.5} parent=5 // pred_check
      %p2185 = pneg %p2184
    $region42: #{fcn_conv_forward.5} parent=5 // pred_check_branch
      %2187 = sbr.rel (%p2185) target = $region44
    $region43: #{fcn_conv_forward.5} parent=5 // pred_region
      %s2188 = ssub.s32 %s11, 2
      // Predicated region
      $region45: #{fcn_conv_forward.5} parent=43 // pred_check
        %p2189 = pneg %p122
      $region46: #{fcn_conv_forward.5} parent=43 // pred_check_branch
        %2191 = sbr.rel (%p2189) target = $region48
      $region47: #{fcn_conv_forward.5} parent=43 // pred_region
        %s2192 = smul.u32 8, %s23
        %p2193 = scmp.lt.s32.totalorder %s22, 1
        %s2194 = scalar_select %p2193, %s22, 1
        %p2195 = scmp.lt.s32.totalorder %s2192, 15
        %s2196 = scalar_select %p2195, %s2192, 15
        %s2197 = smul.addr %s2196, 2
        %s2198 = smul.addr %s2194, 32
        %s2199 = sadd.s32 %s2197, %s2198
        %s2200 = smul.addr %s2199, 8
        %s2201 = scalar_lea.vmem %s3, %s2200
      $region48: #{fcn_conv_forward.5} parent=43 // pred_fallthru
        _
      // Predicated region
      $region49: #{fcn_conv_forward.5} parent=43 // pred_check
        %p2202 = pneg %p150
      $region50: #{fcn_conv_forward.5} parent=43 // pred_check_branch
        %2204 = sbr.rel (%p2202) target = $region52
      $region51: #{fcn_conv_forward.5} parent=43 // pred_region
        %p2205 = scmp.lt.s32.totalorder %s22, 1
        %s2206 = scalar_select %p2205, %s22, 1
        %p2207 = scmp.lt.s32.totalorder %s23, 1
        %s2208 = scalar_select %p2207, %s23, 1
        %s2209 = smul.addr %s2206, 2
        %s2210 = sadd.s32 %s2208, %s2209
        %s2211 = smul.addr %s2210, 2
        %s2212 = scalar_lea.vmem %s4, %s2211
      $region52: #{fcn_conv_forward.5} parent=43 // pred_fallthru
        _
    $region44: #{fcn_conv_forward.5} parent=5 // pred_fallthru
      _
  $region6: #{fcn_conv_forward.5} parent=0 // loop_footer
    %s15 = sadd.s32 1, %s11
  $region7: #{fcn_conv_forward.5} parent=0 // loop_footer_branch
    %10 = sbr.rel target = $region3
  $region8: #{fcn_conv_forward.5} parent=0 // loop_exit
    _

</llo_original>
